<compile_context>
chip_gen: v5e
topology: v5e:2x2
jax: 0.10.0
libtpu: 0.0.40
codegen_flags: <defaults>
</compile_context>

<pallas_src>
import functools

import jax
import jax.numpy as jnp
from jax import lax
from jax.experimental import pallas as pl
from jax.experimental.pallas import tpu as pltpu

EXPANSION = 4
BN_EPS = 1e-5
COMPUTE_DTYPE = jnp.bfloat16            # MXU-native on v5e / v6e / v7x
VMEM_LIMIT_BYTES = 64 * 1024 * 1024     # == v7x physical VMEM; headroom on v5e/v6e


# ------------------------------ Pallas kernels ------------------------------

def _main_branch(x, w1_ref, b1_ref, w2_ref, b2_ref, w3_ref, b3_ref, hp_ref, *,
                 h, w, h_out, w_out, stride, dilation, groups):
    """conv1+BN1+ReLU -> padded VMEM scratch -> conv2+BN2+ReLU -> conv3+BN3.

    x       : (h, w, ch_in) input block for one image (input dtype).
    hp_ref  : (h+2, w+2, c1) f32 VMEM scratch (padding=1, per the module).
    w*_ref  : BN-scale-folded weights (bf16); b*_ref f32 bias rows.
    Returns f32 (h_out*w_out, ch_exp): main branch, pre-residual.
    """
    ch_in = x.shape[-1]
    c1 = w1_ref.shape[1]

    # conv1 (1x1) + BN1 + ReLU — one matmul over all pixels of the image.
    x_rows = x.reshape(h * w, ch_in).astype(w1_ref.dtype)
    h1 = jnp.dot(x_rows, w1_ref[...], preferred_element_type=jnp.float32)
    h1 = jnp.maximum(h1 + b1_ref[...], 0.0)

    # Zero-padded activation kept resident in VMEM (f32 so the unaligned
    # tap slices stay on plain (8,128) layouts; taps are cast to bf16 right
    # before their MXU dot).  Zeroing the whole scratch each step is cheap
    # and megacore-safe (each core owns its own scratch copy).
    hp_ref[...] = jnp.zeros_like(hp_ref)
    hp_ref[1:1 + h, 1:1 + w, :] = h1.reshape(h, w, c1)

    # conv2 (3x3, grouped/strided/dilated): 9 tap matmuls per group, f32 acc.
    cin_g = c1 // groups
    wg_out = w2_ref.shape[-1]
    rows = h_out * w_out

    group_cols = []
    for gi in range(groups):
        chan = slice(None) if groups == 1 else pl.ds(gi * cin_g, cin_g)
        acc = jnp.zeros((rows, wg_out), jnp.float32)
        for ky in range(3):
            for kx in range(3):
                r0, c0 = ky * dilation, kx * dilation
                if stride == 1:
                    tap = hp_ref[r0:r0 + h_out, c0:c0 + w_out, chan]
                else:
                    tap = hp_ref[pl.ds(r0, h_out, stride=stride),
                                 pl.ds(c0, w_out, stride=stride), chan]
                # layout-trivial collapse of the two leading dims
                # (w_out % 8 == 0 for the tested shapes / typical ResNet stages).
                lhs = tap.reshape(rows, cin_g).astype(w2_ref.dtype)
                acc = acc + jnp.dot(lhs, w2_ref[gi * 9 + ky * 3 + kx],
                                    preferred_element_type=jnp.float32)
        group_cols.append(acc)

    h2 = group_cols[0] if groups == 1 else jnp.concatenate(group_cols, axis=-1)
    h2 = jnp.maximum(h2 + b2_ref[...], 0.0).astype(w3_ref.dtype)

    # conv3 (1x1) + BN3.
    return jnp.dot(h2, w3_ref[...], preferred_element_type=jnp.float32) + b3_ref[...]


def _bottleneck_identity_kernel(x_ref, w1_ref, b1_ref, w2_ref, b2_ref,
                                w3_ref, b3_ref, o_ref, hp_ref, *,
                                h, w, h_out, w_out, stride, dilation, groups):
    x = x_ref[...]
    main = _main_branch(x, w1_ref, b1_ref, w2_ref, b2_ref, w3_ref, b3_ref,
                        hp_ref, h=h, w=w, h_out=h_out, w_out=w_out,
                        stride=stride, dilation=dilation, groups=groups)
    # identity shortcut: plain VPU add in f32 — no eye-matrix matmul.
    ident = x.reshape(h * w, x.shape[-1]).astype(jnp.float32)
    o_ref[...] = jnp.maximum(main + ident, 0.0).astype(o_ref.dtype)


def _bottleneck_downsample_kernel(x_ref, w1_ref, b1_ref, w2_ref, b2_ref,
                                  w3_ref, b3_ref, wd_ref, bd_ref, o_ref, hp_ref,
                                  *, h, w, h_out, w_out, stride, dilation, groups):
    x = x_ref[...]
    main = _main_branch(x, w1_ref, b1_ref, w2_ref, b2_ref, w3_ref, b3_ref,
                        hp_ref, h=h, w=w, h_out=h_out, w_out=w_out,
                        stride=stride, dilation=dilation, groups=groups)
    # downsample shortcut: strided slice of the resident input + 1x1 matmul.
    if stride == 1:
        x_sub = x[:h_out, :w_out, :]
    else:
        x_sub = x_ref[pl.ds(0, h_out, stride=stride),
                      pl.ds(0, w_out, stride=stride), :]
    xid = x_sub.reshape(h_out * w_out, x.shape[-1]).astype(wd_ref.dtype)
    ident = jnp.dot(xid, wd_ref[...],
                    preferred_element_type=jnp.float32) + bd_ref[...]
    o_ref[...] = jnp.maximum(main + ident, 0.0).astype(o_ref.dtype)


# ------------------------------ pallas wrapper ------------------------------

def fused_bottleneck(x_nhwc, w1, b1, w2, b2, w3, b3, wd, bd, *,
                     h_out, w_out, stride, dilation, groups, out_dtype):
    n, h, w, ch_in = x_nhwc.shape
    c1 = w1.shape[1]
    ch_exp = w3.shape[1]
    rows = h_out * w_out
    has_down = wd is not None

    kern = _bottleneck_downsample_kernel if has_down else _bottleneck_identity_kernel
    kernel = functools.partial(kern, h=h, w=w, h_out=h_out, w_out=w_out,
                               stride=stride, dilation=dilation, groups=groups)

    in_specs = [
        pl.BlockSpec((None, h, w, ch_in), lambda i: (i, 0, 0, 0)),
        pl.BlockSpec(w1.shape, lambda i: (0, 0)),
        pl.BlockSpec(b1.shape, lambda i: (0, 0)),
        pl.BlockSpec(w2.shape, lambda i: (0, 0, 0)),
        pl.BlockSpec(b2.shape, lambda i: (0, 0)),
        pl.BlockSpec(w3.shape, lambda i: (0, 0)),
        pl.BlockSpec(b3.shape, lambda i: (0, 0)),
    ]
    args = [x_nhwc, w1, b1, w2, b2, w3, b3]
    if has_down:
        in_specs += [pl.BlockSpec(wd.shape, lambda i: (0, 0)),
                     pl.BlockSpec(bd.shape, lambda i: (0, 0))]
        args += [wd, bd]

    return pl.pallas_call(
        kernel,
        out_shape=jax.ShapeDtypeStruct((n, rows, ch_exp), out_dtype),
        grid=(n,),
        in_specs=in_specs,
        out_specs=pl.BlockSpec((None, rows, ch_exp), lambda i: (i, 0, 0)),
        scratch_shapes=[pltpu.VMEM((h + 2, w + 2, c1), jnp.float32)],
        compiler_params=pltpu.CompilerParams(
            dimension_semantics=("parallel",),
            vmem_limit_bytes=VMEM_LIMIT_BYTES),
    )(*args)


# ------------------------------ glue / params ------------------------------

def _fold_bn(conv_bias, gamma, beta, mean, var):
    scale = gamma / jnp.sqrt(var + BN_EPS)
    bias = (conv_bias - mean) * scale + beta
    return scale, bias


def init_params(key, ch_in, ch_out, stride=1, groups=1, dilation=1):
    assert ch_in % groups == 0 and ch_out % groups == 0
    width = ch_out * groups
    ch_exp = ch_out * EXPANSION
    ks = jax.random.split(key, 12)

    def w(k, shape):
        return 0.1 * jax.random.normal(k, shape, jnp.float32)

    def bn_p(k, c):
        k1, k2, k3, k4 = jax.random.split(k, 4)
        return dict(
            gamma=jax.random.uniform(k1, (c,), jnp.float32, 0.5, 1.5),
            beta=0.1 * jax.random.normal(k2, (c,), jnp.float32),
            mean=0.1 * jax.random.normal(k3, (c,), jnp.float32),
            var=jax.random.uniform(k4, (c,), jnp.float32, 0.5, 1.5),
        )

    params = dict(
        ch_in=ch_in, ch_out=ch_out, stride=stride, groups=groups, dilation=dilation,
        conv1_w=w(ks[0], (ch_out, ch_in, 1, 1)), conv1_b=w(ks[1], (ch_out,)),
        bn1=bn_p(ks[2], ch_out),
        conv2_w=w(ks[3], (width, ch_out // groups, 3, 3)), conv2_b=w(ks[4], (width,)),
        bn2=bn_p(ks[5], width),
        conv3_w=w(ks[6], (ch_exp, width, 1, 1)), conv3_b=w(ks[7], (ch_exp,)),
        bn3=bn_p(ks[8], ch_exp),
    )
    if stride != 1 or ch_in != ch_exp:
        params["down_w"] = w(ks[9], (ch_exp, ch_in, 1, 1))
        params["down_b"] = w(ks[10], (ch_exp,))
        params["bn_d"] = bn_p(ks[11], ch_exp)
    return params


def bottleneck_forward(params, x_nchw):
    ch_in, ch_out = params["ch_in"], params["ch_out"]
    s, g, d = params["stride"], params["groups"], params["dilation"]
    width = ch_out * g
    ch_exp = ch_out * EXPANSION
    n, _, h, w = x_nchw.shape

    x = jnp.transpose(x_nchw, (0, 2, 3, 1))                   # NHWC

    # conv2 output spatial size (kernel 3, padding 1, dilation d, stride s).
    h_out = (h + 2 - 2 * d - 1) // s + 1
    w_out = (w + 2 - 2 * d - 1) // s + 1

    # conv1 (1x1) weights — BN1 scale folded into weight columns.
    s1, b1 = _fold_bn(params["conv1_b"], **params["bn1"])
    w1 = (params["conv1_w"][:, :, 0, 0].T * s1[None, :]).astype(COMPUTE_DTYPE)
    b1 = b1.reshape(1, ch_out)

    # conv2 weights: per-group tap matrices (no block-diagonal zeros), BN2 folded.
    cin_g, wg_out = ch_out // g, width // g
    s2, b2 = _fold_bn(params["conv2_b"], **params["bn2"])
    w2 = params["conv2_w"] * s2[:, None, None, None]           # (width, cin_g, 3, 3)
    w2 = w2.reshape(g, wg_out, cin_g, 3, 3)
    w2 = jnp.transpose(w2, (0, 3, 4, 2, 1)).reshape(g * 9, cin_g, wg_out)
    w2 = w2.astype(COMPUTE_DTYPE)
    b2 = b2.reshape(1, width)

    # conv3 weights + BN3.
    s3, b3 = _fold_bn(params["conv3_b"], **params["bn3"])
    w3 = (params["conv3_w"][:, :, 0, 0].T * s3[None, :]).astype(COMPUTE_DTYPE)
    b3 = b3.reshape(1, ch_exp)

    # shortcut path weights (identity path needs none — plain VPU add).
    if "down_w" in params:
        sd, bd = _fold_bn(params["down_b"], **params["bn_d"])
        wd = (params["down_w"][:, :, 0, 0].T * sd[None, :]).astype(COMPUTE_DTYPE)
        bd = bd.reshape(1, ch_exp)
    else:
        assert ch_in == ch_exp and s == 1
        wd = bd = None

    out_rows = fused_bottleneck(
        x, w1, b1, w2, b2, w3, b3, wd, bd,
        h_out=h_out, w_out=w_out, stride=s, dilation=d, groups=g,
        out_dtype=x_nchw.dtype)

    out = out_rows.reshape(n, h_out, w_out, ch_exp)
    return jnp.transpose(out, (0, 3, 1, 2))                    # back to NCHW


# --------------------------- pure-JAX reference ----------------------------

def _conv2d_ref(x, w, b, stride=1, padding=0, groups=1, dilation=1):
    y = lax.conv_general_dilated(
        x, w, window_strides=(stride, stride),
        padding=[(padding, padding), (padding, padding)],
        rhs_dilation=(dilation, dilation),
        dimension_numbers=("NCHW", "OIHW", "NCHW"),
        feature_group_count=groups)
    return y + b[None, :, None, None]


def _bn_ref(x, gamma, beta, mean, var):
    sc = gamma / jnp.sqrt(var + BN_EPS)
    return (x - mean[None, :, None, None]) * sc[None, :, None, None] + beta[None, :, None, None]


def bottleneck_ref(params, x):
    out = _conv2d_ref(x, params["conv1_w"], params["conv1_b"])
    out = jnp.maximum(_bn_ref(out, **params["bn1"]), 0.0)
    out = _conv2d_ref(out, params["conv2_w"], params["conv2_b"],
                      stride=params["stride"], padding=1,
                      groups=params["groups"], dilation=params["dilation"])
    out = jnp.maximum(_bn_ref(out, **params["bn2"]), 0.0)
    out = _conv2d_ref(out, params["conv3_w"], params["conv3_b"])
    out = _bn_ref(out, **params["bn3"])
    if "down_w" in params:
        ident = _conv2d_ref(x, params["down_w"], params["down_b"], stride=params["stride"])
        ident = _bn_ref(ident, **params["bn_d"])
    else:
        ident = x
    return jnp.maximum(out + ident, 0.0)


# ----------------------------------- main -----------------------------------

if __name__ == "__main__":
    key = jax.random.PRNGKey(0)
    k1, k2, k3, k4 = jax.random.split(key, 4)
    N, H, W = 2, 16, 16
    TOL = 5e-2   # bf16 matmul operands vs. f32 reference

    # config 1: downsample shortcut (ch_in != ch_out * expansion)
    x1 = jax.random.normal(k1, (N, 4, H, W), jnp.float32)
    p1 = init_params(k2, ch_in=4, ch_out=4, stride=1, groups=1, dilation=1)
    out1 = jax.block_until_ready(bottleneck_forward(p1, x1))
    ref1 = bottleneck_ref(p1, x1)
    assert out1.shape == (N, 16, H, W), out1.shape
    assert bool(jnp.allclose(out1, ref1, atol=TOL, rtol=TOL)), \
        float(jnp.max(jnp.abs(out1 - ref1)))

    # config 2: identity shortcut (ch_in == ch_out * expansion) — VPU-add path
    x2 = jax.random.normal(k3, (N, 16, H, W), jnp.float32)
    p2 = init_params(k4, ch_in=16, ch_out=4, stride=1, groups=1, dilation=1)
    out2 = jax.block_until_ready(bottleneck_forward(p2, x2))
    ref2 = bottleneck_ref(p2, x2)
    assert out2.shape == (N, 16, H, W), out2.shape
    assert bool(jnp.allclose(out2, ref2, atol=TOL, rtol=TOL)), \
        float(jnp.max(jnp.abs(out2 - ref2)))

    print("KERNEL_OK")
</pallas_src>

<mosaic_0001>
module attributes {stable_mosaic.version = 11 : i64} {
  func.func @_bottleneck_downsample_kernel(%arg0: i32, %arg1: memref<1x16x16x4xf32, #tpu.memory_space<vmem>>, %arg2: memref<4x4xbf16, #tpu.memory_space<vmem>>, %arg3: memref<1x4xf32, #tpu.memory_space<vmem>>, %arg4: memref<9x4x4xbf16, #tpu.memory_space<vmem>>, %arg5: memref<1x4xf32, #tpu.memory_space<vmem>>, %arg6: memref<4x16xbf16, #tpu.memory_space<vmem>>, %arg7: memref<1x16xf32, #tpu.memory_space<vmem>>, %arg8: memref<4x16xbf16, #tpu.memory_space<vmem>>, %arg9: memref<1x16xf32, #tpu.memory_space<vmem>>, %arg10: memref<1x256x16xf32, #tpu.memory_space<vmem>>, %arg11: memref<18x18x4xf32, #tpu.memory_space<vmem>>) attributes {dimension_semantics = [#tpu.dimension_semantics<parallel>], iteration_bounds = array<i64: 2>, scalar_prefetch = 0 : i64, scratch_operands = 1 : i64, tpu.core_type = #tpu.core_type<tc>, window_params = [{transform_indices = @transform_0, window_bounds = array<i64: 1, 16, 16, 4>}, {pipeline_mode = #tpu.pipeline_mode<synchronous>, transform_indices = @transform_1, window_bounds = array<i64: 4, 4>}, {pipeline_mode = #tpu.pipeline_mode<synchronous>, transform_indices = @transform_2, window_bounds = array<i64: 1, 4>}, {pipeline_mode = #tpu.pipeline_mode<synchronous>, transform_indices = @transform_3, window_bounds = array<i64: 9, 4, 4>}, {pipeline_mode = #tpu.pipeline_mode<synchronous>, transform_indices = @transform_4, window_bounds = array<i64: 1, 4>}, {pipeline_mode = #tpu.pipeline_mode<synchronous>, transform_indices = @transform_5, window_bounds = array<i64: 4, 16>}, {pipeline_mode = #tpu.pipeline_mode<synchronous>, transform_indices = @transform_6, window_bounds = array<i64: 1, 16>}, {pipeline_mode = #tpu.pipeline_mode<synchronous>, transform_indices = @transform_7, window_bounds = array<i64: 4, 16>}, {pipeline_mode = #tpu.pipeline_mode<synchronous>, transform_indices = @transform_8, window_bounds = array<i64: 1, 16>}, {transform_indices = @transform_9, window_bounds = array<i64: 1, 256, 16>}]} {
    %c0 = arith.constant 0 : index
    %c0_0 = arith.constant 0 : index
    %c0_1 = arith.constant 0 : index
    %c0_2 = arith.constant 0 : index
    %0 = vector.load %arg1[%c0, %c0_0, %c0_1, %c0_2] : memref<1x16x16x4xf32, #tpu.memory_space<vmem>>, vector<1x16x16x4xf32>
    %1 = vector.shape_cast %0 : vector<1x16x16x4xf32> to vector<16x16x4xf32>
    %2 = vector.shape_cast %1 : vector<16x16x4xf32> to vector<256x4xf32>
    %3 = arith.truncf %2 : vector<256x4xf32> to vector<256x4xbf16>
    %c0_3 = arith.constant 0 : index
    %c0_4 = arith.constant 0 : index
    %4 = vector.load %arg2[%c0_3, %c0_4] : memref<4x4xbf16, #tpu.memory_space<vmem>>, vector<4x4xbf16>
    %cst = arith.constant dense<0.000000e+00> : vector<256x4xf32>
    %5 = tpu.matmul %3, %4, %cst {dimension_numbers = #tpu.dot_dimension_numbers<[1], [0], [0], [1], [0, 0, 1, 1], [], []>} : vector<256x4xbf16>, vector<4x4xbf16>, vector<256x4xf32> -> vector<256x4xf32>
    %c0_5 = arith.constant 0 : index
    %c0_6 = arith.constant 0 : index
    %6 = vector.load %arg3[%c0_5, %c0_6] : memref<1x4xf32, #tpu.memory_space<vmem>>, vector<1x4xf32>
    %7 = vector.broadcast %6 : vector<1x4xf32> to vector<256x4xf32>
    %8 = arith.addf %5, %7 : vector<256x4xf32>
    %cst_7 = arith.constant 0.000000e+00 : f32
    %9 = vector.broadcast %cst_7 : f32 to vector<256x4xf32>
    %10 = arith.maximumf %8, %9 : vector<256x4xf32>
    %cst_8 = arith.constant 0.000000e+00 : f32
    %11 = vector.broadcast %cst_8 : f32 to vector<18x18x4xf32>
    %c0_9 = arith.constant 0 : index
    %c0_10 = arith.constant 0 : index
    %c0_11 = arith.constant 0 : index
    %12 = vector.load %arg11[%c0_9, %c0_10, %c0_11] : memref<18x18x4xf32, #tpu.memory_space<vmem>>, vector<18x18x4xf32>
    tpu.vector_store %arg11[%c0_9, %c0_10, %c0_11], %11 {strides = array<i32>} : memref<18x18x4xf32, #tpu.memory_space<vmem>>, vector<18x18x4xf32>,
    %13 = vector.shape_cast %10 : vector<256x4xf32> to vector<16x16x4xf32>
    %c1 = arith.constant 1 : index
    %c1_12 = arith.constant 1 : index
    %c0_13 = arith.constant 0 : index
    %14 = vector.load %arg11[%c1, %c1_12, %c0_13] : memref<18x18x4xf32, #tpu.memory_space<vmem>>, vector<16x16x4xf32>
    tpu.vector_store %arg11[%c1, %c1_12, %c0_13], %13 {strides = array<i32>} : memref<18x18x4xf32, #tpu.memory_space<vmem>>, vector<16x16x4xf32>,
    %cst_14 = arith.constant 0.000000e+00 : f32
    %15 = vector.broadcast %cst_14 : f32 to vector<256x4xf32>
    %c0_15 = arith.constant 0 : index
    %c0_16 = arith.constant 0 : index
    %c0_17 = arith.constant 0 : index
    %16 = vector.load %arg11[%c0_15, %c0_16, %c0_17] : memref<18x18x4xf32, #tpu.memory_space<vmem>>, vector<16x16x4xf32>
    %17 = vector.shape_cast %16 : vector<16x16x4xf32> to vector<256x4xf32>
    %18 = arith.truncf %17 : vector<256x4xf32> to vector<256x4xbf16>
    %c0_18 = arith.constant 0 : index
    %c0_19 = arith.constant 0 : index
    %c0_20 = arith.constant 0 : index
    %19 = vector.load %arg4[%c0_18, %c0_19, %c0_20] : memref<9x4x4xbf16, #tpu.memory_space<vmem>>, vector<1x4x4xbf16>
    %20 = vector.shape_cast %19 : vector<1x4x4xbf16> to vector<4x4xbf16>
    %cst_21 = arith.constant dense<0.000000e+00> : vector<256x4xf32>
    %21 = tpu.matmul %18, %20, %cst_21 {dimension_numbers = #tpu.dot_dimension_numbers<[1], [0], [0], [1], [0, 0, 1, 1], [], []>} : vector<256x4xbf16>, vector<4x4xbf16>, vector<256x4xf32> -> vector<256x4xf32>
    %22 = arith.addf %15, %21 : vector<256x4xf32>
    %c0_22 = arith.constant 0 : index
    %c1_23 = arith.constant 1 : index
    %c0_24 = arith.constant 0 : index
    %23 = vector.load %arg11[%c0_22, %c1_23, %c0_24] : memref<18x18x4xf32, #tpu.memory_space<vmem>>, vector<16x16x4xf32>
    %24 = vector.shape_cast %23 : vector<16x16x4xf32> to vector<256x4xf32>
    %25 = arith.truncf %24 : vector<256x4xf32> to vector<256x4xbf16>
    %c1_25 = arith.constant 1 : index
    %c0_26 = arith.constant 0 : index
    %c0_27 = arith.constant 0 : index
    %26 = vector.load %arg4[%c1_25, %c0_26, %c0_27] : memref<9x4x4xbf16, #tpu.memory_space<vmem>>, vector<1x4x4xbf16>
    %27 = vector.shape_cast %26 : vector<1x4x4xbf16> to vector<4x4xbf16>
    %cst_28 = arith.constant dense<0.000000e+00> : vector<256x4xf32>
    %28 = tpu.matmul %25, %27, %cst_28 {dimension_numbers = #tpu.dot_dimension_numbers<[1], [0], [0], [1], [0, 0, 1, 1], [], []>} : vector<256x4xbf16>, vector<4x4xbf16>, vector<256x4xf32> -> vector<256x4xf32>
    %29 = arith.addf %22, %28 : vector<256x4xf32>
    %c0_29 = arith.constant 0 : index
    %c2 = arith.constant 2 : index
    %c0_30 = arith.constant 0 : index
    %30 = vector.load %arg11[%c0_29, %c2, %c0_30] : memref<18x18x4xf32, #tpu.memory_space<vmem>>, vector<16x16x4xf32>
    %31 = vector.shape_cast %30 : vector<16x16x4xf32> to vector<256x4xf32>
    %32 = arith.truncf %31 : vector<256x4xf32> to vector<256x4xbf16>
    %c2_31 = arith.constant 2 : index
    %c0_32 = arith.constant 0 : index
    %c0_33 = arith.constant 0 : index
    %33 = vector.load %arg4[%c2_31, %c0_32, %c0_33] : memref<9x4x4xbf16, #tpu.memory_space<vmem>>, vector<1x4x4xbf16>
    %34 = vector.shape_cast %33 : vector<1x4x4xbf16> to vector<4x4xbf16>
    %cst_34 = arith.constant dense<0.000000e+00> : vector<256x4xf32>
    %35 = tpu.matmul %32, %34, %cst_34 {dimension_numbers = #tpu.dot_dimension_numbers<[1], [0], [0], [1], [0, 0, 1, 1], [], []>} : vector<256x4xbf16>, vector<4x4xbf16>, vector<256x4xf32> -> vector<256x4xf32>
    %36 = arith.addf %29, %35 : vector<256x4xf32>
    %c1_35 = arith.constant 1 : index
    %c0_36 = arith.constant 0 : index
    %c0_37 = arith.constant 0 : index
    %37 = vector.load %arg11[%c1_35, %c0_36, %c0_37] : memref<18x18x4xf32, #tpu.memory_space<vmem>>, vector<16x16x4xf32>
    %38 = vector.shape_cast %37 : vector<16x16x4xf32> to vector<256x4xf32>
    %39 = arith.truncf %38 : vector<256x4xf32> to vector<256x4xbf16>
    %c3 = arith.constant 3 : index
    %c0_38 = arith.constant 0 : index
    %c0_39 = arith.constant 0 : index
    %40 = vector.load %arg4[%c3, %c0_38, %c0_39] : memref<9x4x4xbf16, #tpu.memory_space<vmem>>, vector<1x4x4xbf16>
    %41 = vector.shape_cast %40 : vector<1x4x4xbf16> to vector<4x4xbf16>
    %cst_40 = arith.constant dense<0.000000e+00> : vector<256x4xf32>
    %42 = tpu.matmul %39, %41, %cst_40 {dimension_numbers = #tpu.dot_dimension_numbers<[1], [0], [0], [1], [0, 0, 1, 1], [], []>} : vector<256x4xbf16>, vector<4x4xbf16>, vector<256x4xf32> -> vector<256x4xf32>
    %43 = arith.addf %36, %42 : vector<256x4xf32>
    %c1_41 = arith.constant 1 : index
    %c1_42 = arith.constant 1 : index
    %c0_43 = arith.constant 0 : index
    %44 = vector.load %arg11[%c1_41, %c1_42, %c0_43] : memref<18x18x4xf32, #tpu.memory_space<vmem>>, vector<16x16x4xf32>
    %45 = vector.shape_cast %44 : vector<16x16x4xf32> to vector<256x4xf32>
    %46 = arith.truncf %45 : vector<256x4xf32> to vector<256x4xbf16>
    %c4 = arith.constant 4 : index
    %c0_44 = arith.constant 0 : index
    %c0_45 = arith.constant 0 : index
    %47 = vector.load %arg4[%c4, %c0_44, %c0_45] : memref<9x4x4xbf16, #tpu.memory_space<vmem>>, vector<1x4x4xbf16>
    %48 = vector.shape_cast %47 : vector<1x4x4xbf16> to vector<4x4xbf16>
    %cst_46 = arith.constant dense<0.000000e+00> : vector<256x4xf32>
    %49 = tpu.matmul %46, %48, %cst_46 {dimension_numbers = #tpu.dot_dimension_numbers<[1], [0], [0], [1], [0, 0, 1, 1], [], []>} : vector<256x4xbf16>, vector<4x4xbf16>, vector<256x4xf32> -> vector<256x4xf32>
    %50 = arith.addf %43, %49 : vector<256x4xf32>
    %c1_47 = arith.constant 1 : index
    %c2_48 = arith.constant 2 : index
    %c0_49 = arith.constant 0 : index
    %51 = vector.load %arg11[%c1_47, %c2_48, %c0_49] : memref<18x18x4xf32, #tpu.memory_space<vmem>>, vector<16x16x4xf32>
    %52 = vector.shape_cast %51 : vector<16x16x4xf32> to vector<256x4xf32>
    %53 = arith.truncf %52 : vector<256x4xf32> to vector<256x4xbf16>
    %c5 = arith.constant 5 : index
    %c0_50 = arith.constant 0 : index
    %c0_51 = arith.constant 0 : index
    %54 = vector.load %arg4[%c5, %c0_50, %c0_51] : memref<9x4x4xbf16, #tpu.memory_space<vmem>>, vector<1x4x4xbf16>
    %55 = vector.shape_cast %54 : vector<1x4x4xbf16> to vector<4x4xbf16>
    %cst_52 = arith.constant dense<0.000000e+00> : vector<256x4xf32>
    %56 = tpu.matmul %53, %55, %cst_52 {dimension_numbers = #tpu.dot_dimension_numbers<[1], [0], [0], [1], [0, 0, 1, 1], [], []>} : vector<256x4xbf16>, vector<4x4xbf16>, vector<256x4xf32> -> vector<256x4xf32>
    %57 = arith.addf %50, %56 : vector<256x4xf32>
    %c2_53 = arith.constant 2 : index
    %c0_54 = arith.constant 0 : index
    %c0_55 = arith.constant 0 : index
    %58 = vector.load %arg11[%c2_53, %c0_54, %c0_55] : memref<18x18x4xf32, #tpu.memory_space<vmem>>, vector<16x16x4xf32>
    %59 = vector.shape_cast %58 : vector<16x16x4xf32> to vector<256x4xf32>
    %60 = arith.truncf %59 : vector<256x4xf32> to vector<256x4xbf16>
    %c6 = arith.constant 6 : index
    %c0_56 = arith.constant 0 : index
    %c0_57 = arith.constant 0 : index
    %61 = vector.load %arg4[%c6, %c0_56, %c0_57] : memref<9x4x4xbf16, #tpu.memory_space<vmem>>, vector<1x4x4xbf16>
    %62 = vector.shape_cast %61 : vector<1x4x4xbf16> to vector<4x4xbf16>
    %cst_58 = arith.constant dense<0.000000e+00> : vector<256x4xf32>
    %63 = tpu.matmul %60, %62, %cst_58 {dimension_numbers = #tpu.dot_dimension_numbers<[1], [0], [0], [1], [0, 0, 1, 1], [], []>} : vector<256x4xbf16>, vector<4x4xbf16>, vector<256x4xf32> -> vector<256x4xf32>
    %64 = arith.addf %57, %63 : vector<256x4xf32>
    %c2_59 = arith.constant 2 : index
    %c1_60 = arith.constant 1 : index
    %c0_61 = arith.constant 0 : index
    %65 = vector.load %arg11[%c2_59, %c1_60, %c0_61] : memref<18x18x4xf32, #tpu.memory_space<vmem>>, vector<16x16x4xf32>
    %66 = vector.shape_cast %65 : vector<16x16x4xf32> to vector<256x4xf32>
    %67 = arith.truncf %66 : vector<256x4xf32> to vector<256x4xbf16>
    %c7 = arith.constant 7 : index
    %c0_62 = arith.constant 0 : index
    %c0_63 = arith.constant 0 : index
    %68 = vector.load %arg4[%c7, %c0_62, %c0_63] : memref<9x4x4xbf16, #tpu.memory_space<vmem>>, vector<1x4x4xbf16>
    %69 = vector.shape_cast %68 : vector<1x4x4xbf16> to vector<4x4xbf16>
    %cst_64 = arith.constant dense<0.000000e+00> : vector<256x4xf32>
    %70 = tpu.matmul %67, %69, %cst_64 {dimension_numbers = #tpu.dot_dimension_numbers<[1], [0], [0], [1], [0, 0, 1, 1], [], []>} : vector<256x4xbf16>, vector<4x4xbf16>, vector<256x4xf32> -> vector<256x4xf32>
    %71 = arith.addf %64, %70 : vector<256x4xf32>
    %c2_65 = arith.constant 2 : index
    %c2_66 = arith.constant 2 : index
    %c0_67 = arith.constant 0 : index
    %72 = vector.load %arg11[%c2_65, %c2_66, %c0_67] : memref<18x18x4xf32, #tpu.memory_space<vmem>>, vector<16x16x4xf32>
    %73 = vector.shape_cast %72 : vector<16x16x4xf32> to vector<256x4xf32>
    %74 = arith.truncf %73 : vector<256x4xf32> to vector<256x4xbf16>
    %c8 = arith.constant 8 : index
    %c0_68 = arith.constant 0 : index
    %c0_69 = arith.constant 0 : index
    %75 = vector.load %arg4[%c8, %c0_68, %c0_69] : memref<9x4x4xbf16, #tpu.memory_space<vmem>>, vector<1x4x4xbf16>
    %76 = vector.shape_cast %75 : vector<1x4x4xbf16> to vector<4x4xbf16>
    %cst_70 = arith.constant dense<0.000000e+00> : vector<256x4xf32>
    %77 = tpu.matmul %74, %76, %cst_70 {dimension_numbers = #tpu.dot_dimension_numbers<[1], [0], [0], [1], [0, 0, 1, 1], [], []>} : vector<256x4xbf16>, vector<4x4xbf16>, vector<256x4xf32> -> vector<256x4xf32>
    %78 = arith.addf %71, %77 : vector<256x4xf32>
    %c0_71 = arith.constant 0 : index
    %c0_72 = arith.constant 0 : index
    %79 = vector.load %arg5[%c0_71, %c0_72] : memref<1x4xf32, #tpu.memory_space<vmem>>, vector<1x4xf32>
    %80 = vector.broadcast %79 : vector<1x4xf32> to vector<256x4xf32>
    %81 = arith.addf %78, %80 : vector<256x4xf32>
    %cst_73 = arith.constant 0.000000e+00 : f32
    %82 = vector.broadcast %cst_73 : f32 to vector<256x4xf32>
    %83 = arith.maximumf %81, %82 : vector<256x4xf32>
    %84 = arith.truncf %83 : vector<256x4xf32> to vector<256x4xbf16>
    %c0_74 = arith.constant 0 : index
    %c0_75 = arith.constant 0 : index
    %85 = vector.load %arg6[%c0_74, %c0_75] : memref<4x16xbf16, #tpu.memory_space<vmem>>, vector<4x16xbf16>
    %cst_76 = arith.constant dense<0.000000e+00> : vector<256x16xf32>
    %86 = tpu.matmul %84, %85, %cst_76 {dimension_numbers = #tpu.dot_dimension_numbers<[1], [0], [0], [1], [0, 0, 1, 1], [], []>} : vector<256x4xbf16>, vector<4x16xbf16>, vector<256x16xf32> -> vector<256x16xf32>
    %c0_77 = arith.constant 0 : index
    %c0_78 = arith.constant 0 : index
    %87 = vector.load %arg7[%c0_77, %c0_78] : memref<1x16xf32, #tpu.memory_space<vmem>>, vector<1x16xf32>
    %88 = vector.broadcast %87 : vector<1x16xf32> to vector<256x16xf32>
    %89 = arith.addf %86, %88 : vector<256x16xf32>
    %90 = vector.shape_cast %1 : vector<16x16x4xf32> to vector<256x4xf32>
    %91 = arith.truncf %90 : vector<256x4xf32> to vector<256x4xbf16>
    %c0_79 = arith.constant 0 : index
    %c0_80 = arith.constant 0 : index
    %92 = vector.load %arg8[%c0_79, %c0_80] : memref<4x16xbf16, #tpu.memory_space<vmem>>, vector<4x16xbf16>
    %cst_81 = arith.constant dense<0.000000e+00> : vector<256x16xf32>
    %93 = tpu.matmul %91, %92, %cst_81 {dimension_numbers = #tpu.dot_dimension_numbers<[1], [0], [0], [1], [0, 0, 1, 1], [], []>} : vector<256x4xbf16>, vector<4x16xbf16>, vector<256x16xf32> -> vector<256x16xf32>
    %c0_82 = arith.constant 0 : index
    %c0_83 = arith.constant 0 : index
    %94 = vector.load %arg9[%c0_82, %c0_83] : memref<1x16xf32, #tpu.memory_space<vmem>>, vector<1x16xf32>
    %95 = vector.broadcast %94 : vector<1x16xf32> to vector<256x16xf32>
    %96 = arith.addf %93, %95 : vector<256x16xf32>
    %97 = arith.addf %89, %96 : vector<256x16xf32>
    %cst_84 = arith.constant 0.000000e+00 : f32
    %98 = vector.broadcast %cst_84 : f32 to vector<256x16xf32>
    %99 = arith.maximumf %97, %98 : vector<256x16xf32>
    %c0_85 = arith.constant 0 : index
    %c0_86 = arith.constant 0 : index
    %c0_87 = arith.constant 0 : index
    %100 = vector.load %arg10[%c0_85, %c0_86, %c0_87] : memref<1x256x16xf32, #tpu.memory_space<vmem>>, vector<1x256x16xf32>
    %101 = vector.shape_cast %100 : vector<1x256x16xf32> to vector<256x16xf32>
    %102 = vector.shape_cast %99 : vector<256x16xf32> to vector<1x256x16xf32>
    tpu.vector_store %arg10[%c0_85, %c0_86, %c0_87], %102 {strides = array<i32>} : memref<1x256x16xf32, #tpu.memory_space<vmem>>, vector<1x256x16xf32>,
    return
  }
  func.func @transform_0(%arg0: i32) -> (i32, i32, i32, i32) {
    %c0_i32 = arith.constant 0 : i32
    %c0_i32_0 = arith.constant 0 : i32
    %c0_i32_1 = arith.constant 0 : i32
    %c0_i32_2 = arith.constant 0 : i32
    return %arg0, %c0_i32, %c0_i32_0, %c0_i32_1 : i32, i32, i32, i32
  }
  func.func @transform_1(%arg0: i32) -> (i32, i32) {
    %c0_i32 = arith.constant 0 : i32
    %c0_i32_0 = arith.constant 0 : i32
    %c0_i32_1 = arith.constant 0 : i32
    return %c0_i32, %c0_i32_0 : i32, i32
  }
  func.func @transform_2(%arg0: i32) -> (i32, i32) {
    %c0_i32 = arith.constant 0 : i32
    %c0_i32_0 = arith.constant 0 : i32
    %c0_i32_1 = arith.constant 0 : i32
    return %c0_i32, %c0_i32_0 : i32, i32
  }
  func.func @transform_3(%arg0: i32) -> (i32, i32, i32) {
    %c0_i32 = arith.constant 0 : i32
    %c0_i32_0 = arith.constant 0 : i32
    %c0_i32_1 = arith.constant 0 : i32
    %c0_i32_2 = arith.constant 0 : i32
    return %c0_i32, %c0_i32_0, %c0_i32_1 : i32, i32, i32
  }
  func.func @transform_4(%arg0: i32) -> (i32, i32) {
    %c0_i32 = arith.constant 0 : i32
    %c0_i32_0 = arith.constant 0 : i32
    %c0_i32_1 = arith.constant 0 : i32
    return %c0_i32, %c0_i32_0 : i32, i32
  }
  func.func @transform_5(%arg0: i32) -> (i32, i32) {
    %c0_i32 = arith.constant 0 : i32
    %c0_i32_0 = arith.constant 0 : i32
    %c0_i32_1 = arith.constant 0 : i32
    return %c0_i32, %c0_i32_0 : i32, i32
  }
  func.func @transform_6(%arg0: i32) -> (i32, i32) {
    %c0_i32 = arith.constant 0 : i32
    %c0_i32_0 = arith.constant 0 : i32
    %c0_i32_1 = arith.constant 0 : i32
    return %c0_i32, %c0_i32_0 : i32, i32
  }
  func.func @transform_7(%arg0: i32) -> (i32, i32) {
    %c0_i32 = arith.constant 0 : i32
    %c0_i32_0 = arith.constant 0 : i32
    %c0_i32_1 = arith.constant 0 : i32
    return %c0_i32, %c0_i32_0 : i32, i32
  }
  func.func @transform_8(%arg0: i32) -> (i32, i32) {
    %c0_i32 = arith.constant 0 : i32
    %c0_i32_0 = arith.constant 0 : i32
    %c0_i32_1 = arith.constant 0 : i32
    return %c0_i32, %c0_i32_0 : i32, i32
  }
  func.func @transform_9(%arg0: i32) -> (i32, i32, i32) {
    %c0_i32 = arith.constant 0 : i32
    %c0_i32_0 = arith.constant 0 : i32
    %c0_i32_1 = arith.constant 0 : i32
    return %arg0, %c0_i32, %c0_i32_0 : i32, i32, i32
  }
}

</mosaic_0001>

<llo_original>
// kernel: tpu_custom_call.1
$region0: #{tpu_custom_call.1}
  #allocation0 [shape = 'u32[]', space=smem, size = 0x4, offset = 0x4, fixed_abs, tag = 'smem constant byte address 0x4 - core index']
  #allocation1 [shape = 'u32[72,128]{1,0:T(1,128)}', space=vmem, size = 0x9000, scoped, tag = 'internal scratch']
  #allocation2 [shape = 'f32[18,18,4]{2,1,0:T(8,128)}', space=vmem, size = 0x36000, scoped, tag = 'scratch operand']
  %s0 = inlined_call_operand.vmem [shape: f32[2,16,16,4], index: 0, kind: input, shape index: {}]
  %s1 = inlined_call_operand.vmem [shape: bf16[4,4], index: 1, kind: input, shape index: {}]
  %s2 = inlined_call_operand.vmem [shape: f32[1,4], index: 2, kind: input, shape index: {}]
  %s3 = inlined_call_operand.vmem [shape: bf16[9,4,4], index: 3, kind: input, shape index: {}]
  %s4 = inlined_call_operand.vmem [shape: f32[1,4], index: 4, kind: input, shape index: {}]
  %s5 = inlined_call_operand.vmem [shape: bf16[4,16], index: 5, kind: input, shape index: {}]
  %s6 = inlined_call_operand.vmem [shape: f32[1,16], index: 6, kind: input, shape index: {}]
  %s7 = inlined_call_operand.vmem [shape: bf16[4,16], index: 7, kind: input, shape index: {}]
  %s8 = inlined_call_operand.vmem [shape: f32[1,16], index: 8, kind: input, shape index: {}]
  %s9 = inlined_call_operand.vmem [shape: f32[2,256,16], index: 9, kind: output, shape index: {}]
  %s10 = sld [smem:[#allocation0]]
  $region69: #{tpu_custom_call.1} parent=0
    _
  %s12 = ssub.s32 1, %s10
  %s13 = scalar_select 0, %s12, %s10
  loop: start=0, step=1, limit=4
  $region2: #{tpu_custom_call.1} parent=0 // loop_pre_header
    _
  $region3: #{tpu_custom_call.1} parent=0 // loop_header
    %s15 = sphi 0, %s19
    %p16 = scmp.ge.s32.totalorder %s15, 4
    %s25 = sphi 0, %s27
    %s28 = sphi 0, %s25
    %s29 = sphi 0, %s28
    %s45 = sphi 0, %s29
    %s49 = sphi 0, %s49
    %s51 = sphi 0, %s49
    %s52 = sphi 0, %s51
    %s66 = sphi 0, %s52
    %s70 = sphi 0, %s70
    %s72 = sphi 0, %s70
    %s73 = sphi 0, %s72
    %s87 = sphi 0, %s73
    %s91 = sphi 0, %s91
    %s93 = sphi 0, %s91
    %s94 = sphi 0, %s93
    %s108 = sphi 0, %s94
    %s112 = sphi 0, %s112
    %s114 = sphi 0, %s112
    %s115 = sphi 0, %s114
    %s129 = sphi 0, %s115
    %s133 = sphi 0, %s133
    %s135 = sphi 0, %s133
    %s136 = sphi 0, %s135
    %s150 = sphi 0, %s136
    %s154 = sphi 0, %s154
    %s156 = sphi 0, %s154
    %s157 = sphi 0, %s156
    %s171 = sphi 0, %s157
    %s175 = sphi 0, %s175
    %s177 = sphi 0, %s175
    %s178 = sphi 0, %s177
    %s192 = sphi 0, %s178
    %s196 = sphi 0, %s196
    %s198 = sphi 0, %s196
    %s199 = sphi 0, %s198
    %s213 = sphi 0, %s199
    %s219 = sphi 0, %s221
    %s222 = sphi 0, %s219
    %s223 = sphi 0, %s222
    %s239 = sphi 0, %s223
  $region4: #{tpu_custom_call.1} parent=0 // loop_header_branch
    %18 = sbr.rel (%p16) target = $region8
  $region5: #{tpu_custom_call.1} parent=0 // loop_body
    %s20 = ssub.s32 %s15, 1
    %s21 = ssub.s32 %s15, 2
    %s22 = sadd.s32 %s15, 1
    %s23 = ssub.s32 %s15, %s22
    %p24 = scmp.eq.s32.totalorder %s23, 0
    %s26 = sadd.s32 %s25, 1
    %s27 = scalar_select %p24, %s25, %s26
    %p30 = pneg %p24
    %p31 = scmp.eq.s32.totalorder %s15, 1
    %p32 = por %p30, %p31
    %p33 = scmp.ne.s32.totalorder %s25, %s28
    %p34 = scmp.eq.s32.totalorder %s15, 0
    %p35 = por %p33, %p34
    %p36 = scmp.ne.s32.totalorder %s25, %s28
    %p37 = scmp.eq.s32.totalorder %s20, 1
    %p38 = por %p36, %p37
    %p39 = scmp.ne.s32.totalorder %s28, %s29
    %p40 = scmp.eq.s32.totalorder %s20, 0
    %p41 = por %p39, %p40
    %p42 = scmp.ne.s32.totalorder %s28, %s29
    %p43 = scmp.eq.s32.totalorder %s21, 1
    %p44 = por %p42, %p43
    %p46 = scmp.ne.s32.totalorder %s29, %s45
    %p47 = scmp.eq.s32.totalorder %s21, 0
    %p48 = por %p46, %p47
    %s50 = sadd.s32 %s49, 1
    %p53 = scmp.eq.s32.totalorder %s15, 1
    %p54 = scmp.ne.s32.totalorder %s49, %s51
    %p55 = scmp.eq.s32.totalorder %s15, 0
    %p56 = por %p54, %p55
    %p57 = scmp.ne.s32.totalorder %s49, %s51
    %p58 = scmp.eq.s32.totalorder %s20, 1
    %p59 = por %p57, %p58
    %p60 = scmp.ne.s32.totalorder %s51, %s52
    %p61 = scmp.eq.s32.totalorder %s20, 0
    %p62 = por %p60, %p61
    %p63 = scmp.ne.s32.totalorder %s51, %s52
    %p64 = scmp.eq.s32.totalorder %s21, 1
    %p65 = por %p63, %p64
    %p67 = scmp.ne.s32.totalorder %s52, %s66
    %p68 = scmp.eq.s32.totalorder %s21, 0
    %p69 = por %p67, %p68
    %s71 = sadd.s32 %s70, 1
    %p74 = scmp.eq.s32.totalorder %s15, 1
    %p75 = scmp.ne.s32.totalorder %s70, %s72
    %p76 = scmp.eq.s32.totalorder %s15, 0
    %p77 = por %p75, %p76
    %p78 = scmp.ne.s32.totalorder %s70, %s72
    %p79 = scmp.eq.s32.totalorder %s20, 1
    %p80 = por %p78, %p79
    %p81 = scmp.ne.s32.totalorder %s72, %s73
    %p82 = scmp.eq.s32.totalorder %s20, 0
    %p83 = por %p81, %p82
    %p84 = scmp.ne.s32.totalorder %s72, %s73
    %p85 = scmp.eq.s32.totalorder %s21, 1
    %p86 = por %p84, %p85
    %p88 = scmp.ne.s32.totalorder %s73, %s87
    %p89 = scmp.eq.s32.totalorder %s21, 0
    %p90 = por %p88, %p89
    %s92 = sadd.s32 %s91, 1
    %p95 = scmp.eq.s32.totalorder %s15, 1
    %p96 = scmp.ne.s32.totalorder %s91, %s93
    %p97 = scmp.eq.s32.totalorder %s15, 0
    %p98 = por %p96, %p97
    %p99 = scmp.ne.s32.totalorder %s91, %s93
    %p100 = scmp.eq.s32.totalorder %s20, 1
    %p101 = por %p99, %p100
    %p102 = scmp.ne.s32.totalorder %s93, %s94
    %p103 = scmp.eq.s32.totalorder %s20, 0
    %p104 = por %p102, %p103
    %p105 = scmp.ne.s32.totalorder %s93, %s94
    %p106 = scmp.eq.s32.totalorder %s21, 1
    %p107 = por %p105, %p106
    %p109 = scmp.ne.s32.totalorder %s94, %s108
    %p110 = scmp.eq.s32.totalorder %s21, 0
    %p111 = por %p109, %p110
    %s113 = sadd.s32 %s112, 1
    %p116 = scmp.eq.s32.totalorder %s15, 1
    %p117 = scmp.ne.s32.totalorder %s112, %s114
    %p118 = scmp.eq.s32.totalorder %s15, 0
    %p119 = por %p117, %p118
    %p120 = scmp.ne.s32.totalorder %s112, %s114
    %p121 = scmp.eq.s32.totalorder %s20, 1
    %p122 = por %p120, %p121
    %p123 = scmp.ne.s32.totalorder %s114, %s115
    %p124 = scmp.eq.s32.totalorder %s20, 0
    %p125 = por %p123, %p124
    %p126 = scmp.ne.s32.totalorder %s114, %s115
    %p127 = scmp.eq.s32.totalorder %s21, 1
    %p128 = por %p126, %p127
    %p130 = scmp.ne.s32.totalorder %s115, %s129
    %p131 = scmp.eq.s32.totalorder %s21, 0
    %p132 = por %p130, %p131
    %s134 = sadd.s32 %s133, 1
    %p137 = scmp.eq.s32.totalorder %s15, 1
    %p138 = scmp.ne.s32.totalorder %s133, %s135
    %p139 = scmp.eq.s32.totalorder %s15, 0
    %p140 = por %p138, %p139
    %p141 = scmp.ne.s32.totalorder %s133, %s135
    %p142 = scmp.eq.s32.totalorder %s20, 1
    %p143 = por %p141, %p142
    %p144 = scmp.ne.s32.totalorder %s135, %s136
    %p145 = scmp.eq.s32.totalorder %s20, 0
    %p146 = por %p144, %p145
    %p147 = scmp.ne.s32.totalorder %s135, %s136
    %p148 = scmp.eq.s32.totalorder %s21, 1
    %p149 = por %p147, %p148
    %p151 = scmp.ne.s32.totalorder %s136, %s150
    %p152 = scmp.eq.s32.totalorder %s21, 0
    %p153 = por %p151, %p152
    %s155 = sadd.s32 %s154, 1
    %p158 = scmp.eq.s32.totalorder %s15, 1
    %p159 = scmp.ne.s32.totalorder %s154, %s156
    %p160 = scmp.eq.s32.totalorder %s15, 0
    %p161 = por %p159, %p160
    %p162 = scmp.ne.s32.totalorder %s154, %s156
    %p163 = scmp.eq.s32.totalorder %s20, 1
    %p164 = por %p162, %p163
    %p165 = scmp.ne.s32.totalorder %s156, %s157
    %p166 = scmp.eq.s32.totalorder %s20, 0
    %p167 = por %p165, %p166
    %p168 = scmp.ne.s32.totalorder %s156, %s157
    %p169 = scmp.eq.s32.totalorder %s21, 1
    %p170 = por %p168, %p169
    %p172 = scmp.ne.s32.totalorder %s157, %s171
    %p173 = scmp.eq.s32.totalorder %s21, 0
    %p174 = por %p172, %p173
    %s176 = sadd.s32 %s175, 1
    %p179 = scmp.eq.s32.totalorder %s15, 1
    %p180 = scmp.ne.s32.totalorder %s175, %s177
    %p181 = scmp.eq.s32.totalorder %s15, 0
    %p182 = por %p180, %p181
    %p183 = scmp.ne.s32.totalorder %s175, %s177
    %p184 = scmp.eq.s32.totalorder %s20, 1
    %p185 = por %p183, %p184
    %p186 = scmp.ne.s32.totalorder %s177, %s178
    %p187 = scmp.eq.s32.totalorder %s20, 0
    %p188 = por %p186, %p187
    %p189 = scmp.ne.s32.totalorder %s177, %s178
    %p190 = scmp.eq.s32.totalorder %s21, 1
    %p191 = por %p189, %p190
    %p193 = scmp.ne.s32.totalorder %s178, %s192
    %p194 = scmp.eq.s32.totalorder %s21, 0
    %p195 = por %p193, %p194
    %s197 = sadd.s32 %s196, 1
    %p200 = scmp.eq.s32.totalorder %s15, 1
    %p201 = scmp.ne.s32.totalorder %s196, %s198
    %p202 = scmp.eq.s32.totalorder %s15, 0
    %p203 = por %p201, %p202
    %p204 = scmp.ne.s32.totalorder %s196, %s198
    %p205 = scmp.eq.s32.totalorder %s20, 1
    %p206 = por %p204, %p205
    %p207 = scmp.ne.s32.totalorder %s198, %s199
    %p208 = scmp.eq.s32.totalorder %s20, 0
    %p209 = por %p207, %p208
    %p210 = scmp.ne.s32.totalorder %s198, %s199
    %p211 = scmp.eq.s32.totalorder %s21, 1
    %p212 = por %p210, %p211
    %p214 = scmp.ne.s32.totalorder %s199, %s213
    %p215 = scmp.eq.s32.totalorder %s21, 0
    %p216 = por %p214, %p215
    %s217 = ssub.s32 %s15, %s22
    %p218 = scmp.eq.s32.totalorder %s217, 0
    %s220 = sadd.s32 %s219, 1
    %s221 = scalar_select %p218, %s219, %s220
    %p224 = pneg %p218
    %p225 = scmp.eq.s32.totalorder %s15, 1
    %p226 = por %p224, %p225
    %p227 = scmp.ne.s32.totalorder %s219, %s222
    %p228 = scmp.eq.s32.totalorder %s15, 0
    %p229 = por %p227, %p228
    %p230 = scmp.ne.s32.totalorder %s219, %s222
    %p231 = scmp.eq.s32.totalorder %s20, 1
    %p232 = por %p230, %p231
    %p233 = scmp.ne.s32.totalorder %s222, %s223
    %p234 = scmp.eq.s32.totalorder %s20, 0
    %p235 = por %p233, %p234
    %p236 = scmp.ne.s32.totalorder %s222, %s223
    %p237 = scmp.eq.s32.totalorder %s21, 1
    %p238 = por %p236, %p237
    %p240 = scmp.ne.s32.totalorder %s223, %s239
    %p241 = scmp.eq.s32.totalorder %s21, 0
    %p242 = por %p240, %p241
    %p243 = scmp.le.s32.totalorder 1, %s15
    %p244 = scmp.lt.s32.totalorder %s15, 3
    %p245 = pnand %p243, %p244
    %p246 = pneg %p245
    // Predicated region
    $region9: #{tpu_custom_call.1} parent=5 // pred_check
      _
    $region10: #{tpu_custom_call.1} parent=5 // pred_check_branch
      %248 = sbr.rel (%p245) target = $region12
    $region11: #{tpu_custom_call.1} parent=5 // pred_region
      %s249 = ssub.s32 %s15, 1
      // Predicated region
      $region13: #{tpu_custom_call.1} parent=11 // pred_check
        %p250 = pneg %p62
      $region14: #{tpu_custom_call.1} parent=11 // pred_check_branch
        %252 = sbr.rel (%p250) target = $region16
      $region15: #{tpu_custom_call.1} parent=11 // pred_region
        _
      $region16: #{tpu_custom_call.1} parent=11 // pred_fallthru
        _
      // Predicated region
      $region17: #{tpu_custom_call.1} parent=11 // pred_check
        %p253 = pneg %p83
      $region18: #{tpu_custom_call.1} parent=11 // pred_check_branch
        %255 = sbr.rel (%p253) target = $region20
      $region19: #{tpu_custom_call.1} parent=11 // pred_region
        _
      $region20: #{tpu_custom_call.1} parent=11 // pred_fallthru
        _
      // Predicated region
      $region21: #{tpu_custom_call.1} parent=11 // pred_check
        %p256 = pneg %p104
      $region22: #{tpu_custom_call.1} parent=11 // pred_check_branch
        %258 = sbr.rel (%p256) target = $region24
      $region23: #{tpu_custom_call.1} parent=11 // pred_region
        _
      $region24: #{tpu_custom_call.1} parent=11 // pred_fallthru
        _
      // Predicated region
      $region25: #{tpu_custom_call.1} parent=11 // pred_check
        %p259 = pneg %p125
      $region26: #{tpu_custom_call.1} parent=11 // pred_check_branch
        %261 = sbr.rel (%p259) target = $region28
      $region27: #{tpu_custom_call.1} parent=11 // pred_region
        _
      $region28: #{tpu_custom_call.1} parent=11 // pred_fallthru
        _
      // Predicated region
      $region29: #{tpu_custom_call.1} parent=11 // pred_check
        %p262 = pneg %p146
      $region30: #{tpu_custom_call.1} parent=11 // pred_check_branch
        %264 = sbr.rel (%p262) target = $region32
      $region31: #{tpu_custom_call.1} parent=11 // pred_region
        _
      $region32: #{tpu_custom_call.1} parent=11 // pred_fallthru
        _
      // Predicated region
      $region33: #{tpu_custom_call.1} parent=11 // pred_check
        %p265 = pneg %p167
      $region34: #{tpu_custom_call.1} parent=11 // pred_check_branch
        %267 = sbr.rel (%p265) target = $region36
      $region35: #{tpu_custom_call.1} parent=11 // pred_region
        _
      $region36: #{tpu_custom_call.1} parent=11 // pred_fallthru
        _
      // Predicated region
      $region37: #{tpu_custom_call.1} parent=11 // pred_check
        %p268 = pneg %p188
      $region38: #{tpu_custom_call.1} parent=11 // pred_check_branch
        %270 = sbr.rel (%p268) target = $region40
      $region39: #{tpu_custom_call.1} parent=11 // pred_region
        _
      $region40: #{tpu_custom_call.1} parent=11 // pred_fallthru
        _
      // Predicated region
      $region41: #{tpu_custom_call.1} parent=11 // pred_check
        %p271 = pneg %p209
      $region42: #{tpu_custom_call.1} parent=11 // pred_check_branch
        %273 = sbr.rel (%p271) target = $region44
      $region43: #{tpu_custom_call.1} parent=11 // pred_region
        _
      $region44: #{tpu_custom_call.1} parent=11 // pred_fallthru
        _
    $region12: #{tpu_custom_call.1} parent=5 // pred_fallthru
      _
    %p274 = scmp.lt.s32.totalorder %s15, 2
    // Predicated region
    $region45: #{tpu_custom_call.1} parent=5 // pred_check
      %p275 = pneg %p274
    $region46: #{tpu_custom_call.1} parent=5 // pred_check_branch
      %277 = sbr.rel (%p275) target = $region48
    $region47: #{tpu_custom_call.1} parent=5 // pred_region
      // Predicated region
      $region49: #{tpu_custom_call.1} parent=47 // pred_check
        %p278 = pneg %p35
      $region50: #{tpu_custom_call.1} parent=47 // pred_check_branch
        %280 = sbr.rel (%p278) target = $region52
      $region51: #{tpu_custom_call.1} parent=47 // pred_region
        %p281 = scmp.lt.s32.totalorder %s15, 1
        %s282 = scalar_select %p281, %s15, 1
        %s283 = smul.addr %s282, 32
        %s284 = smul.addr %s283, 8
        %s285 = scalar_lea.vmem %s0, %s284
      $region52: #{tpu_custom_call.1} parent=47 // pred_fallthru
        _
    $region48: #{tpu_custom_call.1} parent=5 // pred_fallthru
      _
    %p286 = scmp.le.s32.totalorder 1, %s15
    %p287 = scmp.lt.s32.totalorder %s15, 3
    %p288 = pnand %p286, %p287
    %p289 = pneg %p288
    // Predicated region
    $region53: #{tpu_custom_call.1} parent=5 // pred_check
      _
    $region54: #{tpu_custom_call.1} parent=5 // pred_check_branch
      %291 = sbr.rel (%p288) target = $region56
    $region55: #{tpu_custom_call.1} parent=5 // pred_region
      %s292 = ssub.s32 %s15, 1
      %p293 = scmp.lt.s32.totalorder %s20, 1
      %s294 = scalar_select %p293, %s20, 1
      %s295 = smul.addr %s294, 32
      %s296 = smul.addr %s295, 8
      %s297 = scalar_lea.vmem %s0, %s296
      %p298 = pneg %p41
      %p299 = pneg %p38
      %p300 = pneg %p62
      %p301 = pneg %p59
      %p302 = pneg %p83
      %p303 = pneg %p80
      %p304 = pneg %p104
      %p305 = pneg %p101
      %p306 = pneg %p125
      %p307 = pneg %p122
      %p308 = pneg %p146
      %p309 = pneg %p143
      %p310 = pneg %p167
      %p311 = pneg %p164
      %p312 = pneg %p188
      %p313 = pneg %p185
      %p314 = pneg %p209
      %p315 = pneg %p206
      %p316 = pneg %p235
      %p317 = pneg %p232
      %p318 = scmp.lt.s32.totalorder %s20, 1
      %s319 = scalar_select %p318, %s20, 1
      %s320 = smul.addr %s319, 32
      %s321 = smul.addr %s320, 8
      %s322 = scalar_lea.vmem %s9, %s321
      %p323 = scmp.lt.s32.totalorder %s20, 1
      %s324 = scalar_select %p323, %s20, 1
      %s325 = smul.addr %s324, 32
      %s326 = smul.addr %s325, 8
      %s327 = scalar_lea.vmem %s0, %s326
      %p328 = scmp.lt.s32.totalorder %s20, 1
      %s329 = scalar_select %p328, %s20, 1
      %s330 = smul.addr %s329, 32
      %s331 = smul.addr %s330, 8
      %s332 = scalar_lea.vmem %s9, %s331
      %v334 = vld [vmem:[%s327] sm:$0xff]
      %v335 = vld [vmem:[%s327 + $0x8] sm:$0xff]
      %v336 = vld [vmem:[%s327 + $0x10] sm:$0xff]
      %v337 = vld [vmem:[%s327 + $0x18] sm:$0xff]
      %v338 = vld [vmem:[%s327 + $0x20] sm:$0xff]
      %v339 = vld [vmem:[%s327 + $0x28] sm:$0xff]
      %v340 = vld [vmem:[%s327 + $0x30] sm:$0xff]
      %v341 = vld [vmem:[%s327 + $0x38] sm:$0xff]
      %v342 = vld [vmem:[%s327 + $0x40] sm:$0xff]
      %v343 = vld [vmem:[%s327 + $0x48] sm:$0xff]
      %v344 = vld [vmem:[%s327 + $0x50] sm:$0xff]
      %v345 = vld [vmem:[%s327 + $0x58] sm:$0xff]
      %v346 = vld [vmem:[%s327 + $0x60] sm:$0xff]
      %v347 = vld [vmem:[%s327 + $0x68] sm:$0xff]
      %v348 = vld [vmem:[%s327 + $0x70] sm:$0xff]
      %v349 = vld [vmem:[%s327 + $0x78] sm:$0xff]
      %v350 = vld [vmem:[%s327 + $0x80] sm:$0xff]
      %v351 = vld [vmem:[%s327 + $0x88] sm:$0xff]
      %v352 = vld [vmem:[%s327 + $0x90] sm:$0xff]
      %v353 = vld [vmem:[%s327 + $0x98] sm:$0xff]
      %v354 = vld [vmem:[%s327 + $0xa0] sm:$0xff]
      %v355 = vld [vmem:[%s327 + $0xa8] sm:$0xff]
      %v356 = vld [vmem:[%s327 + $0xb0] sm:$0xff]
      %v357 = vld [vmem:[%s327 + $0xb8] sm:$0xff]
      %v358 = vld [vmem:[%s327 + $0xc0] sm:$0xff]
      %v359 = vld [vmem:[%s327 + $0xc8] sm:$0xff]
      %v360 = vld [vmem:[%s327 + $0xd0] sm:$0xff]
      %v361 = vld [vmem:[%s327 + $0xd8] sm:$0xff]
      %v362 = vld [vmem:[%s327 + $0xe0] sm:$0xff]
      %v363 = vld [vmem:[%s327 + $0xe8] sm:$0xff]
      %v364 = vld [vmem:[%s327 + $0xf0] sm:$0xff]
      %v365 = vld [vmem:[%s327 + $0xf8] sm:$0xff]
      %v366 = vpack.c.bf16 %v335, %v334
      %v367 = vpack.c.bf16 %v337, %v336
      %v368 = vpack.c.bf16 %v339, %v338
      %v369 = vpack.c.bf16 %v341, %v340
      %v370 = vpack.c.bf16 %v343, %v342
      %v371 = vpack.c.bf16 %v345, %v344
      %v372 = vpack.c.bf16 %v347, %v346
      %v373 = vpack.c.bf16 %v349, %v348
      %v374 = vpack.c.bf16 %v351, %v350
      %v375 = vpack.c.bf16 %v353, %v352
      %v376 = vpack.c.bf16 %v355, %v354
      %v377 = vpack.c.bf16 %v357, %v356
      %v378 = vpack.c.bf16 %v359, %v358
      %v379 = vpack.c.bf16 %v361, %v360
      %v380 = vpack.c.bf16 %v363, %v362
      %v381 = vpack.c.bf16 %v365, %v364
      %v382 = vld [vmem:[%s1] sm:$0x3]
      %v383 = vld [vmem:[%s2] sm:$0x1]
      %v385 = vperm.slane %v383, 0
      %vm387 = vcmask 31744
      %v389 = vsel %vm387, %v366, 0
      %v392 = vsel %vm387, %v367, 0
      %v395 = vsel %vm387, %v368, 0
      %v398 = vsel %vm387, %v369, 0
      %v401 = vsel %vm387, %v370, 0
      %v404 = vsel %vm387, %v371, 0
      %v407 = vsel %vm387, %v372, 0
      %v410 = vsel %vm387, %v373, 0
      %v413 = vsel %vm387, %v374, 0
      %v416 = vsel %vm387, %v375, 0
      %v419 = vsel %vm387, %v376, 0
      %v422 = vsel %vm387, %v377, 0
      %v425 = vsel %vm387, %v378, 0
      %v428 = vsel %vm387, %v379, 0
      %v431 = vsel %vm387, %v380, 0
      %v434 = vsel %vm387, %v381, 0
      %vm436 = vcmask 1041408
      %v438 = vsel %vm436, %v382, 0
      %440 = vmatpush.bf16.msra.mxu0 0
      %441 = vmatpush.bf16.msra.mxu0 0
      %442 = vmatpush.bf16.msra.mxu0 0
      %443 = vmatpush.bf16.msra.mxu0 0
      %444 = vmatpush.bf16.msra.mxu0 0
      %445 = vmatpush.bf16.msra.mxu0 0
      %446 = vmatpush.bf16.msra.mxu0 0
      %447 = vmatpush.bf16.msra.mxu0 %v438
      %448 = vmatmul.bf16.gmra.mxu0 %v389
      %v449 = vpop.f32.mrf.mxu0
      %v450 = vadd.f32 %v385, %v449
      %v451 = vpop.f32.mrf.mxu0
      %v452 = vadd.f32 %v385, %v451
      %453 = vmatmul.bf16.gmra.mxu0 %v392
      %v454 = vpop.f32.mrf.mxu0
      %v455 = vadd.f32 %v385, %v454
      %v456 = vpop.f32.mrf.mxu0
      %v457 = vadd.f32 %v385, %v456
      %458 = vmatmul.bf16.gmra.mxu0 %v395
      %v459 = vpop.f32.mrf.mxu0
      %v460 = vadd.f32 %v385, %v459
      %v461 = vpop.f32.mrf.mxu0
      %v462 = vadd.f32 %v385, %v461
      %463 = vmatmul.bf16.gmra.mxu0 %v398
      %v464 = vpop.f32.mrf.mxu0
      %v465 = vadd.f32 %v385, %v464
      %v466 = vpop.f32.mrf.mxu0
      %v467 = vadd.f32 %v385, %v466
      %468 = vmatmul.bf16.gmra.mxu0 %v401
      %v469 = vpop.f32.mrf.mxu0
      %v470 = vadd.f32 %v385, %v469
      %v471 = vpop.f32.mrf.mxu0
      %v472 = vadd.f32 %v385, %v471
      %473 = vmatmul.bf16.gmra.mxu0 %v404
      %v474 = vpop.f32.mrf.mxu0
      %v475 = vadd.f32 %v385, %v474
      %v476 = vpop.f32.mrf.mxu0
      %v477 = vadd.f32 %v385, %v476
      %478 = vmatmul.bf16.gmra.mxu0 %v407
      %v479 = vpop.f32.mrf.mxu0
      %v480 = vadd.f32 %v385, %v479
      %v481 = vpop.f32.mrf.mxu0
      %v482 = vadd.f32 %v385, %v481
      %483 = vmatmul.bf16.gmra.mxu0 %v410
      %v484 = vpop.f32.mrf.mxu0
      %v485 = vadd.f32 %v385, %v484
      %v486 = vpop.f32.mrf.mxu0
      %v487 = vadd.f32 %v385, %v486
      %488 = vmatmul.bf16.gmra.mxu0 %v413
      %v489 = vpop.f32.mrf.mxu0
      %v490 = vadd.f32 %v385, %v489
      %v491 = vpop.f32.mrf.mxu0
      %v492 = vadd.f32 %v385, %v491
      %493 = vmatmul.bf16.gmra.mxu0 %v416
      %v494 = vpop.f32.mrf.mxu0
      %v495 = vadd.f32 %v385, %v494
      %v496 = vpop.f32.mrf.mxu0
      %v497 = vadd.f32 %v385, %v496
      %498 = vmatmul.bf16.gmra.mxu0 %v419
      %v499 = vpop.f32.mrf.mxu0
      %v500 = vadd.f32 %v385, %v499
      %v501 = vpop.f32.mrf.mxu0
      %v502 = vadd.f32 %v385, %v501
      %503 = vmatmul.bf16.gmra.mxu0 %v422
      %v504 = vpop.f32.mrf.mxu0
      %v505 = vadd.f32 %v385, %v504
      %v506 = vpop.f32.mrf.mxu0
      %v507 = vadd.f32 %v385, %v506
      %508 = vmatmul.bf16.gmra.mxu0 %v425
      %v509 = vpop.f32.mrf.mxu0
      %v510 = vadd.f32 %v385, %v509
      %v511 = vpop.f32.mrf.mxu0
      %v512 = vadd.f32 %v385, %v511
      %513 = vmatmul.bf16.gmra.mxu0 %v428
      %v514 = vpop.f32.mrf.mxu0
      %v515 = vadd.f32 %v385, %v514
      %v516 = vpop.f32.mrf.mxu0
      %v517 = vadd.f32 %v385, %v516
      %518 = vmatmul.bf16.gmra.mxu0 %v431
      %v519 = vpop.f32.mrf.mxu0
      %v520 = vadd.f32 %v385, %v519
      %v521 = vpop.f32.mrf.mxu0
      %v522 = vadd.f32 %v385, %v521
      %523 = vmatmul.bf16.gmra.mxu0 %v434
      %v524 = vpop.f32.mrf.mxu0
      %v525 = vadd.f32 %v385, %v524
      %v526 = vpop.f32.mrf.mxu0
      %v527 = vadd.f32 %v385, %v526
      %528 = vdwg.mxu0
      %v529 = vmax.f32 %v450, 0.0
      %v530 = vmax.f32 %v452, 0.0
      %v531 = vmax.f32 %v455, 0.0
      %v532 = vmax.f32 %v457, 0.0
      %v533 = vmax.f32 %v460, 0.0
      %v534 = vmax.f32 %v462, 0.0
      %v535 = vmax.f32 %v465, 0.0
      %v536 = vmax.f32 %v467, 0.0
      %v537 = vmax.f32 %v470, 0.0
      %v538 = vmax.f32 %v472, 0.0
      %v539 = vmax.f32 %v475, 0.0
      %v540 = vmax.f32 %v477, 0.0
      %v541 = vmax.f32 %v480, 0.0
      %v542 = vmax.f32 %v482, 0.0
      %v543 = vmax.f32 %v485, 0.0
      %v544 = vmax.f32 %v487, 0.0
      %v545 = vmax.f32 %v490, 0.0
      %v546 = vmax.f32 %v492, 0.0
      %v547 = vmax.f32 %v495, 0.0
      %v548 = vmax.f32 %v497, 0.0
      %v549 = vmax.f32 %v500, 0.0
      %v550 = vmax.f32 %v502, 0.0
      %v551 = vmax.f32 %v505, 0.0
      %v552 = vmax.f32 %v507, 0.0
      %v553 = vmax.f32 %v510, 0.0
      %v554 = vmax.f32 %v512, 0.0
      %v555 = vmax.f32 %v515, 0.0
      %v556 = vmax.f32 %v517, 0.0
      %v557 = vmax.f32 %v520, 0.0
      %v558 = vmax.f32 %v522, 0.0
      %v559 = vmax.f32 %v525, 0.0
      %v560 = vmax.f32 %v527, 0.0
      %561 = vst.msk [vmem:[#allocation2] sm:$0xff] %vm387, 0.0
      %562 = vst.msk [vmem:[#allocation2 + $0x8] sm:$0xff] %vm387, 0.0
      %vm563 = vcmask 25600
      %564 = vst.msk [vmem:[#allocation2 + $0x10] sm:$0x3] %vm563, 0.0
      %565 = vst.msk [vmem:[#allocation2 + $0x18] sm:$0xff] %vm387, 0.0
      %566 = vst.msk [vmem:[#allocation2 + $0x20] sm:$0xff] %vm387, 0.0
      %567 = vst.msk [vmem:[#allocation2 + $0x28] sm:$0x3] %vm563, 0.0
      %568 = vst.msk [vmem:[#allocation2 + $0x30] sm:$0xff] %vm387, 0.0
      %569 = vst.msk [vmem:[#allocation2 + $0x38] sm:$0xff] %vm387, 0.0
      %570 = vst.msk [vmem:[#allocation2 + $0x40] sm:$0x3] %vm563, 0.0
      %571 = vst.msk [vmem:[#allocation2 + $0x48] sm:$0xff] %vm387, 0.0
      %572 = vst.msk [vmem:[#allocation2 + $0x50] sm:$0xff] %vm387, 0.0
      %573 = vst.msk [vmem:[#allocation2 + $0x58] sm:$0x3] %vm563, 0.0
      %574 = vst.msk [vmem:[#allocation2 + $0x60] sm:$0xff] %vm387, 0.0
      %575 = vst.msk [vmem:[#allocation2 + $0x68] sm:$0xff] %vm387, 0.0
      %576 = vst.msk [vmem:[#allocation2 + $0x70] sm:$0x3] %vm563, 0.0
      %577 = vst.msk [vmem:[#allocation2 + $0x78] sm:$0xff] %vm387, 0.0
      %578 = vst.msk [vmem:[#allocation2 + $0x80] sm:$0xff] %vm387, 0.0
      %579 = vst.msk [vmem:[#allocation2 + $0x88] sm:$0x3] %vm563, 0.0
      %580 = vst.msk [vmem:[#allocation2 + $0x90] sm:$0xff] %vm387, 0.0
      %581 = vst.msk [vmem:[#allocation2 + $0x98] sm:$0xff] %vm387, 0.0
      %582 = vst.msk [vmem:[#allocation2 + $0xa0] sm:$0x3] %vm563, 0.0
      %583 = vst.msk [vmem:[#allocation2 + $0xa8] sm:$0xff] %vm387, 0.0
      %584 = vst.msk [vmem:[#allocation2 + $0xb0] sm:$0xff] %vm387, 0.0
      %585 = vst.msk [vmem:[#allocation2 + $0xb8] sm:$0x3] %vm563, 0.0
      %586 = vst.msk [vmem:[#allocation2 + $0xc0] sm:$0xff] %vm387, 0.0
      %587 = vst.msk [vmem:[#allocation2 + $0xc8] sm:$0xff] %vm387, 0.0
      %588 = vst.msk [vmem:[#allocation2 + $0xd0] sm:$0x3] %vm563, 0.0
      %589 = vst.msk [vmem:[#allocation2 + $0xd8] sm:$0xff] %vm387, 0.0
      %590 = vst.msk [vmem:[#allocation2 + $0xe0] sm:$0xff] %vm387, 0.0
      %591 = vst.msk [vmem:[#allocation2 + $0xe8] sm:$0x3] %vm563, 0.0
      %592 = vst.msk [vmem:[#allocation2 + $0xf0] sm:$0xff] %vm387, 0.0
      %593 = vst.msk [vmem:[#allocation2 + $0xf8] sm:$0xff] %vm387, 0.0
      %594 = vst.msk [vmem:[#allocation2 + $0x100] sm:$0x3] %vm563, 0.0
      %595 = vst.msk [vmem:[#allocation2 + $0x108] sm:$0xff] %vm387, 0.0
      %596 = vst.msk [vmem:[#allocation2 + $0x110] sm:$0xff] %vm387, 0.0
      %597 = vst.msk [vmem:[#allocation2 + $0x118] sm:$0x3] %vm563, 0.0
      %598 = vst.msk [vmem:[#allocation2 + $0x120] sm:$0xff] %vm387, 0.0
      %599 = vst.msk [vmem:[#allocation2 + $0x128] sm:$0xff] %vm387, 0.0
      %600 = vst.msk [vmem:[#allocation2 + $0x130] sm:$0x3] %vm563, 0.0
      %601 = vst.msk [vmem:[#allocation2 + $0x138] sm:$0xff] %vm387, 0.0
      %602 = vst.msk [vmem:[#allocation2 + $0x140] sm:$0xff] %vm387, 0.0
      %603 = vst.msk [vmem:[#allocation2 + $0x148] sm:$0x3] %vm563, 0.0
      %604 = vst.msk [vmem:[#allocation2 + $0x150] sm:$0xff] %vm387, 0.0
      %605 = vst.msk [vmem:[#allocation2 + $0x158] sm:$0xff] %vm387, 0.0
      %606 = vst.msk [vmem:[#allocation2 + $0x160] sm:$0x3] %vm563, 0.0
      %607 = vst.msk [vmem:[#allocation2 + $0x168] sm:$0xff] %vm387, 0.0
      %608 = vst.msk [vmem:[#allocation2 + $0x170] sm:$0xff] %vm387, 0.0
      %609 = vst.msk [vmem:[#allocation2 + $0x178] sm:$0x3] %vm563, 0.0
      %610 = vst.msk [vmem:[#allocation2 + $0x180] sm:$0xff] %vm387, 0.0
      %611 = vst.msk [vmem:[#allocation2 + $0x188] sm:$0xff] %vm387, 0.0
      %612 = vst.msk [vmem:[#allocation2 + $0x190] sm:$0x3] %vm563, 0.0
      %613 = vst.msk [vmem:[#allocation2 + $0x198] sm:$0xff] %vm387, 0.0
      %614 = vst.msk [vmem:[#allocation2 + $0x1a0] sm:$0xff] %vm387, 0.0
      %615 = vst.msk [vmem:[#allocation2 + $0x1a8] sm:$0x3] %vm563, 0.0
      %s616 = scalar_lea.vmem [#allocation2], 24
      %617 = vst.msk [vmem:[%s616 + $0x1] sm:$0xff] %vm387, %v529
      %618 = vst.msk [vmem:[%s616 + $0x9] sm:$0xff] %vm387, %v530
      %619 = vst.msk [vmem:[%s616 + $0x19] sm:$0xff] %vm387, %v531
      %620 = vst.msk [vmem:[%s616 + $0x21] sm:$0xff] %vm387, %v532
      %621 = vst.msk [vmem:[%s616 + $0x31] sm:$0xff] %vm387, %v533
      %622 = vst.msk [vmem:[%s616 + $0x39] sm:$0xff] %vm387, %v534
      %623 = vst.msk [vmem:[%s616 + $0x49] sm:$0xff] %vm387, %v535
      %624 = vst.msk [vmem:[%s616 + $0x51] sm:$0xff] %vm387, %v536
      %625 = vst.msk [vmem:[%s616 + $0x61] sm:$0xff] %vm387, %v537
      %626 = vst.msk [vmem:[%s616 + $0x69] sm:$0xff] %vm387, %v538
      %627 = vst.msk [vmem:[%s616 + $0x79] sm:$0xff] %vm387, %v539
      %628 = vst.msk [vmem:[%s616 + $0x81] sm:$0xff] %vm387, %v540
      %629 = vst.msk [vmem:[%s616 + $0x91] sm:$0xff] %vm387, %v541
      %630 = vst.msk [vmem:[%s616 + $0x99] sm:$0xff] %vm387, %v542
      %631 = vst.msk [vmem:[%s616 + $0xa9] sm:$0xff] %vm387, %v543
      %632 = vst.msk [vmem:[%s616 + $0xb1] sm:$0xff] %vm387, %v544
      %633 = vst.msk [vmem:[%s616 + $0xc1] sm:$0xff] %vm387, %v545
      %634 = vst.msk [vmem:[%s616 + $0xc9] sm:$0xff] %vm387, %v546
      %635 = vst.msk [vmem:[%s616 + $0xd9] sm:$0xff] %vm387, %v547
      %636 = vst.msk [vmem:[%s616 + $0xe1] sm:$0xff] %vm387, %v548
      %637 = vst.msk [vmem:[%s616 + $0xf1] sm:$0xff] %vm387, %v549
      %638 = vst.msk [vmem:[%s616 + $0xf9] sm:$0xff] %vm387, %v550
      %639 = vst.msk [vmem:[%s616 + $0x109] sm:$0xff] %vm387, %v551
      %640 = vst.msk [vmem:[%s616 + $0x111] sm:$0xff] %vm387, %v552
      %641 = vst.msk [vmem:[%s616 + $0x121] sm:$0xff] %vm387, %v553
      %642 = vst.msk [vmem:[%s616 + $0x129] sm:$0xff] %vm387, %v554
      %643 = vst.msk [vmem:[%s616 + $0x139] sm:$0xff] %vm387, %v555
      %644 = vst.msk [vmem:[%s616 + $0x141] sm:$0xff] %vm387, %v556
      %645 = vst.msk [vmem:[%s616 + $0x151] sm:$0xff] %vm387, %v557
      %646 = vst.msk [vmem:[%s616 + $0x159] sm:$0xff] %vm387, %v558
      %647 = vst.msk [vmem:[%s616 + $0x169] sm:$0xff] %vm387, %v559
      %648 = vst.msk [vmem:[%s616 + $0x171] sm:$0xff] %vm387, %v560
      %v649 = vld [vmem:[#allocation2] sm:$0xff]
      %v650 = vld [vmem:[#allocation2 + $0x8] sm:$0xff]
      %v651 = vld [vmem:[#allocation2 + $0x18] sm:$0xff]
      %v652 = vld [vmem:[#allocation2 + $0x20] sm:$0xff]
      %v653 = vld [vmem:[#allocation2 + $0x30] sm:$0xff]
      %v654 = vld [vmem:[#allocation2 + $0x38] sm:$0xff]
      %v655 = vld [vmem:[#allocation2 + $0x48] sm:$0xff]
      %v656 = vld [vmem:[#allocation2 + $0x50] sm:$0xff]
      %v657 = vld [vmem:[#allocation2 + $0x60] sm:$0xff]
      %v658 = vld [vmem:[#allocation2 + $0x68] sm:$0xff]
      %v659 = vld [vmem:[#allocation2 + $0x78] sm:$0xff]
      %v660 = vld [vmem:[#allocation2 + $0x80] sm:$0xff]
      %v661 = vld [vmem:[#allocation2 + $0x90] sm:$0xff]
      %v662 = vld [vmem:[#allocation2 + $0x98] sm:$0xff]
      %v663 = vld [vmem:[#allocation2 + $0xa8] sm:$0xff]
      %v664 = vld [vmem:[#allocation2 + $0xb0] sm:$0xff]
      %v665 = vld [vmem:[#allocation2 + $0xc0] sm:$0xff]
      %v666 = vld [vmem:[#allocation2 + $0xc8] sm:$0xff]
      %v667 = vld [vmem:[#allocation2 + $0xd8] sm:$0xff]
      %v668 = vld [vmem:[#allocation2 + $0xe0] sm:$0xff]
      %v669 = vld [vmem:[#allocation2 + $0xf0] sm:$0xff]
      %v670 = vld [vmem:[#allocation2 + $0xf8] sm:$0xff]
      %v671 = vld [vmem:[#allocation2 + $0x108] sm:$0xff]
      %v672 = vld [vmem:[#allocation2 + $0x110] sm:$0xff]
      %v673 = vld [vmem:[#allocation2 + $0x120] sm:$0xff]
      %v674 = vld [vmem:[#allocation2 + $0x128] sm:$0xff]
      %v675 = vld [vmem:[#allocation2 + $0x138] sm:$0xff]
      %v676 = vld [vmem:[#allocation2 + $0x140] sm:$0xff]
      %v677 = vld [vmem:[#allocation2 + $0x150] sm:$0xff]
      %v678 = vld [vmem:[#allocation2 + $0x158] sm:$0xff]
      %v679 = vld [vmem:[#allocation2 + $0x168] sm:$0xff]
      %v680 = vld [vmem:[#allocation2 + $0x170] sm:$0xff]
      %v681 = vpack.c.bf16 %v650, %v649
      %v682 = vpack.c.bf16 %v652, %v651
      %v683 = vpack.c.bf16 %v654, %v653
      %v684 = vpack.c.bf16 %v656, %v655
      %v685 = vpack.c.bf16 %v658, %v657
      %v686 = vpack.c.bf16 %v660, %v659
      %v687 = vpack.c.bf16 %v662, %v661
      %v688 = vpack.c.bf16 %v664, %v663
      %v689 = vpack.c.bf16 %v666, %v665
      %v690 = vpack.c.bf16 %v668, %v667
      %v691 = vpack.c.bf16 %v670, %v669
      %v692 = vpack.c.bf16 %v672, %v671
      %v693 = vpack.c.bf16 %v674, %v673
      %v694 = vpack.c.bf16 %v676, %v675
      %v695 = vpack.c.bf16 %v678, %v677
      %v696 = vpack.c.bf16 %v680, %v679
      %v697 = vld [vmem:[%s3] sm:$0x3]
      %v698 = vld [vmem:[#allocation2 + $0x1] sm:$0xff]
      %v699 = vld [vmem:[#allocation2 + $0x9] sm:$0xff]
      %v700 = vld [vmem:[#allocation2 + $0x19] sm:$0xff]
      %v701 = vld [vmem:[#allocation2 + $0x21] sm:$0xff]
      %v702 = vld [vmem:[#allocation2 + $0x31] sm:$0xff]
      %v703 = vld [vmem:[#allocation2 + $0x39] sm:$0xff]
      %v704 = vld [vmem:[#allocation2 + $0x49] sm:$0xff]
      %v705 = vld [vmem:[#allocation2 + $0x51] sm:$0xff]
      %v706 = vld [vmem:[#allocation2 + $0x61] sm:$0xff]
      %v707 = vld [vmem:[#allocation2 + $0x69] sm:$0xff]
      %v708 = vld [vmem:[#allocation2 + $0x79] sm:$0xff]
      %v709 = vld [vmem:[#allocation2 + $0x81] sm:$0xff]
      %v710 = vld [vmem:[#allocation2 + $0x91] sm:$0xff]
      %v711 = vld [vmem:[#allocation2 + $0x99] sm:$0xff]
      %v712 = vld [vmem:[#allocation2 + $0xa9] sm:$0xff]
      %v713 = vld [vmem:[#allocation2 + $0xb1] sm:$0xff]
      %v714 = vld [vmem:[#allocation2 + $0xc1] sm:$0xff]
      %v715 = vld [vmem:[#allocation2 + $0xc9] sm:$0xff]
      %v716 = vld [vmem:[#allocation2 + $0xd9] sm:$0xff]
      %v717 = vld [vmem:[#allocation2 + $0xe1] sm:$0xff]
      %v718 = vld [vmem:[#allocation2 + $0xf1] sm:$0xff]
      %v719 = vld [vmem:[#allocation2 + $0xf9] sm:$0xff]
      %v720 = vld [vmem:[#allocation2 + $0x109] sm:$0xff]
      %v721 = vld [vmem:[#allocation2 + $0x111] sm:$0xff]
      %v722 = vld [vmem:[#allocation2 + $0x121] sm:$0xff]
      %v723 = vld [vmem:[#allocation2 + $0x129] sm:$0xff]
      %v724 = vld [vmem:[#allocation2 + $0x139] sm:$0xff]
      %v725 = vld [vmem:[#allocation2 + $0x141] sm:$0xff]
      %v726 = vld [vmem:[#allocation2 + $0x151] sm:$0xff]
      %v727 = vld [vmem:[#allocation2 + $0x159] sm:$0xff]
      %v728 = vld [vmem:[#allocation2 + $0x169] sm:$0xff]
      %v729 = vld [vmem:[#allocation2 + $0x171] sm:$0xff]
      %v730 = vpack.c.bf16 %v699, %v698
      %v731 = vpack.c.bf16 %v701, %v700
      %v732 = vpack.c.bf16 %v703, %v702
      %v733 = vpack.c.bf16 %v705, %v704
      %v734 = vpack.c.bf16 %v707, %v706
      %v735 = vpack.c.bf16 %v709, %v708
      %v736 = vpack.c.bf16 %v711, %v710
      %v737 = vpack.c.bf16 %v713, %v712
      %v738 = vpack.c.bf16 %v715, %v714
      %v739 = vpack.c.bf16 %v717, %v716
      %v740 = vpack.c.bf16 %v719, %v718
      %v741 = vpack.c.bf16 %v721, %v720
      %v742 = vpack.c.bf16 %v723, %v722
      %v743 = vpack.c.bf16 %v725, %v724
      %v744 = vpack.c.bf16 %v727, %v726
      %v745 = vpack.c.bf16 %v729, %v728
      %s746 = scalar_lea.vmem %s3, 2
      %v747 = vld [vmem:[%s746] sm:$0x3]
      %v749 = vsel %vm387, %v730, 0
      %v752 = vsel %vm387, %v731, 0
      %v755 = vsel %vm387, %v732, 0
      %v758 = vsel %vm387, %v733, 0
      %v761 = vsel %vm387, %v734, 0
      %v764 = vsel %vm387, %v735, 0
      %v767 = vsel %vm387, %v736, 0
      %v770 = vsel %vm387, %v737, 0
      %v773 = vsel %vm387, %v738, 0
      %v776 = vsel %vm387, %v739, 0
      %v779 = vsel %vm387, %v740, 0
      %v782 = vsel %vm387, %v741, 0
      %v785 = vsel %vm387, %v742, 0
      %v788 = vsel %vm387, %v743, 0
      %v791 = vsel %vm387, %v744, 0
      %v794 = vsel %vm387, %v745, 0
      %v797 = vsel %vm436, %v747, 0
      %799 = vmatpush.bf16.msra.mxu0 0
      %800 = vmatpush.bf16.msra.mxu0 0
      %801 = vmatpush.bf16.msra.mxu0 0
      %802 = vmatpush.bf16.msra.mxu0 0
      %803 = vmatpush.bf16.msra.mxu0 0
      %804 = vmatpush.bf16.msra.mxu0 0
      %805 = vmatpush.bf16.msra.mxu0 0
      %806 = vmatpush.bf16.msra.mxu0 %v797
      %807 = vmatmul.bf16.gmra.mxu0 %v749
      %v808 = vpop.f32.mrf.mxu0
      %v809 = vadd.f32 0.0, %v808
      %v810 = vpop.f32.mrf.mxu0
      %v811 = vadd.f32 0.0, %v810
      %812 = vmatmul.bf16.gmra.mxu0 %v752
      %v813 = vpop.f32.mrf.mxu0
      %v814 = vadd.f32 0.0, %v813
      %v815 = vpop.f32.mrf.mxu0
      %v816 = vadd.f32 0.0, %v815
      %817 = vmatmul.bf16.gmra.mxu0 %v755
      %v818 = vpop.f32.mrf.mxu0
      %v819 = vadd.f32 0.0, %v818
      %v820 = vpop.f32.mrf.mxu0
      %v821 = vadd.f32 0.0, %v820
      %822 = vmatmul.bf16.gmra.mxu0 %v758
      %v823 = vpop.f32.mrf.mxu0
      %v824 = vadd.f32 0.0, %v823
      %v825 = vpop.f32.mrf.mxu0
      %v826 = vadd.f32 0.0, %v825
      %827 = vmatmul.bf16.gmra.mxu0 %v761
      %v828 = vpop.f32.mrf.mxu0
      %v829 = vadd.f32 0.0, %v828
      %v830 = vpop.f32.mrf.mxu0
      %v831 = vadd.f32 0.0, %v830
      %832 = vmatmul.bf16.gmra.mxu0 %v764
      %v833 = vpop.f32.mrf.mxu0
      %v834 = vadd.f32 0.0, %v833
      %v835 = vpop.f32.mrf.mxu0
      %v836 = vadd.f32 0.0, %v835
      %837 = vmatmul.bf16.gmra.mxu0 %v767
      %v838 = vpop.f32.mrf.mxu0
      %v839 = vadd.f32 0.0, %v838
      %v840 = vpop.f32.mrf.mxu0
      %v841 = vadd.f32 0.0, %v840
      %842 = vmatmul.bf16.gmra.mxu0 %v770
      %v843 = vpop.f32.mrf.mxu0
      %v844 = vadd.f32 0.0, %v843
      %v845 = vpop.f32.mrf.mxu0
      %v846 = vadd.f32 0.0, %v845
      %847 = vmatmul.bf16.gmra.mxu0 %v773
      %v848 = vpop.f32.mrf.mxu0
      %v849 = vadd.f32 0.0, %v848
      %v850 = vpop.f32.mrf.mxu0
      %v851 = vadd.f32 0.0, %v850
      %852 = vmatmul.bf16.gmra.mxu0 %v776
      %v853 = vpop.f32.mrf.mxu0
      %v854 = vadd.f32 0.0, %v853
      %v855 = vpop.f32.mrf.mxu0
      %v856 = vadd.f32 0.0, %v855
      %857 = vmatmul.bf16.gmra.mxu0 %v779
      %v858 = vpop.f32.mrf.mxu0
      %v859 = vadd.f32 0.0, %v858
      %v860 = vpop.f32.mrf.mxu0
      %v861 = vadd.f32 0.0, %v860
      %862 = vmatmul.bf16.gmra.mxu0 %v782
      %v863 = vpop.f32.mrf.mxu0
      %v864 = vadd.f32 0.0, %v863
      %v865 = vpop.f32.mrf.mxu0
      %v866 = vadd.f32 0.0, %v865
      %867 = vmatmul.bf16.gmra.mxu0 %v785
      %v868 = vpop.f32.mrf.mxu0
      %v869 = vadd.f32 0.0, %v868
      %v870 = vpop.f32.mrf.mxu0
      %v871 = vadd.f32 0.0, %v870
      %872 = vmatmul.bf16.gmra.mxu0 %v788
      %v873 = vpop.f32.mrf.mxu0
      %v874 = vadd.f32 0.0, %v873
      %v875 = vpop.f32.mrf.mxu0
      %v876 = vadd.f32 0.0, %v875
      %877 = vmatmul.bf16.gmra.mxu0 %v791
      %v878 = vpop.f32.mrf.mxu0
      %v879 = vadd.f32 0.0, %v878
      %v880 = vpop.f32.mrf.mxu0
      %v881 = vadd.f32 0.0, %v880
      %882 = vmatmul.bf16.gmra.mxu0 %v794
      %v883 = vpop.f32.mrf.mxu0
      %v884 = vadd.f32 0.0, %v883
      %v885 = vpop.f32.mrf.mxu0
      %v886 = vadd.f32 0.0, %v885
      %887 = vdwg.mxu0
      %v889 = vsel %vm387, %v681, 0
      %v892 = vsel %vm387, %v682, 0
      %v895 = vsel %vm387, %v683, 0
      %v898 = vsel %vm387, %v684, 0
      %v901 = vsel %vm387, %v685, 0
      %v904 = vsel %vm387, %v686, 0
      %v907 = vsel %vm387, %v687, 0
      %v910 = vsel %vm387, %v688, 0
      %v913 = vsel %vm387, %v689, 0
      %v916 = vsel %vm387, %v690, 0
      %v919 = vsel %vm387, %v691, 0
      %v922 = vsel %vm387, %v692, 0
      %v925 = vsel %vm387, %v693, 0
      %v928 = vsel %vm387, %v694, 0
      %v931 = vsel %vm387, %v695, 0
      %v934 = vsel %vm387, %v696, 0
      %v937 = vsel %vm436, %v697, 0
      %939 = vmatpush.bf16.msra.mxu0 0
      %940 = vmatpush.bf16.msra.mxu0 0
      %941 = vmatpush.bf16.msra.mxu0 0
      %942 = vmatpush.bf16.msra.mxu0 0
      %943 = vmatpush.bf16.msra.mxu0 0
      %944 = vmatpush.bf16.msra.mxu0 0
      %945 = vmatpush.bf16.msra.mxu0 0
      %946 = vmatpush.bf16.msra.mxu0 %v937
      %947 = vmatmul.bf16.gmra.mxu0 %v889
      %v948 = vpop.f32.mrf.mxu0
      %v949 = vadd.f32 %v809, %v948
      %v950 = vpop.f32.mrf.mxu0
      %v951 = vadd.f32 %v811, %v950
      %952 = vmatmul.bf16.gmra.mxu0 %v892
      %v953 = vpop.f32.mrf.mxu0
      %v954 = vadd.f32 %v814, %v953
      %v955 = vpop.f32.mrf.mxu0
      %v956 = vadd.f32 %v816, %v955
      %957 = vmatmul.bf16.gmra.mxu0 %v895
      %v958 = vpop.f32.mrf.mxu0
      %v959 = vadd.f32 %v819, %v958
      %v960 = vpop.f32.mrf.mxu0
      %v961 = vadd.f32 %v821, %v960
      %962 = vmatmul.bf16.gmra.mxu0 %v898
      %v963 = vpop.f32.mrf.mxu0
      %v964 = vadd.f32 %v824, %v963
      %v965 = vpop.f32.mrf.mxu0
      %v966 = vadd.f32 %v826, %v965
      %967 = vmatmul.bf16.gmra.mxu0 %v901
      %v968 = vpop.f32.mrf.mxu0
      %v969 = vadd.f32 %v829, %v968
      %v970 = vpop.f32.mrf.mxu0
      %v971 = vadd.f32 %v831, %v970
      %972 = vmatmul.bf16.gmra.mxu0 %v904
      %v973 = vpop.f32.mrf.mxu0
      %v974 = vadd.f32 %v834, %v973
      %v975 = vpop.f32.mrf.mxu0
      %v976 = vadd.f32 %v836, %v975
      %977 = vmatmul.bf16.gmra.mxu0 %v907
      %v978 = vpop.f32.mrf.mxu0
      %v979 = vadd.f32 %v839, %v978
      %v980 = vpop.f32.mrf.mxu0
      %v981 = vadd.f32 %v841, %v980
      %982 = vmatmul.bf16.gmra.mxu0 %v910
      %v983 = vpop.f32.mrf.mxu0
      %v984 = vadd.f32 %v844, %v983
      %v985 = vpop.f32.mrf.mxu0
      %v986 = vadd.f32 %v846, %v985
      %987 = vmatmul.bf16.gmra.mxu0 %v913
      %v988 = vpop.f32.mrf.mxu0
      %v989 = vadd.f32 %v849, %v988
      %v990 = vpop.f32.mrf.mxu0
      %v991 = vadd.f32 %v851, %v990
      %992 = vmatmul.bf16.gmra.mxu0 %v916
      %v993 = vpop.f32.mrf.mxu0
      %v994 = vadd.f32 %v854, %v993
      %v995 = vpop.f32.mrf.mxu0
      %v996 = vadd.f32 %v856, %v995
      %997 = vmatmul.bf16.gmra.mxu0 %v919
      %v998 = vpop.f32.mrf.mxu0
      %v999 = vadd.f32 %v859, %v998
      %v1000 = vpop.f32.mrf.mxu0
      %v1001 = vadd.f32 %v861, %v1000
      %1002 = vmatmul.bf16.gmra.mxu0 %v922
      %v1003 = vpop.f32.mrf.mxu0
      %v1004 = vadd.f32 %v864, %v1003
      %v1005 = vpop.f32.mrf.mxu0
      %v1006 = vadd.f32 %v866, %v1005
      %1007 = vmatmul.bf16.gmra.mxu0 %v925
      %v1008 = vpop.f32.mrf.mxu0
      %v1009 = vadd.f32 %v869, %v1008
      %v1010 = vpop.f32.mrf.mxu0
      %v1011 = vadd.f32 %v871, %v1010
      %1012 = vmatmul.bf16.gmra.mxu0 %v928
      %v1013 = vpop.f32.mrf.mxu0
      %v1014 = vadd.f32 %v874, %v1013
      %v1015 = vpop.f32.mrf.mxu0
      %v1016 = vadd.f32 %v876, %v1015
      %1017 = vmatmul.bf16.gmra.mxu0 %v931
      %v1018 = vpop.f32.mrf.mxu0
      %v1019 = vadd.f32 %v879, %v1018
      %v1020 = vpop.f32.mrf.mxu0
      %v1021 = vadd.f32 %v881, %v1020
      %1022 = vmatmul.bf16.gmra.mxu0 %v934
      %v1023 = vpop.f32.mrf.mxu0
      %v1024 = vadd.f32 %v884, %v1023
      %v1025 = vpop.f32.mrf.mxu0
      %v1026 = vadd.f32 %v886, %v1025
      %1027 = vdwg.mxu0
      %v1028 = vld [vmem:[#allocation2 + $0x2] sm:$0xff]
      %v1029 = vld [vmem:[#allocation2 + $0xa] sm:$0xff]
      %v1030 = vld [vmem:[#allocation2 + $0x1a] sm:$0xff]
      %v1031 = vld [vmem:[#allocation2 + $0x22] sm:$0xff]
      %v1032 = vld [vmem:[#allocation2 + $0x32] sm:$0xff]
      %v1033 = vld [vmem:[#allocation2 + $0x3a] sm:$0xff]
      %v1034 = vld [vmem:[#allocation2 + $0x4a] sm:$0xff]
      %v1035 = vld [vmem:[#allocation2 + $0x52] sm:$0xff]
      %v1036 = vld [vmem:[#allocation2 + $0x62] sm:$0xff]
      %v1037 = vld [vmem:[#allocation2 + $0x6a] sm:$0xff]
      %v1038 = vld [vmem:[#allocation2 + $0x7a] sm:$0xff]
      %v1039 = vld [vmem:[#allocation2 + $0x82] sm:$0xff]
      %v1040 = vld [vmem:[#allocation2 + $0x92] sm:$0xff]
      %v1041 = vld [vmem:[#allocation2 + $0x9a] sm:$0xff]
      %v1042 = vld [vmem:[#allocation2 + $0xaa] sm:$0xff]
      %v1043 = vld [vmem:[#allocation2 + $0xb2] sm:$0xff]
      %v1044 = vld [vmem:[#allocation2 + $0xc2] sm:$0xff]
      %v1045 = vld [vmem:[#allocation2 + $0xca] sm:$0xff]
      %v1046 = vld [vmem:[#allocation2 + $0xda] sm:$0xff]
      %v1047 = vld [vmem:[#allocation2 + $0xe2] sm:$0xff]
      %v1048 = vld [vmem:[#allocation2 + $0xf2] sm:$0xff]
      %v1049 = vld [vmem:[#allocation2 + $0xfa] sm:$0xff]
      %v1050 = vld [vmem:[#allocation2 + $0x10a] sm:$0xff]
      %v1051 = vld [vmem:[#allocation2 + $0x112] sm:$0xff]
      %v1052 = vld [vmem:[#allocation2 + $0x122] sm:$0xff]
      %v1053 = vld [vmem:[#allocation2 + $0x12a] sm:$0xff]
      %v1054 = vld [vmem:[#allocation2 + $0x13a] sm:$0xff]
      %v1055 = vld [vmem:[#allocation2 + $0x142] sm:$0xff]
      %v1056 = vld [vmem:[#allocation2 + $0x152] sm:$0xff]
      %v1057 = vld [vmem:[#allocation2 + $0x15a] sm:$0xff]
      %v1058 = vld [vmem:[#allocation2 + $0x16a] sm:$0xff]
      %v1059 = vld [vmem:[#allocation2 + $0x172] sm:$0xff]
      %v1060 = vpack.c.bf16 %v1029, %v1028
      %v1061 = vpack.c.bf16 %v1031, %v1030
      %v1062 = vpack.c.bf16 %v1033, %v1032
      %v1063 = vpack.c.bf16 %v1035, %v1034
      %v1064 = vpack.c.bf16 %v1037, %v1036
      %v1065 = vpack.c.bf16 %v1039, %v1038
      %v1066 = vpack.c.bf16 %v1041, %v1040
      %v1067 = vpack.c.bf16 %v1043, %v1042
      %v1068 = vpack.c.bf16 %v1045, %v1044
      %v1069 = vpack.c.bf16 %v1047, %v1046
      %v1070 = vpack.c.bf16 %v1049, %v1048
      %v1071 = vpack.c.bf16 %v1051, %v1050
      %v1072 = vpack.c.bf16 %v1053, %v1052
      %v1073 = vpack.c.bf16 %v1055, %v1054
      %v1074 = vpack.c.bf16 %v1057, %v1056
      %v1075 = vpack.c.bf16 %v1059, %v1058
      %s1076 = scalar_lea.vmem %s3, 4
      %v1077 = vld [vmem:[%s1076] sm:$0x3]
      %v1079 = vsel %vm387, %v1060, 0
      %v1082 = vsel %vm387, %v1061, 0
      %v1085 = vsel %vm387, %v1062, 0
      %v1088 = vsel %vm387, %v1063, 0
      %v1091 = vsel %vm387, %v1064, 0
      %v1094 = vsel %vm387, %v1065, 0
      %v1097 = vsel %vm387, %v1066, 0
      %v1100 = vsel %vm387, %v1067, 0
      %v1103 = vsel %vm387, %v1068, 0
      %v1106 = vsel %vm387, %v1069, 0
      %v1109 = vsel %vm387, %v1070, 0
      %v1112 = vsel %vm387, %v1071, 0
      %v1115 = vsel %vm387, %v1072, 0
      %v1118 = vsel %vm387, %v1073, 0
      %v1121 = vsel %vm387, %v1074, 0
      %v1124 = vsel %vm387, %v1075, 0
      %v1127 = vsel %vm436, %v1077, 0
      %1129 = vmatpush.bf16.msra.mxu0 0
      %1130 = vmatpush.bf16.msra.mxu0 0
      %1131 = vmatpush.bf16.msra.mxu0 0
      %1132 = vmatpush.bf16.msra.mxu0 0
      %1133 = vmatpush.bf16.msra.mxu0 0
      %1134 = vmatpush.bf16.msra.mxu0 0
      %1135 = vmatpush.bf16.msra.mxu0 0
      %1136 = vmatpush.bf16.msra.mxu0 %v1127
      %1137 = vmatmul.bf16.gmra.mxu0 %v1079
      %v1138 = vpop.f32.mrf.mxu0
      %v1139 = vadd.f32 0.0, %v1138
      %v1140 = vpop.f32.mrf.mxu0
      %v1141 = vadd.f32 0.0, %v1140
      %1142 = vmatmul.bf16.gmra.mxu0 %v1082
      %v1143 = vpop.f32.mrf.mxu0
      %v1144 = vadd.f32 0.0, %v1143
      %v1145 = vpop.f32.mrf.mxu0
      %v1146 = vadd.f32 0.0, %v1145
      %1147 = vmatmul.bf16.gmra.mxu0 %v1085
      %v1148 = vpop.f32.mrf.mxu0
      %v1149 = vadd.f32 0.0, %v1148
      %v1150 = vpop.f32.mrf.mxu0
      %v1151 = vadd.f32 0.0, %v1150
      %1152 = vmatmul.bf16.gmra.mxu0 %v1088
      %v1153 = vpop.f32.mrf.mxu0
      %v1154 = vadd.f32 0.0, %v1153
      %v1155 = vpop.f32.mrf.mxu0
      %v1156 = vadd.f32 0.0, %v1155
      %1157 = vmatmul.bf16.gmra.mxu0 %v1091
      %v1158 = vpop.f32.mrf.mxu0
      %v1159 = vadd.f32 0.0, %v1158
      %v1160 = vpop.f32.mrf.mxu0
      %v1161 = vadd.f32 0.0, %v1160
      %1162 = vmatmul.bf16.gmra.mxu0 %v1094
      %v1163 = vpop.f32.mrf.mxu0
      %v1164 = vadd.f32 0.0, %v1163
      %v1165 = vpop.f32.mrf.mxu0
      %v1166 = vadd.f32 0.0, %v1165
      %1167 = vmatmul.bf16.gmra.mxu0 %v1097
      %v1168 = vpop.f32.mrf.mxu0
      %v1169 = vadd.f32 0.0, %v1168
      %v1170 = vpop.f32.mrf.mxu0
      %v1171 = vadd.f32 0.0, %v1170
      %1172 = vmatmul.bf16.gmra.mxu0 %v1100
      %v1173 = vpop.f32.mrf.mxu0
      %v1174 = vadd.f32 0.0, %v1173
      %v1175 = vpop.f32.mrf.mxu0
      %v1176 = vadd.f32 0.0, %v1175
      %1177 = vmatmul.bf16.gmra.mxu0 %v1103
      %v1178 = vpop.f32.mrf.mxu0
      %v1179 = vadd.f32 0.0, %v1178
      %v1180 = vpop.f32.mrf.mxu0
      %v1181 = vadd.f32 0.0, %v1180
      %1182 = vmatmul.bf16.gmra.mxu0 %v1106
      %v1183 = vpop.f32.mrf.mxu0
      %v1184 = vadd.f32 0.0, %v1183
      %v1185 = vpop.f32.mrf.mxu0
      %v1186 = vadd.f32 0.0, %v1185
      %1187 = vmatmul.bf16.gmra.mxu0 %v1109
      %v1188 = vpop.f32.mrf.mxu0
      %v1189 = vadd.f32 0.0, %v1188
      %v1190 = vpop.f32.mrf.mxu0
      %v1191 = vadd.f32 0.0, %v1190
      %1192 = vmatmul.bf16.gmra.mxu0 %v1112
      %v1193 = vpop.f32.mrf.mxu0
      %v1194 = vadd.f32 0.0, %v1193
      %v1195 = vpop.f32.mrf.mxu0
      %v1196 = vadd.f32 0.0, %v1195
      %1197 = vmatmul.bf16.gmra.mxu0 %v1115
      %v1198 = vpop.f32.mrf.mxu0
      %v1199 = vadd.f32 0.0, %v1198
      %v1200 = vpop.f32.mrf.mxu0
      %v1201 = vadd.f32 0.0, %v1200
      %1202 = vmatmul.bf16.gmra.mxu0 %v1118
      %v1203 = vpop.f32.mrf.mxu0
      %v1204 = vadd.f32 0.0, %v1203
      %v1205 = vpop.f32.mrf.mxu0
      %v1206 = vadd.f32 0.0, %v1205
      %1207 = vmatmul.bf16.gmra.mxu0 %v1121
      %v1208 = vpop.f32.mrf.mxu0
      %v1209 = vadd.f32 0.0, %v1208
      %v1210 = vpop.f32.mrf.mxu0
      %v1211 = vadd.f32 0.0, %v1210
      %1212 = vmatmul.bf16.gmra.mxu0 %v1124
      %v1213 = vpop.f32.mrf.mxu0
      %v1214 = vadd.f32 0.0, %v1213
      %v1215 = vpop.f32.mrf.mxu0
      %v1216 = vadd.f32 0.0, %v1215
      %1217 = vdwg.mxu0
      %v1218 = vadd.f32 %v949, %v1139
      %v1219 = vadd.f32 %v951, %v1141
      %v1220 = vadd.f32 %v954, %v1144
      %v1221 = vadd.f32 %v956, %v1146
      %v1222 = vadd.f32 %v959, %v1149
      %v1223 = vadd.f32 %v961, %v1151
      %v1224 = vadd.f32 %v964, %v1154
      %v1225 = vadd.f32 %v966, %v1156
      %v1226 = vadd.f32 %v969, %v1159
      %v1227 = vadd.f32 %v971, %v1161
      %v1228 = vadd.f32 %v974, %v1164
      %v1229 = vadd.f32 %v976, %v1166
      %v1230 = vadd.f32 %v979, %v1169
      %v1231 = vadd.f32 %v981, %v1171
      %v1232 = vadd.f32 %v984, %v1174
      %v1233 = vadd.f32 %v986, %v1176
      %v1234 = vadd.f32 %v989, %v1179
      %v1235 = vadd.f32 %v991, %v1181
      %v1236 = vadd.f32 %v994, %v1184
      %v1237 = vadd.f32 %v996, %v1186
      %v1238 = vadd.f32 %v999, %v1189
      %v1239 = vadd.f32 %v1001, %v1191
      %v1240 = vadd.f32 %v1004, %v1194
      %v1241 = vadd.f32 %v1006, %v1196
      %v1242 = vadd.f32 %v1009, %v1199
      %v1243 = vadd.f32 %v1011, %v1201
      %v1244 = vadd.f32 %v1014, %v1204
      %v1245 = vadd.f32 %v1016, %v1206
      %v1246 = vadd.f32 %v1019, %v1209
      %v1247 = vadd.f32 %v1021, %v1211
      %v1248 = vadd.f32 %v1024, %v1214
      %v1249 = vadd.f32 %v1026, %v1216
      %v1250 = vld [vmem:[%s616] sm:$0xff]
      %v1251 = vld [vmem:[%s616 + $0x8] sm:$0xff]
      %v1252 = vld [vmem:[%s616 + $0x18] sm:$0xff]
      %v1253 = vld [vmem:[%s616 + $0x20] sm:$0xff]
      %v1254 = vld [vmem:[%s616 + $0x30] sm:$0xff]
      %v1255 = vld [vmem:[%s616 + $0x38] sm:$0xff]
      %v1256 = vld [vmem:[%s616 + $0x48] sm:$0xff]
      %v1257 = vld [vmem:[%s616 + $0x50] sm:$0xff]
      %v1258 = vld [vmem:[%s616 + $0x60] sm:$0xff]
      %v1259 = vld [vmem:[%s616 + $0x68] sm:$0xff]
      %v1260 = vld [vmem:[%s616 + $0x78] sm:$0xff]
      %v1261 = vld [vmem:[%s616 + $0x80] sm:$0xff]
      %v1262 = vld [vmem:[%s616 + $0x90] sm:$0xff]
      %v1263 = vld [vmem:[%s616 + $0x98] sm:$0xff]
      %v1264 = vld [vmem:[%s616 + $0xa8] sm:$0xff]
      %v1265 = vld [vmem:[%s616 + $0xb0] sm:$0xff]
      %v1266 = vld [vmem:[%s616 + $0xc0] sm:$0xff]
      %v1267 = vld [vmem:[%s616 + $0xc8] sm:$0xff]
      %v1268 = vld [vmem:[%s616 + $0xd8] sm:$0xff]
      %v1269 = vld [vmem:[%s616 + $0xe0] sm:$0xff]
      %v1270 = vld [vmem:[%s616 + $0xf0] sm:$0xff]
      %v1271 = vld [vmem:[%s616 + $0xf8] sm:$0xff]
      %v1272 = vld [vmem:[%s616 + $0x108] sm:$0xff]
      %v1273 = vld [vmem:[%s616 + $0x110] sm:$0xff]
      %v1274 = vld [vmem:[%s616 + $0x120] sm:$0xff]
      %v1275 = vld [vmem:[%s616 + $0x128] sm:$0xff]
      %v1276 = vld [vmem:[%s616 + $0x138] sm:$0xff]
      %v1277 = vld [vmem:[%s616 + $0x140] sm:$0xff]
      %v1278 = vld [vmem:[%s616 + $0x150] sm:$0xff]
      %v1279 = vld [vmem:[%s616 + $0x158] sm:$0xff]
      %v1280 = vld [vmem:[%s616 + $0x168] sm:$0xff]
      %v1281 = vld [vmem:[%s616 + $0x170] sm:$0xff]
      %v1282 = vpack.c.bf16 %v1251, %v1250
      %v1283 = vpack.c.bf16 %v1253, %v1252
      %v1284 = vpack.c.bf16 %v1255, %v1254
      %v1285 = vpack.c.bf16 %v1257, %v1256
      %v1286 = vpack.c.bf16 %v1259, %v1258
      %v1287 = vpack.c.bf16 %v1261, %v1260
      %v1288 = vpack.c.bf16 %v1263, %v1262
      %v1289 = vpack.c.bf16 %v1265, %v1264
      %v1290 = vpack.c.bf16 %v1267, %v1266
      %v1291 = vpack.c.bf16 %v1269, %v1268
      %v1292 = vpack.c.bf16 %v1271, %v1270
      %v1293 = vpack.c.bf16 %v1273, %v1272
      %v1294 = vpack.c.bf16 %v1275, %v1274
      %v1295 = vpack.c.bf16 %v1277, %v1276
      %v1296 = vpack.c.bf16 %v1279, %v1278
      %v1297 = vpack.c.bf16 %v1281, %v1280
      %s1298 = scalar_lea.vmem %s3, 6
      %v1299 = vld [vmem:[%s1298] sm:$0x3]
      %v1301 = vsel %vm387, %v1282, 0
      %v1304 = vsel %vm387, %v1283, 0
      %v1307 = vsel %vm387, %v1284, 0
      %v1310 = vsel %vm387, %v1285, 0
      %v1313 = vsel %vm387, %v1286, 0
      %v1316 = vsel %vm387, %v1287, 0
      %v1319 = vsel %vm387, %v1288, 0
      %v1322 = vsel %vm387, %v1289, 0
      %v1325 = vsel %vm387, %v1290, 0
      %v1328 = vsel %vm387, %v1291, 0
      %v1331 = vsel %vm387, %v1292, 0
      %v1334 = vsel %vm387, %v1293, 0
      %v1337 = vsel %vm387, %v1294, 0
      %v1340 = vsel %vm387, %v1295, 0
      %v1343 = vsel %vm387, %v1296, 0
      %v1346 = vsel %vm387, %v1297, 0
      %v1349 = vsel %vm436, %v1299, 0
      %1351 = vmatpush.bf16.msra.mxu0 0
      %1352 = vmatpush.bf16.msra.mxu0 0
      %1353 = vmatpush.bf16.msra.mxu0 0
      %1354 = vmatpush.bf16.msra.mxu0 0
      %1355 = vmatpush.bf16.msra.mxu0 0
      %1356 = vmatpush.bf16.msra.mxu0 0
      %1357 = vmatpush.bf16.msra.mxu0 0
      %1358 = vmatpush.bf16.msra.mxu0 %v1349
      %1359 = vmatmul.bf16.gmra.mxu0 %v1301
      %v1360 = vpop.f32.mrf.mxu0
      %v1361 = vadd.f32 0.0, %v1360
      %v1362 = vpop.f32.mrf.mxu0
      %v1363 = vadd.f32 0.0, %v1362
      %1364 = vmatmul.bf16.gmra.mxu0 %v1304
      %v1365 = vpop.f32.mrf.mxu0
      %v1366 = vadd.f32 0.0, %v1365
      %v1367 = vpop.f32.mrf.mxu0
      %v1368 = vadd.f32 0.0, %v1367
      %1369 = vmatmul.bf16.gmra.mxu0 %v1307
      %v1370 = vpop.f32.mrf.mxu0
      %v1371 = vadd.f32 0.0, %v1370
      %v1372 = vpop.f32.mrf.mxu0
      %v1373 = vadd.f32 0.0, %v1372
      %1374 = vmatmul.bf16.gmra.mxu0 %v1310
      %v1375 = vpop.f32.mrf.mxu0
      %v1376 = vadd.f32 0.0, %v1375
      %v1377 = vpop.f32.mrf.mxu0
      %v1378 = vadd.f32 0.0, %v1377
      %1379 = vmatmul.bf16.gmra.mxu0 %v1313
      %v1380 = vpop.f32.mrf.mxu0
      %v1381 = vadd.f32 0.0, %v1380
      %v1382 = vpop.f32.mrf.mxu0
      %v1383 = vadd.f32 0.0, %v1382
      %1384 = vmatmul.bf16.gmra.mxu0 %v1316
      %v1385 = vpop.f32.mrf.mxu0
      %v1386 = vadd.f32 0.0, %v1385
      %v1387 = vpop.f32.mrf.mxu0
      %v1388 = vadd.f32 0.0, %v1387
      %1389 = vmatmul.bf16.gmra.mxu0 %v1319
      %v1390 = vpop.f32.mrf.mxu0
      %v1391 = vadd.f32 0.0, %v1390
      %v1392 = vpop.f32.mrf.mxu0
      %v1393 = vadd.f32 0.0, %v1392
      %1394 = vmatmul.bf16.gmra.mxu0 %v1322
      %v1395 = vpop.f32.mrf.mxu0
      %v1396 = vadd.f32 0.0, %v1395
      %v1397 = vpop.f32.mrf.mxu0
      %v1398 = vadd.f32 0.0, %v1397
      %1399 = vmatmul.bf16.gmra.mxu0 %v1325
      %v1400 = vpop.f32.mrf.mxu0
      %v1401 = vadd.f32 0.0, %v1400
      %v1402 = vpop.f32.mrf.mxu0
      %v1403 = vadd.f32 0.0, %v1402
      %1404 = vmatmul.bf16.gmra.mxu0 %v1328
      %v1405 = vpop.f32.mrf.mxu0
      %v1406 = vadd.f32 0.0, %v1405
      %v1407 = vpop.f32.mrf.mxu0
      %v1408 = vadd.f32 0.0, %v1407
      %1409 = vmatmul.bf16.gmra.mxu0 %v1331
      %v1410 = vpop.f32.mrf.mxu0
      %v1411 = vadd.f32 0.0, %v1410
      %v1412 = vpop.f32.mrf.mxu0
      %v1413 = vadd.f32 0.0, %v1412
      %1414 = vmatmul.bf16.gmra.mxu0 %v1334
      %v1415 = vpop.f32.mrf.mxu0
      %v1416 = vadd.f32 0.0, %v1415
      %v1417 = vpop.f32.mrf.mxu0
      %v1418 = vadd.f32 0.0, %v1417
      %1419 = vmatmul.bf16.gmra.mxu0 %v1337
      %v1420 = vpop.f32.mrf.mxu0
      %v1421 = vadd.f32 0.0, %v1420
      %v1422 = vpop.f32.mrf.mxu0
      %v1423 = vadd.f32 0.0, %v1422
      %1424 = vmatmul.bf16.gmra.mxu0 %v1340
      %v1425 = vpop.f32.mrf.mxu0
      %v1426 = vadd.f32 0.0, %v1425
      %v1427 = vpop.f32.mrf.mxu0
      %v1428 = vadd.f32 0.0, %v1427
      %1429 = vmatmul.bf16.gmra.mxu0 %v1343
      %v1430 = vpop.f32.mrf.mxu0
      %v1431 = vadd.f32 0.0, %v1430
      %v1432 = vpop.f32.mrf.mxu0
      %v1433 = vadd.f32 0.0, %v1432
      %1434 = vmatmul.bf16.gmra.mxu0 %v1346
      %v1435 = vpop.f32.mrf.mxu0
      %v1436 = vadd.f32 0.0, %v1435
      %v1437 = vpop.f32.mrf.mxu0
      %v1438 = vadd.f32 0.0, %v1437
      %1439 = vdwg.mxu0
      %v1440 = vadd.f32 %v1218, %v1361
      %v1441 = vadd.f32 %v1219, %v1363
      %v1442 = vadd.f32 %v1220, %v1366
      %v1443 = vadd.f32 %v1221, %v1368
      %v1444 = vadd.f32 %v1222, %v1371
      %v1445 = vadd.f32 %v1223, %v1373
      %v1446 = vadd.f32 %v1224, %v1376
      %v1447 = vadd.f32 %v1225, %v1378
      %v1448 = vadd.f32 %v1226, %v1381
      %v1449 = vadd.f32 %v1227, %v1383
      %v1450 = vadd.f32 %v1228, %v1386
      %v1451 = vadd.f32 %v1229, %v1388
      %v1452 = vadd.f32 %v1230, %v1391
      %v1453 = vadd.f32 %v1231, %v1393
      %v1454 = vadd.f32 %v1232, %v1396
      %v1455 = vadd.f32 %v1233, %v1398
      %v1456 = vadd.f32 %v1234, %v1401
      %v1457 = vadd.f32 %v1235, %v1403
      %v1458 = vadd.f32 %v1236, %v1406
      %v1459 = vadd.f32 %v1237, %v1408
      %v1460 = vadd.f32 %v1238, %v1411
      %v1461 = vadd.f32 %v1239, %v1413
      %v1462 = vadd.f32 %v1240, %v1416
      %v1463 = vadd.f32 %v1241, %v1418
      %v1464 = vadd.f32 %v1242, %v1421
      %v1465 = vadd.f32 %v1243, %v1423
      %v1466 = vadd.f32 %v1244, %v1426
      %v1467 = vadd.f32 %v1245, %v1428
      %v1468 = vadd.f32 %v1246, %v1431
      %v1469 = vadd.f32 %v1247, %v1433
      %v1470 = vadd.f32 %v1248, %v1436
      %v1471 = vadd.f32 %v1249, %v1438
      %v1472 = vld [vmem:[%s616 + $0x1] sm:$0xff]
      %v1473 = vld [vmem:[%s616 + $0x9] sm:$0xff]
      %v1474 = vld [vmem:[%s616 + $0x19] sm:$0xff]
      %v1475 = vld [vmem:[%s616 + $0x21] sm:$0xff]
      %v1476 = vld [vmem:[%s616 + $0x31] sm:$0xff]
      %v1477 = vld [vmem:[%s616 + $0x39] sm:$0xff]
      %v1478 = vld [vmem:[%s616 + $0x49] sm:$0xff]
      %v1479 = vld [vmem:[%s616 + $0x51] sm:$0xff]
      %v1480 = vld [vmem:[%s616 + $0x61] sm:$0xff]
      %v1481 = vld [vmem:[%s616 + $0x69] sm:$0xff]
      %v1482 = vld [vmem:[%s616 + $0x79] sm:$0xff]
      %v1483 = vld [vmem:[%s616 + $0x81] sm:$0xff]
      %v1484 = vld [vmem:[%s616 + $0x91] sm:$0xff]
      %v1485 = vld [vmem:[%s616 + $0x99] sm:$0xff]
      %v1486 = vld [vmem:[%s616 + $0xa9] sm:$0xff]
      %v1487 = vld [vmem:[%s616 + $0xb1] sm:$0xff]
      %v1488 = vld [vmem:[%s616 + $0xc1] sm:$0xff]
      %v1489 = vld [vmem:[%s616 + $0xc9] sm:$0xff]
      %v1490 = vld [vmem:[%s616 + $0xd9] sm:$0xff]
      %v1491 = vld [vmem:[%s616 + $0xe1] sm:$0xff]
      %v1492 = vld [vmem:[%s616 + $0xf1] sm:$0xff]
      %v1493 = vld [vmem:[%s616 + $0xf9] sm:$0xff]
      %v1494 = vld [vmem:[%s616 + $0x109] sm:$0xff]
      %v1495 = vld [vmem:[%s616 + $0x111] sm:$0xff]
      %v1496 = vld [vmem:[%s616 + $0x121] sm:$0xff]
      %v1497 = vld [vmem:[%s616 + $0x129] sm:$0xff]
      %v1498 = vld [vmem:[%s616 + $0x139] sm:$0xff]
      %v1499 = vld [vmem:[%s616 + $0x141] sm:$0xff]
      %v1500 = vld [vmem:[%s616 + $0x151] sm:$0xff]
      %v1501 = vld [vmem:[%s616 + $0x159] sm:$0xff]
      %v1502 = vld [vmem:[%s616 + $0x169] sm:$0xff]
      %v1503 = vld [vmem:[%s616 + $0x171] sm:$0xff]
      %v1504 = vpack.c.bf16 %v1473, %v1472
      %v1505 = vpack.c.bf16 %v1475, %v1474
      %v1506 = vpack.c.bf16 %v1477, %v1476
      %v1507 = vpack.c.bf16 %v1479, %v1478
      %v1508 = vpack.c.bf16 %v1481, %v1480
      %v1509 = vpack.c.bf16 %v1483, %v1482
      %v1510 = vpack.c.bf16 %v1485, %v1484
      %v1511 = vpack.c.bf16 %v1487, %v1486
      %v1512 = vpack.c.bf16 %v1489, %v1488
      %v1513 = vpack.c.bf16 %v1491, %v1490
      %v1514 = vpack.c.bf16 %v1493, %v1492
      %v1515 = vpack.c.bf16 %v1495, %v1494
      %v1516 = vpack.c.bf16 %v1497, %v1496
      %v1517 = vpack.c.bf16 %v1499, %v1498
      %v1518 = vpack.c.bf16 %v1501, %v1500
      %v1519 = vpack.c.bf16 %v1503, %v1502
      %s1520 = scalar_lea.vmem %s3, 8
      %v1521 = vld [vmem:[%s1520] sm:$0x3]
      %v1523 = vsel %vm387, %v1504, 0
      %v1526 = vsel %vm387, %v1505, 0
      %v1529 = vsel %vm387, %v1506, 0
      %v1532 = vsel %vm387, %v1507, 0
      %v1535 = vsel %vm387, %v1508, 0
      %v1538 = vsel %vm387, %v1509, 0
      %v1541 = vsel %vm387, %v1510, 0
      %v1544 = vsel %vm387, %v1511, 0
      %v1547 = vsel %vm387, %v1512, 0
      %v1550 = vsel %vm387, %v1513, 0
      %v1553 = vsel %vm387, %v1514, 0
      %v1556 = vsel %vm387, %v1515, 0
      %v1559 = vsel %vm387, %v1516, 0
      %v1562 = vsel %vm387, %v1517, 0
      %v1565 = vsel %vm387, %v1518, 0
      %v1568 = vsel %vm387, %v1519, 0
      %v1571 = vsel %vm436, %v1521, 0
      %1573 = vmatpush.bf16.msra.mxu0 0
      %1574 = vmatpush.bf16.msra.mxu0 0
      %1575 = vmatpush.bf16.msra.mxu0 0
      %1576 = vmatpush.bf16.msra.mxu0 0
      %1577 = vmatpush.bf16.msra.mxu0 0
      %1578 = vmatpush.bf16.msra.mxu0 0
      %1579 = vmatpush.bf16.msra.mxu0 0
      %1580 = vmatpush.bf16.msra.mxu0 %v1571
      %1581 = vmatmul.bf16.gmra.mxu0 %v1523
      %v1582 = vpop.f32.mrf.mxu0
      %v1583 = vadd.f32 0.0, %v1582
      %v1584 = vpop.f32.mrf.mxu0
      %v1585 = vadd.f32 0.0, %v1584
      %1586 = vmatmul.bf16.gmra.mxu0 %v1526
      %v1587 = vpop.f32.mrf.mxu0
      %v1588 = vadd.f32 0.0, %v1587
      %v1589 = vpop.f32.mrf.mxu0
      %v1590 = vadd.f32 0.0, %v1589
      %1591 = vmatmul.bf16.gmra.mxu0 %v1529
      %v1592 = vpop.f32.mrf.mxu0
      %v1593 = vadd.f32 0.0, %v1592
      %v1594 = vpop.f32.mrf.mxu0
      %v1595 = vadd.f32 0.0, %v1594
      %1596 = vmatmul.bf16.gmra.mxu0 %v1532
      %v1597 = vpop.f32.mrf.mxu0
      %v1598 = vadd.f32 0.0, %v1597
      %v1599 = vpop.f32.mrf.mxu0
      %v1600 = vadd.f32 0.0, %v1599
      %1601 = vmatmul.bf16.gmra.mxu0 %v1535
      %v1602 = vpop.f32.mrf.mxu0
      %v1603 = vadd.f32 0.0, %v1602
      %v1604 = vpop.f32.mrf.mxu0
      %v1605 = vadd.f32 0.0, %v1604
      %1606 = vmatmul.bf16.gmra.mxu0 %v1538
      %v1607 = vpop.f32.mrf.mxu0
      %v1608 = vadd.f32 0.0, %v1607
      %v1609 = vpop.f32.mrf.mxu0
      %v1610 = vadd.f32 0.0, %v1609
      %1611 = vmatmul.bf16.gmra.mxu0 %v1541
      %v1612 = vpop.f32.mrf.mxu0
      %v1613 = vadd.f32 0.0, %v1612
      %v1614 = vpop.f32.mrf.mxu0
      %v1615 = vadd.f32 0.0, %v1614
      %1616 = vmatmul.bf16.gmra.mxu0 %v1544
      %v1617 = vpop.f32.mrf.mxu0
      %v1618 = vadd.f32 0.0, %v1617
      %v1619 = vpop.f32.mrf.mxu0
      %v1620 = vadd.f32 0.0, %v1619
      %1621 = vmatmul.bf16.gmra.mxu0 %v1547
      %v1622 = vpop.f32.mrf.mxu0
      %v1623 = vadd.f32 0.0, %v1622
      %v1624 = vpop.f32.mrf.mxu0
      %v1625 = vadd.f32 0.0, %v1624
      %1626 = vmatmul.bf16.gmra.mxu0 %v1550
      %v1627 = vpop.f32.mrf.mxu0
      %v1628 = vadd.f32 0.0, %v1627
      %v1629 = vpop.f32.mrf.mxu0
      %v1630 = vadd.f32 0.0, %v1629
      %1631 = vmatmul.bf16.gmra.mxu0 %v1553
      %v1632 = vpop.f32.mrf.mxu0
      %v1633 = vadd.f32 0.0, %v1632
      %v1634 = vpop.f32.mrf.mxu0
      %v1635 = vadd.f32 0.0, %v1634
      %1636 = vmatmul.bf16.gmra.mxu0 %v1556
      %v1637 = vpop.f32.mrf.mxu0
      %v1638 = vadd.f32 0.0, %v1637
      %v1639 = vpop.f32.mrf.mxu0
      %v1640 = vadd.f32 0.0, %v1639
      %1641 = vmatmul.bf16.gmra.mxu0 %v1559
      %v1642 = vpop.f32.mrf.mxu0
      %v1643 = vadd.f32 0.0, %v1642
      %v1644 = vpop.f32.mrf.mxu0
      %v1645 = vadd.f32 0.0, %v1644
      %1646 = vmatmul.bf16.gmra.mxu0 %v1562
      %v1647 = vpop.f32.mrf.mxu0
      %v1648 = vadd.f32 0.0, %v1647
      %v1649 = vpop.f32.mrf.mxu0
      %v1650 = vadd.f32 0.0, %v1649
      %1651 = vmatmul.bf16.gmra.mxu0 %v1565
      %v1652 = vpop.f32.mrf.mxu0
      %v1653 = vadd.f32 0.0, %v1652
      %v1654 = vpop.f32.mrf.mxu0
      %v1655 = vadd.f32 0.0, %v1654
      %1656 = vmatmul.bf16.gmra.mxu0 %v1568
      %v1657 = vpop.f32.mrf.mxu0
      %v1658 = vadd.f32 0.0, %v1657
      %v1659 = vpop.f32.mrf.mxu0
      %v1660 = vadd.f32 0.0, %v1659
      %1661 = vdwg.mxu0
      %v1662 = vadd.f32 %v1440, %v1583
      %v1663 = vadd.f32 %v1441, %v1585
      %v1664 = vadd.f32 %v1442, %v1588
      %v1665 = vadd.f32 %v1443, %v1590
      %v1666 = vadd.f32 %v1444, %v1593
      %v1667 = vadd.f32 %v1445, %v1595
      %v1668 = vadd.f32 %v1446, %v1598
      %v1669 = vadd.f32 %v1447, %v1600
      %v1670 = vadd.f32 %v1448, %v1603
      %v1671 = vadd.f32 %v1449, %v1605
      %v1672 = vadd.f32 %v1450, %v1608
      %v1673 = vadd.f32 %v1451, %v1610
      %v1674 = vadd.f32 %v1452, %v1613
      %v1675 = vadd.f32 %v1453, %v1615
      %v1676 = vadd.f32 %v1454, %v1618
      %v1677 = vadd.f32 %v1455, %v1620
      %v1678 = vadd.f32 %v1456, %v1623
      %v1679 = vadd.f32 %v1457, %v1625
      %v1680 = vadd.f32 %v1458, %v1628
      %v1681 = vadd.f32 %v1459, %v1630
      %v1682 = vadd.f32 %v1460, %v1633
      %v1683 = vadd.f32 %v1461, %v1635
      %v1684 = vadd.f32 %v1462, %v1638
      %v1685 = vadd.f32 %v1463, %v1640
      %v1686 = vadd.f32 %v1464, %v1643
      %v1687 = vadd.f32 %v1465, %v1645
      %v1688 = vadd.f32 %v1466, %v1648
      %v1689 = vadd.f32 %v1467, %v1650
      %v1690 = vadd.f32 %v1468, %v1653
      %v1691 = vadd.f32 %v1469, %v1655
      %v1692 = vadd.f32 %v1470, %v1658
      %v1693 = vadd.f32 %v1471, %v1660
      %v1694 = vld [vmem:[%s616 + $0x2] sm:$0xff]
      %v1695 = vld [vmem:[%s616 + $0xa] sm:$0xff]
      %v1696 = vld [vmem:[%s616 + $0x1a] sm:$0xff]
      %v1697 = vld [vmem:[%s616 + $0x22] sm:$0xff]
      %v1698 = vld [vmem:[%s616 + $0x32] sm:$0xff]
      %v1699 = vld [vmem:[%s616 + $0x3a] sm:$0xff]
      %v1700 = vld [vmem:[%s616 + $0x4a] sm:$0xff]
      %v1701 = vld [vmem:[%s616 + $0x52] sm:$0xff]
      %v1702 = vld [vmem:[%s616 + $0x62] sm:$0xff]
      %v1703 = vld [vmem:[%s616 + $0x6a] sm:$0xff]
      %v1704 = vld [vmem:[%s616 + $0x7a] sm:$0xff]
      %v1705 = vld [vmem:[%s616 + $0x82] sm:$0xff]
      %v1706 = vld [vmem:[%s616 + $0x92] sm:$0xff]
      %v1707 = vld [vmem:[%s616 + $0x9a] sm:$0xff]
      %v1708 = vld [vmem:[%s616 + $0xaa] sm:$0xff]
      %v1709 = vld [vmem:[%s616 + $0xb2] sm:$0xff]
      %v1710 = vld [vmem:[%s616 + $0xc2] sm:$0xff]
      %v1711 = vld [vmem:[%s616 + $0xca] sm:$0xff]
      %v1712 = vld [vmem:[%s616 + $0xda] sm:$0xff]
      %v1713 = vld [vmem:[%s616 + $0xe2] sm:$0xff]
      %v1714 = vld [vmem:[%s616 + $0xf2] sm:$0xff]
      %v1715 = vld [vmem:[%s616 + $0xfa] sm:$0xff]
      %v1716 = vld [vmem:[%s616 + $0x10a] sm:$0xff]
      %v1717 = vld [vmem:[%s616 + $0x112] sm:$0xff]
      %v1718 = vld [vmem:[%s616 + $0x122] sm:$0xff]
      %v1719 = vld [vmem:[%s616 + $0x12a] sm:$0xff]
      %v1720 = vld [vmem:[%s616 + $0x13a] sm:$0xff]
      %v1721 = vld [vmem:[%s616 + $0x142] sm:$0xff]
      %v1722 = vld [vmem:[%s616 + $0x152] sm:$0xff]
      %v1723 = vld [vmem:[%s616 + $0x15a] sm:$0xff]
      %v1724 = vld [vmem:[%s616 + $0x16a] sm:$0xff]
      %v1725 = vld [vmem:[%s616 + $0x172] sm:$0xff]
      %v1726 = vpack.c.bf16 %v1695, %v1694
      %v1727 = vpack.c.bf16 %v1697, %v1696
      %v1728 = vpack.c.bf16 %v1699, %v1698
      %v1729 = vpack.c.bf16 %v1701, %v1700
      %v1730 = vpack.c.bf16 %v1703, %v1702
      %v1731 = vpack.c.bf16 %v1705, %v1704
      %v1732 = vpack.c.bf16 %v1707, %v1706
      %v1733 = vpack.c.bf16 %v1709, %v1708
      %v1734 = vpack.c.bf16 %v1711, %v1710
      %v1735 = vpack.c.bf16 %v1713, %v1712
      %v1736 = vpack.c.bf16 %v1715, %v1714
      %v1737 = vpack.c.bf16 %v1717, %v1716
      %v1738 = vpack.c.bf16 %v1719, %v1718
      %v1739 = vpack.c.bf16 %v1721, %v1720
      %v1740 = vpack.c.bf16 %v1723, %v1722
      %v1741 = vpack.c.bf16 %v1725, %v1724
      %s1742 = scalar_lea.vmem %s3, 10
      %v1743 = vld [vmem:[%s1742] sm:$0x3]
      %v1745 = vsel %vm387, %v1726, 0
      %v1748 = vsel %vm387, %v1727, 0
      %v1751 = vsel %vm387, %v1728, 0
      %v1754 = vsel %vm387, %v1729, 0
      %v1757 = vsel %vm387, %v1730, 0
      %v1760 = vsel %vm387, %v1731, 0
      %v1763 = vsel %vm387, %v1732, 0
      %v1766 = vsel %vm387, %v1733, 0
      %v1769 = vsel %vm387, %v1734, 0
      %v1772 = vsel %vm387, %v1735, 0
      %v1775 = vsel %vm387, %v1736, 0
      %v1778 = vsel %vm387, %v1737, 0
      %v1781 = vsel %vm387, %v1738, 0
      %v1784 = vsel %vm387, %v1739, 0
      %v1787 = vsel %vm387, %v1740, 0
      %v1790 = vsel %vm387, %v1741, 0
      %v1793 = vsel %vm436, %v1743, 0
      %1795 = vmatpush.bf16.msra.mxu0 0
      %1796 = vmatpush.bf16.msra.mxu0 0
      %1797 = vmatpush.bf16.msra.mxu0 0
      %1798 = vmatpush.bf16.msra.mxu0 0
      %1799 = vmatpush.bf16.msra.mxu0 0
      %1800 = vmatpush.bf16.msra.mxu0 0
      %1801 = vmatpush.bf16.msra.mxu0 0
      %1802 = vmatpush.bf16.msra.mxu0 %v1793
      %1803 = vmatmul.bf16.gmra.mxu0 %v1745
      %v1804 = vpop.f32.mrf.mxu0
      %v1805 = vadd.f32 0.0, %v1804
      %v1806 = vpop.f32.mrf.mxu0
      %v1807 = vadd.f32 0.0, %v1806
      %1808 = vmatmul.bf16.gmra.mxu0 %v1748
      %v1809 = vpop.f32.mrf.mxu0
      %v1810 = vadd.f32 0.0, %v1809
      %v1811 = vpop.f32.mrf.mxu0
      %v1812 = vadd.f32 0.0, %v1811
      %1813 = vmatmul.bf16.gmra.mxu0 %v1751
      %v1814 = vpop.f32.mrf.mxu0
      %v1815 = vadd.f32 0.0, %v1814
      %v1816 = vpop.f32.mrf.mxu0
      %v1817 = vadd.f32 0.0, %v1816
      %1818 = vmatmul.bf16.gmra.mxu0 %v1754
      %v1819 = vpop.f32.mrf.mxu0
      %v1820 = vadd.f32 0.0, %v1819
      %v1821 = vpop.f32.mrf.mxu0
      %v1822 = vadd.f32 0.0, %v1821
      %1823 = vmatmul.bf16.gmra.mxu0 %v1757
      %v1824 = vpop.f32.mrf.mxu0
      %v1825 = vadd.f32 0.0, %v1824
      %v1826 = vpop.f32.mrf.mxu0
      %v1827 = vadd.f32 0.0, %v1826
      %1828 = vmatmul.bf16.gmra.mxu0 %v1760
      %v1829 = vpop.f32.mrf.mxu0
      %v1830 = vadd.f32 0.0, %v1829
      %v1831 = vpop.f32.mrf.mxu0
      %v1832 = vadd.f32 0.0, %v1831
      %1833 = vmatmul.bf16.gmra.mxu0 %v1763
      %v1834 = vpop.f32.mrf.mxu0
      %v1835 = vadd.f32 0.0, %v1834
      %v1836 = vpop.f32.mrf.mxu0
      %v1837 = vadd.f32 0.0, %v1836
      %1838 = vmatmul.bf16.gmra.mxu0 %v1766
      %v1839 = vpop.f32.mrf.mxu0
      %v1840 = vadd.f32 0.0, %v1839
      %v1841 = vpop.f32.mrf.mxu0
      %v1842 = vadd.f32 0.0, %v1841
      %1843 = vmatmul.bf16.gmra.mxu0 %v1769
      %v1844 = vpop.f32.mrf.mxu0
      %v1845 = vadd.f32 0.0, %v1844
      %v1846 = vpop.f32.mrf.mxu0
      %v1847 = vadd.f32 0.0, %v1846
      %1848 = vmatmul.bf16.gmra.mxu0 %v1772
      %v1849 = vpop.f32.mrf.mxu0
      %v1850 = vadd.f32 0.0, %v1849
      %v1851 = vpop.f32.mrf.mxu0
      %v1852 = vadd.f32 0.0, %v1851
      %1853 = vmatmul.bf16.gmra.mxu0 %v1775
      %v1854 = vpop.f32.mrf.mxu0
      %v1855 = vadd.f32 0.0, %v1854
      %v1856 = vpop.f32.mrf.mxu0
      %v1857 = vadd.f32 0.0, %v1856
      %1858 = vmatmul.bf16.gmra.mxu0 %v1778
      %v1859 = vpop.f32.mrf.mxu0
      %v1860 = vadd.f32 0.0, %v1859
      %v1861 = vpop.f32.mrf.mxu0
      %v1862 = vadd.f32 0.0, %v1861
      %1863 = vmatmul.bf16.gmra.mxu0 %v1781
      %v1864 = vpop.f32.mrf.mxu0
      %v1865 = vadd.f32 0.0, %v1864
      %v1866 = vpop.f32.mrf.mxu0
      %v1867 = vadd.f32 0.0, %v1866
      %1868 = vmatmul.bf16.gmra.mxu0 %v1784
      %v1869 = vpop.f32.mrf.mxu0
      %v1870 = vadd.f32 0.0, %v1869
      %v1871 = vpop.f32.mrf.mxu0
      %v1872 = vadd.f32 0.0, %v1871
      %1873 = vmatmul.bf16.gmra.mxu0 %v1787
      %v1874 = vpop.f32.mrf.mxu0
      %v1875 = vadd.f32 0.0, %v1874
      %v1876 = vpop.f32.mrf.mxu0
      %v1877 = vadd.f32 0.0, %v1876
      %1878 = vmatmul.bf16.gmra.mxu0 %v1790
      %v1879 = vpop.f32.mrf.mxu0
      %v1880 = vadd.f32 0.0, %v1879
      %v1881 = vpop.f32.mrf.mxu0
      %v1882 = vadd.f32 0.0, %v1881
      %1883 = vdwg.mxu0
      %v1884 = vadd.f32 %v1662, %v1805
      %v1885 = vadd.f32 %v1663, %v1807
      %v1886 = vadd.f32 %v1664, %v1810
      %v1887 = vadd.f32 %v1665, %v1812
      %v1888 = vadd.f32 %v1666, %v1815
      %v1889 = vadd.f32 %v1667, %v1817
      %v1890 = vadd.f32 %v1668, %v1820
      %v1891 = vadd.f32 %v1669, %v1822
      %v1892 = vadd.f32 %v1670, %v1825
      %v1893 = vadd.f32 %v1671, %v1827
      %v1894 = vadd.f32 %v1672, %v1830
      %v1895 = vadd.f32 %v1673, %v1832
      %v1896 = vadd.f32 %v1674, %v1835
      %v1897 = vadd.f32 %v1675, %v1837
      %v1898 = vadd.f32 %v1676, %v1840
      %v1899 = vadd.f32 %v1677, %v1842
      %v1900 = vadd.f32 %v1678, %v1845
      %v1901 = vadd.f32 %v1679, %v1847
      %v1902 = vadd.f32 %v1680, %v1850
      %v1903 = vadd.f32 %v1681, %v1852
      %v1904 = vadd.f32 %v1682, %v1855
      %v1905 = vadd.f32 %v1683, %v1857
      %v1906 = vadd.f32 %v1684, %v1860
      %v1907 = vadd.f32 %v1685, %v1862
      %v1908 = vadd.f32 %v1686, %v1865
      %v1909 = vadd.f32 %v1687, %v1867
      %v1910 = vadd.f32 %v1688, %v1870
      %v1911 = vadd.f32 %v1689, %v1872
      %v1912 = vadd.f32 %v1690, %v1875
      %v1913 = vadd.f32 %v1691, %v1877
      %v1914 = vadd.f32 %v1692, %v1880
      %v1915 = vadd.f32 %v1693, %v1882
      %s1916 = scalar_lea.vmem [#allocation2], 48
      %v1917 = vld [vmem:[%s1916] sm:$0xff]
      %v1918 = vld [vmem:[%s1916 + $0x8] sm:$0xff]
      %v1919 = vld [vmem:[%s1916 + $0x18] sm:$0xff]
      %v1920 = vld [vmem:[%s1916 + $0x20] sm:$0xff]
      %v1921 = vld [vmem:[%s1916 + $0x30] sm:$0xff]
      %v1922 = vld [vmem:[%s1916 + $0x38] sm:$0xff]
      %v1923 = vld [vmem:[%s1916 + $0x48] sm:$0xff]
      %v1924 = vld [vmem:[%s1916 + $0x50] sm:$0xff]
      %v1925 = vld [vmem:[%s1916 + $0x60] sm:$0xff]
      %v1926 = vld [vmem:[%s1916 + $0x68] sm:$0xff]
      %v1927 = vld [vmem:[%s1916 + $0x78] sm:$0xff]
      %v1928 = vld [vmem:[%s1916 + $0x80] sm:$0xff]
      %v1929 = vld [vmem:[%s1916 + $0x90] sm:$0xff]
      %v1930 = vld [vmem:[%s1916 + $0x98] sm:$0xff]
      %v1931 = vld [vmem:[%s1916 + $0xa8] sm:$0xff]
      %v1932 = vld [vmem:[%s1916 + $0xb0] sm:$0xff]
      %v1933 = vld [vmem:[%s1916 + $0xc0] sm:$0xff]
      %v1934 = vld [vmem:[%s1916 + $0xc8] sm:$0xff]
      %v1935 = vld [vmem:[%s1916 + $0xd8] sm:$0xff]
      %v1936 = vld [vmem:[%s1916 + $0xe0] sm:$0xff]
      %v1937 = vld [vmem:[%s1916 + $0xf0] sm:$0xff]
      %v1938 = vld [vmem:[%s1916 + $0xf8] sm:$0xff]
      %v1939 = vld [vmem:[%s1916 + $0x108] sm:$0xff]
      %v1940 = vld [vmem:[%s1916 + $0x110] sm:$0xff]
      %v1941 = vld [vmem:[%s1916 + $0x120] sm:$0xff]
      %v1942 = vld [vmem:[%s1916 + $0x128] sm:$0xff]
      %v1943 = vld [vmem:[%s1916 + $0x138] sm:$0xff]
      %v1944 = vld [vmem:[%s1916 + $0x140] sm:$0xff]
      %v1945 = vld [vmem:[%s1916 + $0x150] sm:$0xff]
      %v1946 = vld [vmem:[%s1916 + $0x158] sm:$0xff]
      %v1947 = vld [vmem:[%s1916 + $0x168] sm:$0xff]
      %v1948 = vld [vmem:[%s1916 + $0x170] sm:$0xff]
      %v1949 = vpack.c.bf16 %v1918, %v1917
      %v1950 = vpack.c.bf16 %v1920, %v1919
      %v1951 = vpack.c.bf16 %v1922, %v1921
      %v1952 = vpack.c.bf16 %v1924, %v1923
      %v1953 = vpack.c.bf16 %v1926, %v1925
      %v1954 = vpack.c.bf16 %v1928, %v1927
      %v1955 = vpack.c.bf16 %v1930, %v1929
      %v1956 = vpack.c.bf16 %v1932, %v1931
      %v1957 = vpack.c.bf16 %v1934, %v1933
      %v1958 = vpack.c.bf16 %v1936, %v1935
      %v1959 = vpack.c.bf16 %v1938, %v1937
      %v1960 = vpack.c.bf16 %v1940, %v1939
      %v1961 = vpack.c.bf16 %v1942, %v1941
      %v1962 = vpack.c.bf16 %v1944, %v1943
      %v1963 = vpack.c.bf16 %v1946, %v1945
      %v1964 = vpack.c.bf16 %v1948, %v1947
      %s1965 = scalar_lea.vmem %s3, 12
      %v1966 = vld [vmem:[%s1965] sm:$0x3]
      %v1968 = vsel %vm387, %v1949, 0
      %v1971 = vsel %vm387, %v1950, 0
      %v1974 = vsel %vm387, %v1951, 0
      %v1977 = vsel %vm387, %v1952, 0
      %v1980 = vsel %vm387, %v1953, 0
      %v1983 = vsel %vm387, %v1954, 0
      %v1986 = vsel %vm387, %v1955, 0
      %v1989 = vsel %vm387, %v1956, 0
      %v1992 = vsel %vm387, %v1957, 0
      %v1995 = vsel %vm387, %v1958, 0
      %v1998 = vsel %vm387, %v1959, 0
      %v2001 = vsel %vm387, %v1960, 0
      %v2004 = vsel %vm387, %v1961, 0
      %v2007 = vsel %vm387, %v1962, 0
      %v2010 = vsel %vm387, %v1963, 0
      %v2013 = vsel %vm387, %v1964, 0
      %v2016 = vsel %vm436, %v1966, 0
      %2018 = vmatpush.bf16.msra.mxu0 0
      %2019 = vmatpush.bf16.msra.mxu0 0
      %2020 = vmatpush.bf16.msra.mxu0 0
      %2021 = vmatpush.bf16.msra.mxu0 0
      %2022 = vmatpush.bf16.msra.mxu0 0
      %2023 = vmatpush.bf16.msra.mxu0 0
      %2024 = vmatpush.bf16.msra.mxu0 0
      %2025 = vmatpush.bf16.msra.mxu0 %v2016
      %2026 = vmatmul.bf16.gmra.mxu0 %v1968
      %v2027 = vpop.f32.mrf.mxu0
      %v2028 = vadd.f32 0.0, %v2027
      %v2029 = vpop.f32.mrf.mxu0
      %v2030 = vadd.f32 0.0, %v2029
      %2031 = vmatmul.bf16.gmra.mxu0 %v1971
      %v2032 = vpop.f32.mrf.mxu0
      %v2033 = vadd.f32 0.0, %v2032
      %v2034 = vpop.f32.mrf.mxu0
      %v2035 = vadd.f32 0.0, %v2034
      %2036 = vmatmul.bf16.gmra.mxu0 %v1974
      %v2037 = vpop.f32.mrf.mxu0
      %v2038 = vadd.f32 0.0, %v2037
      %v2039 = vpop.f32.mrf.mxu0
      %v2040 = vadd.f32 0.0, %v2039
      %2041 = vmatmul.bf16.gmra.mxu0 %v1977
      %v2042 = vpop.f32.mrf.mxu0
      %v2043 = vadd.f32 0.0, %v2042
      %v2044 = vpop.f32.mrf.mxu0
      %v2045 = vadd.f32 0.0, %v2044
      %2046 = vmatmul.bf16.gmra.mxu0 %v1980
      %v2047 = vpop.f32.mrf.mxu0
      %v2048 = vadd.f32 0.0, %v2047
      %v2049 = vpop.f32.mrf.mxu0
      %v2050 = vadd.f32 0.0, %v2049
      %2051 = vmatmul.bf16.gmra.mxu0 %v1983
      %v2052 = vpop.f32.mrf.mxu0
      %v2053 = vadd.f32 0.0, %v2052
      %v2054 = vpop.f32.mrf.mxu0
      %v2055 = vadd.f32 0.0, %v2054
      %2056 = vmatmul.bf16.gmra.mxu0 %v1986
      %v2057 = vpop.f32.mrf.mxu0
      %v2058 = vadd.f32 0.0, %v2057
      %v2059 = vpop.f32.mrf.mxu0
      %v2060 = vadd.f32 0.0, %v2059
      %2061 = vmatmul.bf16.gmra.mxu0 %v1989
      %v2062 = vpop.f32.mrf.mxu0
      %v2063 = vadd.f32 0.0, %v2062
      %v2064 = vpop.f32.mrf.mxu0
      %v2065 = vadd.f32 0.0, %v2064
      %2066 = vmatmul.bf16.gmra.mxu0 %v1992
      %v2067 = vpop.f32.mrf.mxu0
      %v2068 = vadd.f32 0.0, %v2067
      %v2069 = vpop.f32.mrf.mxu0
      %v2070 = vadd.f32 0.0, %v2069
      %2071 = vmatmul.bf16.gmra.mxu0 %v1995
      %v2072 = vpop.f32.mrf.mxu0
      %v2073 = vadd.f32 0.0, %v2072
      %v2074 = vpop.f32.mrf.mxu0
      %v2075 = vadd.f32 0.0, %v2074
      %2076 = vmatmul.bf16.gmra.mxu0 %v1998
      %v2077 = vpop.f32.mrf.mxu0
      %v2078 = vadd.f32 0.0, %v2077
      %v2079 = vpop.f32.mrf.mxu0
      %v2080 = vadd.f32 0.0, %v2079
      %2081 = vmatmul.bf16.gmra.mxu0 %v2001
      %v2082 = vpop.f32.mrf.mxu0
      %v2083 = vadd.f32 0.0, %v2082
      %v2084 = vpop.f32.mrf.mxu0
      %v2085 = vadd.f32 0.0, %v2084
      %2086 = vmatmul.bf16.gmra.mxu0 %v2004
      %v2087 = vpop.f32.mrf.mxu0
      %v2088 = vadd.f32 0.0, %v2087
      %v2089 = vpop.f32.mrf.mxu0
      %v2090 = vadd.f32 0.0, %v2089
      %2091 = vmatmul.bf16.gmra.mxu0 %v2007
      %v2092 = vpop.f32.mrf.mxu0
      %v2093 = vadd.f32 0.0, %v2092
      %v2094 = vpop.f32.mrf.mxu0
      %v2095 = vadd.f32 0.0, %v2094
      %2096 = vmatmul.bf16.gmra.mxu0 %v2010
      %v2097 = vpop.f32.mrf.mxu0
      %v2098 = vadd.f32 0.0, %v2097
      %v2099 = vpop.f32.mrf.mxu0
      %v2100 = vadd.f32 0.0, %v2099
      %2101 = vmatmul.bf16.gmra.mxu0 %v2013
      %v2102 = vpop.f32.mrf.mxu0
      %v2103 = vadd.f32 0.0, %v2102
      %v2104 = vpop.f32.mrf.mxu0
      %v2105 = vadd.f32 0.0, %v2104
      %2106 = vdwg.mxu0
      %v2107 = vadd.f32 %v1884, %v2028
      %v2108 = vadd.f32 %v1885, %v2030
      %v2109 = vadd.f32 %v1886, %v2033
      %v2110 = vadd.f32 %v1887, %v2035
      %v2111 = vadd.f32 %v1888, %v2038
      %v2112 = vadd.f32 %v1889, %v2040
      %v2113 = vadd.f32 %v1890, %v2043
      %v2114 = vadd.f32 %v1891, %v2045
      %v2115 = vadd.f32 %v1892, %v2048
      %v2116 = vadd.f32 %v1893, %v2050
      %v2117 = vadd.f32 %v1894, %v2053
      %v2118 = vadd.f32 %v1895, %v2055
      %v2119 = vadd.f32 %v1896, %v2058
      %v2120 = vadd.f32 %v1897, %v2060
      %v2121 = vadd.f32 %v1898, %v2063
      %v2122 = vadd.f32 %v1899, %v2065
      %v2123 = vadd.f32 %v1900, %v2068
      %v2124 = vadd.f32 %v1901, %v2070
      %v2125 = vadd.f32 %v1902, %v2073
      %v2126 = vadd.f32 %v1903, %v2075
      %v2127 = vadd.f32 %v1904, %v2078
      %v2128 = vadd.f32 %v1905, %v2080
      %v2129 = vadd.f32 %v1906, %v2083
      %v2130 = vadd.f32 %v1907, %v2085
      %v2131 = vadd.f32 %v1908, %v2088
      %v2132 = vadd.f32 %v1909, %v2090
      %v2133 = vadd.f32 %v1910, %v2093
      %v2134 = vadd.f32 %v1911, %v2095
      %v2135 = vadd.f32 %v1912, %v2098
      %v2136 = vadd.f32 %v1913, %v2100
      %v2137 = vadd.f32 %v1914, %v2103
      %v2138 = vadd.f32 %v1915, %v2105
      %v2139 = vld [vmem:[%s1916 + $0x1] sm:$0xff]
      %v2140 = vld [vmem:[%s1916 + $0x9] sm:$0xff]
      %v2141 = vld [vmem:[%s1916 + $0x19] sm:$0xff]
      %v2142 = vld [vmem:[%s1916 + $0x21] sm:$0xff]
      %v2143 = vld [vmem:[%s1916 + $0x31] sm:$0xff]
      %v2144 = vld [vmem:[%s1916 + $0x39] sm:$0xff]
      %v2145 = vld [vmem:[%s1916 + $0x49] sm:$0xff]
      %v2146 = vld [vmem:[%s1916 + $0x51] sm:$0xff]
      %v2147 = vld [vmem:[%s1916 + $0x61] sm:$0xff]
      %v2148 = vld [vmem:[%s1916 + $0x69] sm:$0xff]
      %v2149 = vld [vmem:[%s1916 + $0x79] sm:$0xff]
      %v2150 = vld [vmem:[%s1916 + $0x81] sm:$0xff]
      %v2151 = vld [vmem:[%s1916 + $0x91] sm:$0xff]
      %v2152 = vld [vmem:[%s1916 + $0x99] sm:$0xff]
      %v2153 = vld [vmem:[%s1916 + $0xa9] sm:$0xff]
      %v2154 = vld [vmem:[%s1916 + $0xb1] sm:$0xff]
      %v2155 = vld [vmem:[%s1916 + $0xc1] sm:$0xff]
      %v2156 = vld [vmem:[%s1916 + $0xc9] sm:$0xff]
      %v2157 = vld [vmem:[%s1916 + $0xd9] sm:$0xff]
      %v2158 = vld [vmem:[%s1916 + $0xe1] sm:$0xff]
      %v2159 = vld [vmem:[%s1916 + $0xf1] sm:$0xff]
      %v2160 = vld [vmem:[%s1916 + $0xf9] sm:$0xff]
      %v2161 = vld [vmem:[%s1916 + $0x109] sm:$0xff]
      %v2162 = vld [vmem:[%s1916 + $0x111] sm:$0xff]
      %v2163 = vld [vmem:[%s1916 + $0x121] sm:$0xff]
      %v2164 = vld [vmem:[%s1916 + $0x129] sm:$0xff]
      %v2165 = vld [vmem:[%s1916 + $0x139] sm:$0xff]
      %v2166 = vld [vmem:[%s1916 + $0x141] sm:$0xff]
      %v2167 = vld [vmem:[%s1916 + $0x151] sm:$0xff]
      %v2168 = vld [vmem:[%s1916 + $0x159] sm:$0xff]
      %v2169 = vld [vmem:[%s1916 + $0x169] sm:$0xff]
      %v2170 = vld [vmem:[%s1916 + $0x171] sm:$0xff]
      %v2171 = vpack.c.bf16 %v2140, %v2139
      %v2172 = vpack.c.bf16 %v2142, %v2141
      %v2173 = vpack.c.bf16 %v2144, %v2143
      %v2174 = vpack.c.bf16 %v2146, %v2145
      %v2175 = vpack.c.bf16 %v2148, %v2147
      %v2176 = vpack.c.bf16 %v2150, %v2149
      %v2177 = vpack.c.bf16 %v2152, %v2151
      %v2178 = vpack.c.bf16 %v2154, %v2153
      %v2179 = vpack.c.bf16 %v2156, %v2155
      %v2180 = vpack.c.bf16 %v2158, %v2157
      %v2181 = vpack.c.bf16 %v2160, %v2159
      %v2182 = vpack.c.bf16 %v2162, %v2161
      %v2183 = vpack.c.bf16 %v2164, %v2163
      %v2184 = vpack.c.bf16 %v2166, %v2165
      %v2185 = vpack.c.bf16 %v2168, %v2167
      %v2186 = vpack.c.bf16 %v2170, %v2169
      %s2187 = scalar_lea.vmem %s3, 14
      %v2188 = vld [vmem:[%s2187] sm:$0x3]
      %v2190 = vsel %vm387, %v2171, 0
      %v2193 = vsel %vm387, %v2172, 0
      %v2196 = vsel %vm387, %v2173, 0
      %v2199 = vsel %vm387, %v2174, 0
      %v2202 = vsel %vm387, %v2175, 0
      %v2205 = vsel %vm387, %v2176, 0
      %v2208 = vsel %vm387, %v2177, 0
      %v2211 = vsel %vm387, %v2178, 0
      %v2214 = vsel %vm387, %v2179, 0
      %v2217 = vsel %vm387, %v2180, 0
      %v2220 = vsel %vm387, %v2181, 0
      %v2223 = vsel %vm387, %v2182, 0
      %v2226 = vsel %vm387, %v2183, 0
      %v2229 = vsel %vm387, %v2184, 0
      %v2232 = vsel %vm387, %v2185, 0
      %v2235 = vsel %vm387, %v2186, 0
      %v2238 = vsel %vm436, %v2188, 0
      %2240 = vmatpush.bf16.msra.mxu0 0
      %2241 = vmatpush.bf16.msra.mxu0 0
      %2242 = vmatpush.bf16.msra.mxu0 0
      %2243 = vmatpush.bf16.msra.mxu0 0
      %2244 = vmatpush.bf16.msra.mxu0 0
      %2245 = vmatpush.bf16.msra.mxu0 0
      %2246 = vmatpush.bf16.msra.mxu0 0
      %2247 = vmatpush.bf16.msra.mxu0 %v2238
      %2248 = vmatmul.bf16.gmra.mxu0 %v2190
      %v2249 = vpop.f32.mrf.mxu0
      %v2250 = vadd.f32 0.0, %v2249
      %v2251 = vpop.f32.mrf.mxu0
      %v2252 = vadd.f32 0.0, %v2251
      %2253 = vmatmul.bf16.gmra.mxu0 %v2193
      %v2254 = vpop.f32.mrf.mxu0
      %v2255 = vadd.f32 0.0, %v2254
      %v2256 = vpop.f32.mrf.mxu0
      %v2257 = vadd.f32 0.0, %v2256
      %2258 = vmatmul.bf16.gmra.mxu0 %v2196
      %v2259 = vpop.f32.mrf.mxu0
      %v2260 = vadd.f32 0.0, %v2259
      %v2261 = vpop.f32.mrf.mxu0
      %v2262 = vadd.f32 0.0, %v2261
      %2263 = vmatmul.bf16.gmra.mxu0 %v2199
      %v2264 = vpop.f32.mrf.mxu0
      %v2265 = vadd.f32 0.0, %v2264
      %v2266 = vpop.f32.mrf.mxu0
      %v2267 = vadd.f32 0.0, %v2266
      %2268 = vmatmul.bf16.gmra.mxu0 %v2202
      %v2269 = vpop.f32.mrf.mxu0
      %v2270 = vadd.f32 0.0, %v2269
      %v2271 = vpop.f32.mrf.mxu0
      %v2272 = vadd.f32 0.0, %v2271
      %2273 = vmatmul.bf16.gmra.mxu0 %v2205
      %v2274 = vpop.f32.mrf.mxu0
      %v2275 = vadd.f32 0.0, %v2274
      %v2276 = vpop.f32.mrf.mxu0
      %v2277 = vadd.f32 0.0, %v2276
      %2278 = vmatmul.bf16.gmra.mxu0 %v2208
      %v2279 = vpop.f32.mrf.mxu0
      %v2280 = vadd.f32 0.0, %v2279
      %v2281 = vpop.f32.mrf.mxu0
      %v2282 = vadd.f32 0.0, %v2281
      %2283 = vmatmul.bf16.gmra.mxu0 %v2211
      %v2284 = vpop.f32.mrf.mxu0
      %v2285 = vadd.f32 0.0, %v2284
      %v2286 = vpop.f32.mrf.mxu0
      %v2287 = vadd.f32 0.0, %v2286
      %2288 = vmatmul.bf16.gmra.mxu0 %v2214
      %v2289 = vpop.f32.mrf.mxu0
      %v2290 = vadd.f32 0.0, %v2289
      %v2291 = vpop.f32.mrf.mxu0
      %v2292 = vadd.f32 0.0, %v2291
      %2293 = vmatmul.bf16.gmra.mxu0 %v2217
      %v2294 = vpop.f32.mrf.mxu0
      %v2295 = vadd.f32 0.0, %v2294
      %v2296 = vpop.f32.mrf.mxu0
      %v2297 = vadd.f32 0.0, %v2296
      %2298 = vmatmul.bf16.gmra.mxu0 %v2220
      %v2299 = vpop.f32.mrf.mxu0
      %v2300 = vadd.f32 0.0, %v2299
      %v2301 = vpop.f32.mrf.mxu0
      %v2302 = vadd.f32 0.0, %v2301
      %2303 = vmatmul.bf16.gmra.mxu0 %v2223
      %v2304 = vpop.f32.mrf.mxu0
      %v2305 = vadd.f32 0.0, %v2304
      %v2306 = vpop.f32.mrf.mxu0
      %v2307 = vadd.f32 0.0, %v2306
      %2308 = vmatmul.bf16.gmra.mxu0 %v2226
      %v2309 = vpop.f32.mrf.mxu0
      %v2310 = vadd.f32 0.0, %v2309
      %v2311 = vpop.f32.mrf.mxu0
      %v2312 = vadd.f32 0.0, %v2311
      %2313 = vmatmul.bf16.gmra.mxu0 %v2229
      %v2314 = vpop.f32.mrf.mxu0
      %v2315 = vadd.f32 0.0, %v2314
      %v2316 = vpop.f32.mrf.mxu0
      %v2317 = vadd.f32 0.0, %v2316
      %2318 = vmatmul.bf16.gmra.mxu0 %v2232
      %v2319 = vpop.f32.mrf.mxu0
      %v2320 = vadd.f32 0.0, %v2319
      %v2321 = vpop.f32.mrf.mxu0
      %v2322 = vadd.f32 0.0, %v2321
      %2323 = vmatmul.bf16.gmra.mxu0 %v2235
      %v2324 = vpop.f32.mrf.mxu0
      %v2325 = vadd.f32 0.0, %v2324
      %v2326 = vpop.f32.mrf.mxu0
      %v2327 = vadd.f32 0.0, %v2326
      %2328 = vdwg.mxu0
      %v2329 = vadd.f32 %v2107, %v2250
      %v2330 = vadd.f32 %v2108, %v2252
      %v2331 = vadd.f32 %v2109, %v2255
      %v2332 = vadd.f32 %v2110, %v2257
      %v2333 = vadd.f32 %v2111, %v2260
      %v2334 = vadd.f32 %v2112, %v2262
      %v2335 = vadd.f32 %v2113, %v2265
      %v2336 = vadd.f32 %v2114, %v2267
      %v2337 = vadd.f32 %v2115, %v2270
      %v2338 = vadd.f32 %v2116, %v2272
      %v2339 = vadd.f32 %v2117, %v2275
      %v2340 = vadd.f32 %v2118, %v2277
      %v2341 = vadd.f32 %v2119, %v2280
      %v2342 = vadd.f32 %v2120, %v2282
      %v2343 = vadd.f32 %v2121, %v2285
      %v2344 = vadd.f32 %v2122, %v2287
      %v2345 = vadd.f32 %v2123, %v2290
      %v2346 = vadd.f32 %v2124, %v2292
      %v2347 = vadd.f32 %v2125, %v2295
      %v2348 = vadd.f32 %v2126, %v2297
      %v2349 = vadd.f32 %v2127, %v2300
      %v2350 = vadd.f32 %v2128, %v2302
      %v2351 = vadd.f32 %v2129, %v2305
      %v2352 = vadd.f32 %v2130, %v2307
      %v2353 = vadd.f32 %v2131, %v2310
      %v2354 = vadd.f32 %v2132, %v2312
      %v2355 = vadd.f32 %v2133, %v2315
      %v2356 = vadd.f32 %v2134, %v2317
      %v2357 = vadd.f32 %v2135, %v2320
      %v2358 = vadd.f32 %v2136, %v2322
      %v2359 = vadd.f32 %v2137, %v2325
      %v2360 = vadd.f32 %v2138, %v2327
      %v2361 = vld [vmem:[%s1916 + $0x2] sm:$0xff]
      %v2362 = vld [vmem:[%s1916 + $0xa] sm:$0xff]
      %v2363 = vld [vmem:[%s1916 + $0x1a] sm:$0xff]
      %v2364 = vld [vmem:[%s1916 + $0x22] sm:$0xff]
      %v2365 = vld [vmem:[%s1916 + $0x32] sm:$0xff]
      %v2366 = vld [vmem:[%s1916 + $0x3a] sm:$0xff]
      %v2367 = vld [vmem:[%s1916 + $0x4a] sm:$0xff]
      %v2368 = vld [vmem:[%s1916 + $0x52] sm:$0xff]
      %v2369 = vld [vmem:[%s1916 + $0x62] sm:$0xff]
      %v2370 = vld [vmem:[%s1916 + $0x6a] sm:$0xff]
      %v2371 = vld [vmem:[%s1916 + $0x7a] sm:$0xff]
      %v2372 = vld [vmem:[%s1916 + $0x82] sm:$0xff]
      %v2373 = vld [vmem:[%s1916 + $0x92] sm:$0xff]
      %v2374 = vld [vmem:[%s1916 + $0x9a] sm:$0xff]
      %v2375 = vld [vmem:[%s1916 + $0xaa] sm:$0xff]
      %v2376 = vld [vmem:[%s1916 + $0xb2] sm:$0xff]
      %v2377 = vld [vmem:[%s1916 + $0xc2] sm:$0xff]
      %v2378 = vld [vmem:[%s1916 + $0xca] sm:$0xff]
      %v2379 = vld [vmem:[%s1916 + $0xda] sm:$0xff]
      %v2380 = vld [vmem:[%s1916 + $0xe2] sm:$0xff]
      %v2381 = vld [vmem:[%s1916 + $0xf2] sm:$0xff]
      %v2382 = vld [vmem:[%s1916 + $0xfa] sm:$0xff]
      %v2383 = vld [vmem:[%s1916 + $0x10a] sm:$0xff]
      %v2384 = vld [vmem:[%s1916 + $0x112] sm:$0xff]
      %v2385 = vld [vmem:[%s1916 + $0x122] sm:$0xff]
      %v2386 = vld [vmem:[%s1916 + $0x12a] sm:$0xff]
      %v2387 = vld [vmem:[%s1916 + $0x13a] sm:$0xff]
      %v2388 = vld [vmem:[%s1916 + $0x142] sm:$0xff]
      %v2389 = vld [vmem:[%s1916 + $0x152] sm:$0xff]
      %v2390 = vld [vmem:[%s1916 + $0x15a] sm:$0xff]
      %v2391 = vld [vmem:[%s1916 + $0x16a] sm:$0xff]
      %v2392 = vld [vmem:[%s1916 + $0x172] sm:$0xff]
      %v2393 = vpack.c.bf16 %v2362, %v2361
      %v2394 = vpack.c.bf16 %v2364, %v2363
      %v2395 = vpack.c.bf16 %v2366, %v2365
      %v2396 = vpack.c.bf16 %v2368, %v2367
      %v2397 = vpack.c.bf16 %v2370, %v2369
      %v2398 = vpack.c.bf16 %v2372, %v2371
      %v2399 = vpack.c.bf16 %v2374, %v2373
      %v2400 = vpack.c.bf16 %v2376, %v2375
      %v2401 = vpack.c.bf16 %v2378, %v2377
      %v2402 = vpack.c.bf16 %v2380, %v2379
      %v2403 = vpack.c.bf16 %v2382, %v2381
      %v2404 = vpack.c.bf16 %v2384, %v2383
      %v2405 = vpack.c.bf16 %v2386, %v2385
      %v2406 = vpack.c.bf16 %v2388, %v2387
      %v2407 = vpack.c.bf16 %v2390, %v2389
      %v2408 = vpack.c.bf16 %v2392, %v2391
      %s2409 = scalar_lea.vmem %s3, 16
      %v2410 = vld [vmem:[%s2409] sm:$0x3]
      %v2412 = vsel %vm387, %v2393, 0
      %v2415 = vsel %vm387, %v2394, 0
      %v2418 = vsel %vm387, %v2395, 0
      %v2421 = vsel %vm387, %v2396, 0
      %v2424 = vsel %vm387, %v2397, 0
      %v2427 = vsel %vm387, %v2398, 0
      %v2430 = vsel %vm387, %v2399, 0
      %v2433 = vsel %vm387, %v2400, 0
      %v2436 = vsel %vm387, %v2401, 0
      %v2439 = vsel %vm387, %v2402, 0
      %v2442 = vsel %vm387, %v2403, 0
      %v2445 = vsel %vm387, %v2404, 0
      %v2448 = vsel %vm387, %v2405, 0
      %v2451 = vsel %vm387, %v2406, 0
      %v2454 = vsel %vm387, %v2407, 0
      %v2457 = vsel %vm387, %v2408, 0
      %v2460 = vsel %vm436, %v2410, 0
      %2462 = vmatpush.bf16.msra.mxu0 0
      %2463 = vmatpush.bf16.msra.mxu0 0
      %2464 = vmatpush.bf16.msra.mxu0 0
      %2465 = vmatpush.bf16.msra.mxu0 0
      %2466 = vmatpush.bf16.msra.mxu0 0
      %2467 = vmatpush.bf16.msra.mxu0 0
      %2468 = vmatpush.bf16.msra.mxu0 0
      %2469 = vmatpush.bf16.msra.mxu0 %v2460
      %2470 = vmatmul.bf16.gmra.mxu0 %v2412
      %v2471 = vpop.f32.mrf.mxu0
      %v2472 = vadd.f32 0.0, %v2471
      %v2473 = vpop.f32.mrf.mxu0
      %v2474 = vadd.f32 0.0, %v2473
      %2475 = vmatmul.bf16.gmra.mxu0 %v2415
      %v2476 = vpop.f32.mrf.mxu0
      %v2477 = vadd.f32 0.0, %v2476
      %v2478 = vpop.f32.mrf.mxu0
      %v2479 = vadd.f32 0.0, %v2478
      %2480 = vmatmul.bf16.gmra.mxu0 %v2418
      %v2481 = vpop.f32.mrf.mxu0
      %v2482 = vadd.f32 0.0, %v2481
      %v2483 = vpop.f32.mrf.mxu0
      %v2484 = vadd.f32 0.0, %v2483
      %2485 = vmatmul.bf16.gmra.mxu0 %v2421
      %v2486 = vpop.f32.mrf.mxu0
      %v2487 = vadd.f32 0.0, %v2486
      %v2488 = vpop.f32.mrf.mxu0
      %v2489 = vadd.f32 0.0, %v2488
      %2490 = vmatmul.bf16.gmra.mxu0 %v2424
      %v2491 = vpop.f32.mrf.mxu0
      %v2492 = vadd.f32 0.0, %v2491
      %v2493 = vpop.f32.mrf.mxu0
      %v2494 = vadd.f32 0.0, %v2493
      %2495 = vmatmul.bf16.gmra.mxu0 %v2427
      %v2496 = vpop.f32.mrf.mxu0
      %v2497 = vadd.f32 0.0, %v2496
      %v2498 = vpop.f32.mrf.mxu0
      %v2499 = vadd.f32 0.0, %v2498
      %2500 = vmatmul.bf16.gmra.mxu0 %v2430
      %v2501 = vpop.f32.mrf.mxu0
      %v2502 = vadd.f32 0.0, %v2501
      %v2503 = vpop.f32.mrf.mxu0
      %v2504 = vadd.f32 0.0, %v2503
      %2505 = vmatmul.bf16.gmra.mxu0 %v2433
      %v2506 = vpop.f32.mrf.mxu0
      %v2507 = vadd.f32 0.0, %v2506
      %v2508 = vpop.f32.mrf.mxu0
      %v2509 = vadd.f32 0.0, %v2508
      %2510 = vmatmul.bf16.gmra.mxu0 %v2436
      %v2511 = vpop.f32.mrf.mxu0
      %v2512 = vadd.f32 0.0, %v2511
      %v2513 = vpop.f32.mrf.mxu0
      %v2514 = vadd.f32 0.0, %v2513
      %2515 = vmatmul.bf16.gmra.mxu0 %v2439
      %v2516 = vpop.f32.mrf.mxu0
      %v2517 = vadd.f32 0.0, %v2516
      %v2518 = vpop.f32.mrf.mxu0
      %v2519 = vadd.f32 0.0, %v2518
      %2520 = vmatmul.bf16.gmra.mxu0 %v2442
      %v2521 = vpop.f32.mrf.mxu0
      %v2522 = vadd.f32 0.0, %v2521
      %v2523 = vpop.f32.mrf.mxu0
      %v2524 = vadd.f32 0.0, %v2523
      %2525 = vmatmul.bf16.gmra.mxu0 %v2445
      %v2526 = vpop.f32.mrf.mxu0
      %v2527 = vadd.f32 0.0, %v2526
      %v2528 = vpop.f32.mrf.mxu0
      %v2529 = vadd.f32 0.0, %v2528
      %2530 = vmatmul.bf16.gmra.mxu0 %v2448
      %v2531 = vpop.f32.mrf.mxu0
      %v2532 = vadd.f32 0.0, %v2531
      %v2533 = vpop.f32.mrf.mxu0
      %v2534 = vadd.f32 0.0, %v2533
      %2535 = vmatmul.bf16.gmra.mxu0 %v2451
      %v2536 = vpop.f32.mrf.mxu0
      %v2537 = vadd.f32 0.0, %v2536
      %v2538 = vpop.f32.mrf.mxu0
      %v2539 = vadd.f32 0.0, %v2538
      %2540 = vmatmul.bf16.gmra.mxu0 %v2454
      %v2541 = vpop.f32.mrf.mxu0
      %v2542 = vadd.f32 0.0, %v2541
      %v2543 = vpop.f32.mrf.mxu0
      %v2544 = vadd.f32 0.0, %v2543
      %2545 = vmatmul.bf16.gmra.mxu0 %v2457
      %v2546 = vpop.f32.mrf.mxu0
      %v2547 = vadd.f32 0.0, %v2546
      %v2548 = vpop.f32.mrf.mxu0
      %v2549 = vadd.f32 0.0, %v2548
      %2550 = vdwg.mxu0
      %v2551 = vadd.f32 %v2329, %v2472
      %v2552 = vadd.f32 %v2330, %v2474
      %v2553 = vadd.f32 %v2331, %v2477
      %v2554 = vadd.f32 %v2332, %v2479
      %v2555 = vadd.f32 %v2333, %v2482
      %v2556 = vadd.f32 %v2334, %v2484
      %v2557 = vadd.f32 %v2335, %v2487
      %v2558 = vadd.f32 %v2336, %v2489
      %v2559 = vadd.f32 %v2337, %v2492
      %v2560 = vadd.f32 %v2338, %v2494
      %v2561 = vadd.f32 %v2339, %v2497
      %v2562 = vadd.f32 %v2340, %v2499
      %v2563 = vadd.f32 %v2341, %v2502
      %v2564 = vadd.f32 %v2342, %v2504
      %v2565 = vadd.f32 %v2343, %v2507
      %v2566 = vadd.f32 %v2344, %v2509
      %v2567 = vadd.f32 %v2345, %v2512
      %v2568 = vadd.f32 %v2346, %v2514
      %v2569 = vadd.f32 %v2347, %v2517
      %v2570 = vadd.f32 %v2348, %v2519
      %v2571 = vadd.f32 %v2349, %v2522
      %v2572 = vadd.f32 %v2350, %v2524
      %v2573 = vadd.f32 %v2351, %v2527
      %v2574 = vadd.f32 %v2352, %v2529
      %v2575 = vadd.f32 %v2353, %v2532
      %v2576 = vadd.f32 %v2354, %v2534
      %v2577 = vadd.f32 %v2355, %v2537
      %v2578 = vadd.f32 %v2356, %v2539
      %v2579 = vadd.f32 %v2357, %v2542
      %v2580 = vadd.f32 %v2358, %v2544
      %v2581 = vadd.f32 %v2359, %v2547
      %v2582 = vadd.f32 %v2360, %v2549
      %v2583 = vld [vmem:[%s4] sm:$0x1]
      %v2585 = vperm.slane %v2583, 0
      %v2587 = vadd.f32 %v2551, %v2585
      %v2588 = vadd.f32 %v2552, %v2585
      %v2589 = vadd.f32 %v2553, %v2585
      %v2590 = vadd.f32 %v2554, %v2585
      %v2591 = vadd.f32 %v2555, %v2585
      %v2592 = vadd.f32 %v2556, %v2585
      %v2593 = vadd.f32 %v2557, %v2585
      %v2594 = vadd.f32 %v2558, %v2585
      %v2595 = vadd.f32 %v2559, %v2585
      %v2596 = vadd.f32 %v2560, %v2585
      %v2597 = vadd.f32 %v2561, %v2585
      %v2598 = vadd.f32 %v2562, %v2585
      %v2599 = vadd.f32 %v2563, %v2585
      %v2600 = vadd.f32 %v2564, %v2585
      %v2601 = vadd.f32 %v2565, %v2585
      %v2602 = vadd.f32 %v2566, %v2585
      %v2603 = vadd.f32 %v2567, %v2585
      %v2604 = vadd.f32 %v2568, %v2585
      %v2605 = vadd.f32 %v2569, %v2585
      %v2606 = vadd.f32 %v2570, %v2585
      %v2607 = vadd.f32 %v2571, %v2585
      %v2608 = vadd.f32 %v2572, %v2585
      %v2609 = vadd.f32 %v2573, %v2585
      %v2610 = vadd.f32 %v2574, %v2585
      %v2611 = vadd.f32 %v2575, %v2585
      %v2612 = vadd.f32 %v2576, %v2585
      %v2613 = vadd.f32 %v2577, %v2585
      %v2614 = vadd.f32 %v2578, %v2585
      %v2615 = vadd.f32 %v2579, %v2585
      %v2616 = vadd.f32 %v2580, %v2585
      %v2617 = vadd.f32 %v2581, %v2585
      %v2618 = vadd.f32 %v2582, %v2585
      %v2619 = vmax.f32 %v2587, 0.0
      %v2620 = vmax.f32 %v2588, 0.0
      %v2621 = vmax.f32 %v2589, 0.0
      %v2622 = vmax.f32 %v2590, 0.0
      %v2623 = vmax.f32 %v2591, 0.0
      %v2624 = vmax.f32 %v2592, 0.0
      %v2625 = vmax.f32 %v2593, 0.0
      %v2626 = vmax.f32 %v2594, 0.0
      %v2627 = vmax.f32 %v2595, 0.0
      %v2628 = vmax.f32 %v2596, 0.0
      %v2629 = vmax.f32 %v2597, 0.0
      %v2630 = vmax.f32 %v2598, 0.0
      %v2631 = vmax.f32 %v2599, 0.0
      %v2632 = vmax.f32 %v2600, 0.0
      %v2633 = vmax.f32 %v2601, 0.0
      %v2634 = vmax.f32 %v2602, 0.0
      %v2635 = vmax.f32 %v2603, 0.0
      %v2636 = vmax.f32 %v2604, 0.0
      %v2637 = vmax.f32 %v2605, 0.0
      %v2638 = vmax.f32 %v2606, 0.0
      %v2639 = vmax.f32 %v2607, 0.0
      %v2640 = vmax.f32 %v2608, 0.0
      %v2641 = vmax.f32 %v2609, 0.0
      %v2642 = vmax.f32 %v2610, 0.0
      %v2643 = vmax.f32 %v2611, 0.0
      %v2644 = vmax.f32 %v2612, 0.0
      %v2645 = vmax.f32 %v2613, 0.0
      %v2646 = vmax.f32 %v2614, 0.0
      %v2647 = vmax.f32 %v2615, 0.0
      %v2648 = vmax.f32 %v2616, 0.0
      %v2649 = vmax.f32 %v2617, 0.0
      %v2650 = vmax.f32 %v2618, 0.0
      %v2651 = vpack.c.bf16 %v2620, %v2619
      %v2652 = vpack.c.bf16 %v2622, %v2621
      %v2653 = vpack.c.bf16 %v2624, %v2623
      %v2654 = vpack.c.bf16 %v2626, %v2625
      %v2655 = vpack.c.bf16 %v2628, %v2627
      %v2656 = vpack.c.bf16 %v2630, %v2629
      %v2657 = vpack.c.bf16 %v2632, %v2631
      %v2658 = vpack.c.bf16 %v2634, %v2633
      %v2659 = vpack.c.bf16 %v2636, %v2635
      %v2660 = vpack.c.bf16 %v2638, %v2637
      %v2661 = vpack.c.bf16 %v2640, %v2639
      %v2662 = vpack.c.bf16 %v2642, %v2641
      %v2663 = vpack.c.bf16 %v2644, %v2643
      %v2664 = vpack.c.bf16 %v2646, %v2645
      %v2665 = vpack.c.bf16 %v2648, %v2647
      %v2666 = vpack.c.bf16 %v2650, %v2649
      %v2667 = vld [vmem:[%s5] sm:$0x3]
      %v2668 = vld [vmem:[%s6] sm:$0x1]
      %v2670 = vperm.slane %v2668, 0
      %v2673 = vsel %vm387, %v2651, 0
      %v2676 = vsel %vm387, %v2652, 0
      %v2679 = vsel %vm387, %v2653, 0
      %v2682 = vsel %vm387, %v2654, 0
      %v2685 = vsel %vm387, %v2655, 0
      %v2688 = vsel %vm387, %v2656, 0
      %v2691 = vsel %vm387, %v2657, 0
      %v2694 = vsel %vm387, %v2658, 0
      %v2697 = vsel %vm387, %v2659, 0
      %v2700 = vsel %vm387, %v2660, 0
      %v2703 = vsel %vm387, %v2661, 0
      %v2706 = vsel %vm387, %v2662, 0
      %v2709 = vsel %vm387, %v2663, 0
      %v2712 = vsel %vm387, %v2664, 0
      %v2715 = vsel %vm387, %v2665, 0
      %v2718 = vsel %vm387, %v2666, 0
      %v2721 = vsel %vm436, %v2667, 0
      %2723 = vmatpush.bf16.msra.mxu0 0
      %2724 = vmatpush.bf16.msra.mxu0 0
      %2725 = vmatpush.bf16.msra.mxu0 0
      %2726 = vmatpush.bf16.msra.mxu0 0
      %2727 = vmatpush.bf16.msra.mxu0 0
      %2728 = vmatpush.bf16.msra.mxu0 0
      %2729 = vmatpush.bf16.msra.mxu0 0
      %2730 = vmatpush.bf16.msra.mxu0 %v2721
      %2731 = vmatmul.bf16.gmra.mxu0 %v2673
      %v2732 = vpop.f32.mrf.mxu0
      %v2733 = vadd.f32 %v2670, %v2732
      %v2734 = vpop.f32.mrf.mxu0
      %v2735 = vadd.f32 %v2670, %v2734
      %2736 = vmatmul.bf16.gmra.mxu0 %v2676
      %v2737 = vpop.f32.mrf.mxu0
      %v2738 = vadd.f32 %v2670, %v2737
      %v2739 = vpop.f32.mrf.mxu0
      %v2740 = vadd.f32 %v2670, %v2739
      %2741 = vmatmul.bf16.gmra.mxu0 %v2679
      %v2742 = vpop.f32.mrf.mxu0
      %v2743 = vadd.f32 %v2670, %v2742
      %v2744 = vpop.f32.mrf.mxu0
      %v2745 = vadd.f32 %v2670, %v2744
      %2746 = vmatmul.bf16.gmra.mxu0 %v2682
      %v2747 = vpop.f32.mrf.mxu0
      %v2748 = vadd.f32 %v2670, %v2747
      %v2749 = vpop.f32.mrf.mxu0
      %v2750 = vadd.f32 %v2670, %v2749
      %2751 = vmatmul.bf16.gmra.mxu0 %v2685
      %v2752 = vpop.f32.mrf.mxu0
      %v2753 = vadd.f32 %v2670, %v2752
      %v2754 = vpop.f32.mrf.mxu0
      %v2755 = vadd.f32 %v2670, %v2754
      %2756 = vmatmul.bf16.gmra.mxu0 %v2688
      %v2757 = vpop.f32.mrf.mxu0
      %v2758 = vadd.f32 %v2670, %v2757
      %v2759 = vpop.f32.mrf.mxu0
      %v2760 = vadd.f32 %v2670, %v2759
      %2761 = vmatmul.bf16.gmra.mxu0 %v2691
      %v2762 = vpop.f32.mrf.mxu0
      %v2763 = vadd.f32 %v2670, %v2762
      %v2764 = vpop.f32.mrf.mxu0
      %v2765 = vadd.f32 %v2670, %v2764
      %2766 = vmatmul.bf16.gmra.mxu0 %v2694
      %v2767 = vpop.f32.mrf.mxu0
      %v2768 = vadd.f32 %v2670, %v2767
      %v2769 = vpop.f32.mrf.mxu0
      %v2770 = vadd.f32 %v2670, %v2769
      %2771 = vmatmul.bf16.gmra.mxu0 %v2697
      %v2772 = vpop.f32.mrf.mxu0
      %v2773 = vadd.f32 %v2670, %v2772
      %v2774 = vpop.f32.mrf.mxu0
      %v2775 = vadd.f32 %v2670, %v2774
      %2776 = vmatmul.bf16.gmra.mxu0 %v2700
      %v2777 = vpop.f32.mrf.mxu0
      %v2778 = vadd.f32 %v2670, %v2777
      %v2779 = vpop.f32.mrf.mxu0
      %v2780 = vadd.f32 %v2670, %v2779
      %2781 = vmatmul.bf16.gmra.mxu0 %v2703
      %v2782 = vpop.f32.mrf.mxu0
      %v2783 = vadd.f32 %v2670, %v2782
      %v2784 = vpop.f32.mrf.mxu0
      %v2785 = vadd.f32 %v2670, %v2784
      %2786 = vmatmul.bf16.gmra.mxu0 %v2706
      %v2787 = vpop.f32.mrf.mxu0
      %v2788 = vadd.f32 %v2670, %v2787
      %v2789 = vpop.f32.mrf.mxu0
      %v2790 = vadd.f32 %v2670, %v2789
      %2791 = vmatmul.bf16.gmra.mxu0 %v2709
      %v2792 = vpop.f32.mrf.mxu0
      %v2793 = vadd.f32 %v2670, %v2792
      %v2794 = vpop.f32.mrf.mxu0
      %v2795 = vadd.f32 %v2670, %v2794
      %2796 = vmatmul.bf16.gmra.mxu0 %v2712
      %v2797 = vpop.f32.mrf.mxu0
      %v2798 = vadd.f32 %v2670, %v2797
      %v2799 = vpop.f32.mrf.mxu0
      %v2800 = vadd.f32 %v2670, %v2799
      %2801 = vmatmul.bf16.gmra.mxu0 %v2715
      %v2802 = vpop.f32.mrf.mxu0
      %v2803 = vadd.f32 %v2670, %v2802
      %v2804 = vpop.f32.mrf.mxu0
      %v2805 = vadd.f32 %v2670, %v2804
      %2806 = vmatmul.bf16.gmra.mxu0 %v2718
      %v2807 = vpop.f32.mrf.mxu0
      %v2808 = vadd.f32 %v2670, %v2807
      %v2809 = vpop.f32.mrf.mxu0
      %v2810 = vadd.f32 %v2670, %v2809
      %2811 = vdwg.mxu0
      %v2812 = vld [vmem:[%s7] sm:$0x3]
      %v2813 = vld [vmem:[%s8] sm:$0x1]
      %v2815 = vperm.slane %v2813, 0
      %v2818 = vsel %vm436, %v2812, 0
      %2820 = vmatpush.bf16.msra.mxu0 0
      %2821 = vmatpush.bf16.msra.mxu0 0
      %2822 = vmatpush.bf16.msra.mxu0 0
      %2823 = vmatpush.bf16.msra.mxu0 0
      %2824 = vmatpush.bf16.msra.mxu0 0
      %2825 = vmatpush.bf16.msra.mxu0 0
      %2826 = vmatpush.bf16.msra.mxu0 0
      %2827 = vmatpush.bf16.msra.mxu0 %v2818
      %2828 = vmatmul.bf16.gmra.mxu0 %v389
      %v2829 = vpop.f32.mrf.mxu0
      %v2830 = vadd.f32 %v2815, %v2829
      %v2831 = vpop.f32.mrf.mxu0
      %v2832 = vadd.f32 %v2815, %v2831
      %2833 = vmatmul.bf16.gmra.mxu0 %v392
      %v2834 = vpop.f32.mrf.mxu0
      %v2835 = vadd.f32 %v2815, %v2834
      %v2836 = vpop.f32.mrf.mxu0
      %v2837 = vadd.f32 %v2815, %v2836
      %2838 = vmatmul.bf16.gmra.mxu0 %v395
      %v2839 = vpop.f32.mrf.mxu0
      %v2840 = vadd.f32 %v2815, %v2839
      %v2841 = vpop.f32.mrf.mxu0
      %v2842 = vadd.f32 %v2815, %v2841
      %2843 = vmatmul.bf16.gmra.mxu0 %v398
      %v2844 = vpop.f32.mrf.mxu0
      %v2845 = vadd.f32 %v2815, %v2844
      %v2846 = vpop.f32.mrf.mxu0
      %v2847 = vadd.f32 %v2815, %v2846
      %2848 = vmatmul.bf16.gmra.mxu0 %v401
      %v2849 = vpop.f32.mrf.mxu0
      %v2850 = vadd.f32 %v2815, %v2849
      %v2851 = vpop.f32.mrf.mxu0
      %v2852 = vadd.f32 %v2815, %v2851
      %2853 = vmatmul.bf16.gmra.mxu0 %v404
      %v2854 = vpop.f32.mrf.mxu0
      %v2855 = vadd.f32 %v2815, %v2854
      %v2856 = vpop.f32.mrf.mxu0
      %v2857 = vadd.f32 %v2815, %v2856
      %2858 = vmatmul.bf16.gmra.mxu0 %v407
      %v2859 = vpop.f32.mrf.mxu0
      %v2860 = vadd.f32 %v2815, %v2859
      %v2861 = vpop.f32.mrf.mxu0
      %v2862 = vadd.f32 %v2815, %v2861
      %2863 = vmatmul.bf16.gmra.mxu0 %v410
      %v2864 = vpop.f32.mrf.mxu0
      %v2865 = vadd.f32 %v2815, %v2864
      %v2866 = vpop.f32.mrf.mxu0
      %v2867 = vadd.f32 %v2815, %v2866
      %2868 = vmatmul.bf16.gmra.mxu0 %v413
      %v2869 = vpop.f32.mrf.mxu0
      %v2870 = vadd.f32 %v2815, %v2869
      %v2871 = vpop.f32.mrf.mxu0
      %v2872 = vadd.f32 %v2815, %v2871
      %2873 = vmatmul.bf16.gmra.mxu0 %v416
      %v2874 = vpop.f32.mrf.mxu0
      %v2875 = vadd.f32 %v2815, %v2874
      %v2876 = vpop.f32.mrf.mxu0
      %v2877 = vadd.f32 %v2815, %v2876
      %2878 = vmatmul.bf16.gmra.mxu0 %v419
      %v2879 = vpop.f32.mrf.mxu0
      %v2880 = vadd.f32 %v2815, %v2879
      %v2881 = vpop.f32.mrf.mxu0
      %v2882 = vadd.f32 %v2815, %v2881
      %2883 = vmatmul.bf16.gmra.mxu0 %v422
      %v2884 = vpop.f32.mrf.mxu0
      %v2885 = vadd.f32 %v2815, %v2884
      %v2886 = vpop.f32.mrf.mxu0
      %v2887 = vadd.f32 %v2815, %v2886
      %2888 = vmatmul.bf16.gmra.mxu0 %v425
      %v2889 = vpop.f32.mrf.mxu0
      %v2890 = vadd.f32 %v2815, %v2889
      %v2891 = vpop.f32.mrf.mxu0
      %v2892 = vadd.f32 %v2815, %v2891
      %2893 = vmatmul.bf16.gmra.mxu0 %v428
      %v2894 = vpop.f32.mrf.mxu0
      %v2895 = vadd.f32 %v2815, %v2894
      %v2896 = vpop.f32.mrf.mxu0
      %v2897 = vadd.f32 %v2815, %v2896
      %2898 = vmatmul.bf16.gmra.mxu0 %v431
      %v2899 = vpop.f32.mrf.mxu0
      %v2900 = vadd.f32 %v2815, %v2899
      %v2901 = vpop.f32.mrf.mxu0
      %v2902 = vadd.f32 %v2815, %v2901
      %2903 = vmatmul.bf16.gmra.mxu0 %v434
      %v2904 = vpop.f32.mrf.mxu0
      %v2905 = vadd.f32 %v2815, %v2904
      %v2906 = vpop.f32.mrf.mxu0
      %v2907 = vadd.f32 %v2815, %v2906
      %2908 = vdwg.mxu0
      %v2909 = vadd.f32 %v2733, %v2830
      %v2910 = vadd.f32 %v2735, %v2832
      %v2911 = vadd.f32 %v2738, %v2835
      %v2912 = vadd.f32 %v2740, %v2837
      %v2913 = vadd.f32 %v2743, %v2840
      %v2914 = vadd.f32 %v2745, %v2842
      %v2915 = vadd.f32 %v2748, %v2845
      %v2916 = vadd.f32 %v2750, %v2847
      %v2917 = vadd.f32 %v2753, %v2850
      %v2918 = vadd.f32 %v2755, %v2852
      %v2919 = vadd.f32 %v2758, %v2855
      %v2920 = vadd.f32 %v2760, %v2857
      %v2921 = vadd.f32 %v2763, %v2860
      %v2922 = vadd.f32 %v2765, %v2862
      %v2923 = vadd.f32 %v2768, %v2865
      %v2924 = vadd.f32 %v2770, %v2867
      %v2925 = vadd.f32 %v2773, %v2870
      %v2926 = vadd.f32 %v2775, %v2872
      %v2927 = vadd.f32 %v2778, %v2875
      %v2928 = vadd.f32 %v2780, %v2877
      %v2929 = vadd.f32 %v2783, %v2880
      %v2930 = vadd.f32 %v2785, %v2882
      %v2931 = vadd.f32 %v2788, %v2885
      %v2932 = vadd.f32 %v2790, %v2887
      %v2933 = vadd.f32 %v2793, %v2890
      %v2934 = vadd.f32 %v2795, %v2892
      %v2935 = vadd.f32 %v2798, %v2895
      %v2936 = vadd.f32 %v2800, %v2897
      %v2937 = vadd.f32 %v2803, %v2900
      %v2938 = vadd.f32 %v2805, %v2902
      %v2939 = vadd.f32 %v2808, %v2905
      %v2940 = vadd.f32 %v2810, %v2907
      %v2941 = vmax.f32 %v2909, 0.0
      %v2942 = vmax.f32 %v2910, 0.0
      %v2943 = vmax.f32 %v2911, 0.0
      %v2944 = vmax.f32 %v2912, 0.0
      %v2945 = vmax.f32 %v2913, 0.0
      %v2946 = vmax.f32 %v2914, 0.0
      %v2947 = vmax.f32 %v2915, 0.0
      %v2948 = vmax.f32 %v2916, 0.0
      %v2949 = vmax.f32 %v2917, 0.0
      %v2950 = vmax.f32 %v2918, 0.0
      %v2951 = vmax.f32 %v2919, 0.0
      %v2952 = vmax.f32 %v2920, 0.0
      %v2953 = vmax.f32 %v2921, 0.0
      %v2954 = vmax.f32 %v2922, 0.0
      %v2955 = vmax.f32 %v2923, 0.0
      %v2956 = vmax.f32 %v2924, 0.0
      %v2957 = vmax.f32 %v2925, 0.0
      %v2958 = vmax.f32 %v2926, 0.0
      %v2959 = vmax.f32 %v2927, 0.0
      %v2960 = vmax.f32 %v2928, 0.0
      %v2961 = vmax.f32 %v2929, 0.0
      %v2962 = vmax.f32 %v2930, 0.0
      %v2963 = vmax.f32 %v2931, 0.0
      %v2964 = vmax.f32 %v2932, 0.0
      %v2965 = vmax.f32 %v2933, 0.0
      %v2966 = vmax.f32 %v2934, 0.0
      %v2967 = vmax.f32 %v2935, 0.0
      %v2968 = vmax.f32 %v2936, 0.0
      %v2969 = vmax.f32 %v2937, 0.0
      %v2970 = vmax.f32 %v2938, 0.0
      %v2971 = vmax.f32 %v2939, 0.0
      %v2972 = vmax.f32 %v2940, 0.0
      %vm2973 = vcmask 130048
      %2974 = vst.msk [vmem:[%s332] sm:$0xff] %vm2973, %v2941
      %2975 = vst.msk [vmem:[%s332 + $0x8] sm:$0xff] %vm2973, %v2942
      %2976 = vst.msk [vmem:[%s332 + $0x10] sm:$0xff] %vm2973, %v2943
      %2977 = vst.msk [vmem:[%s332 + $0x18] sm:$0xff] %vm2973, %v2944
      %2978 = vst.msk [vmem:[%s332 + $0x20] sm:$0xff] %vm2973, %v2945
      %2979 = vst.msk [vmem:[%s332 + $0x28] sm:$0xff] %vm2973, %v2946
      %2980 = vst.msk [vmem:[%s332 + $0x30] sm:$0xff] %vm2973, %v2947
      %2981 = vst.msk [vmem:[%s332 + $0x38] sm:$0xff] %vm2973, %v2948
      %2982 = vst.msk [vmem:[%s332 + $0x40] sm:$0xff] %vm2973, %v2949
      %2983 = vst.msk [vmem:[%s332 + $0x48] sm:$0xff] %vm2973, %v2950
      %2984 = vst.msk [vmem:[%s332 + $0x50] sm:$0xff] %vm2973, %v2951
      %2985 = vst.msk [vmem:[%s332 + $0x58] sm:$0xff] %vm2973, %v2952
      %2986 = vst.msk [vmem:[%s332 + $0x60] sm:$0xff] %vm2973, %v2953
      %2987 = vst.msk [vmem:[%s332 + $0x68] sm:$0xff] %vm2973, %v2954
      %2988 = vst.msk [vmem:[%s332 + $0x70] sm:$0xff] %vm2973, %v2955
      %2989 = vst.msk [vmem:[%s332 + $0x78] sm:$0xff] %vm2973, %v2956
      %2990 = vst.msk [vmem:[%s332 + $0x80] sm:$0xff] %vm2973, %v2957
      %2991 = vst.msk [vmem:[%s332 + $0x88] sm:$0xff] %vm2973, %v2958
      %2992 = vst.msk [vmem:[%s332 + $0x90] sm:$0xff] %vm2973, %v2959
      %2993 = vst.msk [vmem:[%s332 + $0x98] sm:$0xff] %vm2973, %v2960
      %2994 = vst.msk [vmem:[%s332 + $0xa0] sm:$0xff] %vm2973, %v2961
      %2995 = vst.msk [vmem:[%s332 + $0xa8] sm:$0xff] %vm2973, %v2962
      %2996 = vst.msk [vmem:[%s332 + $0xb0] sm:$0xff] %vm2973, %v2963
      %2997 = vst.msk [vmem:[%s332 + $0xb8] sm:$0xff] %vm2973, %v2964
      %2998 = vst.msk [vmem:[%s332 + $0xc0] sm:$0xff] %vm2973, %v2965
      %2999 = vst.msk [vmem:[%s332 + $0xc8] sm:$0xff] %vm2973, %v2966
      %3000 = vst.msk [vmem:[%s332 + $0xd0] sm:$0xff] %vm2973, %v2967
      %3001 = vst.msk [vmem:[%s332 + $0xd8] sm:$0xff] %vm2973, %v2968
      %3002 = vst.msk [vmem:[%s332 + $0xe0] sm:$0xff] %vm2973, %v2969
      %3003 = vst.msk [vmem:[%s332 + $0xe8] sm:$0xff] %vm2973, %v2970
      %3004 = vst.msk [vmem:[%s332 + $0xf0] sm:$0xff] %vm2973, %v2971
      %3005 = vst.msk [vmem:[%s332 + $0xf8] sm:$0xff] %vm2973, %v2972
      %p3006 = scmp.lt.s32.totalorder %s20, 1
      %s3007 = scalar_select %p3006, %s20, 1
      %s3008 = smul.addr %s3007, 32
      %s3009 = smul.addr %s3008, 8
      %s3010 = scalar_lea.vmem %s9, %s3009
      // Predicated region
      $region57: #{tpu_custom_call.1} parent=55 // pred_check
        %p3011 = pneg %p232
      $region58: #{tpu_custom_call.1} parent=55 // pred_check_branch
        %3013 = sbr.rel (%p3011) target = $region60
      $region59: #{tpu_custom_call.1} parent=55 // pred_region
        _
      $region60: #{tpu_custom_call.1} parent=55 // pred_fallthru
        _
    $region56: #{tpu_custom_call.1} parent=5 // pred_fallthru
      _
    %p3014 = scmp.le.s32.totalorder 2, %s15
    // Predicated region
    $region61: #{tpu_custom_call.1} parent=5 // pred_check
      %p3015 = pneg %p3014
    $region62: #{tpu_custom_call.1} parent=5 // pred_check_branch
      %3017 = sbr.rel (%p3015) target = $region64
    $region63: #{tpu_custom_call.1} parent=5 // pred_region
      %s3018 = ssub.s32 %s15, 2
      // Predicated region
      $region65: #{tpu_custom_call.1} parent=63 // pred_check
        %p3019 = pneg %p238
      $region66: #{tpu_custom_call.1} parent=63 // pred_check_branch
        %3021 = sbr.rel (%p3019) target = $region68
      $region67: #{tpu_custom_call.1} parent=63 // pred_region
        %p3022 = scmp.lt.s32.totalorder %s21, 1
        %s3023 = scalar_select %p3022, %s21, 1
        %s3024 = smul.addr %s3023, 32
        %s3025 = smul.addr %s3024, 8
        %s3026 = scalar_lea.vmem %s9, %s3025
      $region68: #{tpu_custom_call.1} parent=63 // pred_fallthru
        _
    $region64: #{tpu_custom_call.1} parent=5 // pred_fallthru
      _
  $region6: #{tpu_custom_call.1} parent=0 // loop_footer
    %s19 = sadd.s32 1, %s15
  $region7: #{tpu_custom_call.1} parent=0 // loop_footer_branch
    %14 = sbr.rel target = $region3
  $region8: #{tpu_custom_call.1} parent=0 // loop_exit
    _

</llo_original>
